<compile_context>
chip_gen: v5e
topology: v5e:2x2
jax: 0.10.0
libtpu: 0.0.40
codegen_flags: <defaults>
</compile_context>

<pallas_src>
import functools

import jax
import jax.numpy as jnp
from jax.experimental import pallas as pl
from jax.experimental.pallas import tpu as pltpu


# ------------------------------ kernel ------------------------------------ #

def _fused_attention_kernel(x_ref, wqkv_ref, wo_ref, b_ref, o_ref, acc_ref, *,
                            num_heads, mxu_dtype):
    """One grid step: a block of `Bt` batch rows, all heads.

    x_ref:    (Bt, N, C)   bf16
    wqkv_ref: (C, 3C)      bf16, softmax scale pre-folded into the q columns
    wo_ref:   (H, Dh, C)   bf16, proj weight split per head on the leading dim
    b_ref:    (1, C)       f32, proj bias
    o_ref:    (Bt, N, C)   output dtype
    acc_ref:  (Bt*N, C)    f32 VMEM scratch (projection accumulator)
    """
    Bt, N, C = x_ref.shape
    H = num_heads
    Dh = C // H
    M = Bt * N

    # ---- 1) fused QKV projection: one wide MXU matmul, f32 accumulation ----
    x2d = x_ref[...].reshape(M, C)                       # free: N is sublane-aligned
    qkv = jnp.dot(x2d, wqkv_ref[...],
                  preferred_element_type=jnp.float32)    # (M, 3C) f32

    # ---- 2+3) per-head attention, output projection K-tiled by head --------
    # out = b + sum_h softmax(q_h k_h^T) v_h @ Wproj[h*Dh:(h+1)*Dh, :]
    acc_ref[...] = jnp.broadcast_to(b_ref[...], (M, C))

    # Static unroll over heads (H is small); every per-head temporary (s, p,
    # y_h) dies at the end of its iteration because it is folded into acc_ref.
    # TODO(synk): switch to lax.fori_loop(..., unroll=True) for large H.
    for h in range(H):
        c0 = h * Dh
        q = qkv[:, 0 * C + c0:0 * C + c0 + Dh].reshape(Bt, N, Dh).astype(mxu_dtype)
        k = qkv[:, 1 * C + c0:1 * C + c0 + Dh].reshape(Bt, N, Dh).astype(mxu_dtype)
        v = qkv[:, 2 * C + c0:2 * C + c0 + Dh].reshape(Bt, N, Dh).astype(mxu_dtype)

        # Scores, batched over the Bt rows of this block (leading batch dim).
        # The scale is already folded into the q columns of wqkv -> no (N, N)
        # rescale here.
        s = jnp.einsum("bnd,bmd->bnm", q, k,
                       preferred_element_type=jnp.float32)          # (Bt, N, N) f32

        # Numerically stable softmax in f32; reciprocal on the (idle) EUP.
        s = s - jnp.max(s, axis=-1, keepdims=True)
        p = jnp.exp(s)
        p = p * pl.reciprocal(jnp.sum(p, axis=-1, keepdims=True), approx=True)

        y = jnp.einsum("bnm,bmd->bnd", p.astype(mxu_dtype), v,
                       preferred_element_type=jnp.float32)          # (Bt, N, Dh) f32

        # Fold this head straight into the output projection.  wo_ref[h] is a
        # free leading-dim ref slice; the head "concat" happens inside the MXU
        # accumulation, so no lane reshuffle of the attention output is needed.
        acc_ref[...] += jnp.dot(y.reshape(M, Dh).astype(mxu_dtype), wo_ref[h],
                                preferred_element_type=jnp.float32)

    o_ref[...] = acc_ref[...].reshape(Bt, N, C).astype(o_ref.dtype)


# ------------------------------ wrapper ------------------------------------ #

def attention_forward(x, w_qkv, w_proj, b_proj, *, num_heads, scale,
                      rows_per_block=None, mxu_dtype=jnp.bfloat16):
    """Fused Pallas MHSA forward.

    x:      (B, N, C)
    w_qkv:  (C, 3C)  columns ordered [q | k | v], head-major within each third
    w_proj: (C, C)
    b_proj: (C,)

    NOTE: intentionally not wrapped in jax.jit so the pl.Buffered(1) fallback
    below can catch lowering errors at call time.
    """
    B, N, C = x.shape
    H = num_heads
    assert C % H == 0
    Dh = C // H
    out_dtype = x.dtype

    if rows_per_block is None:
        # Row-batch per grid step to raise MXU M-utilization on the projections
        # (v5e/v6e), but keep >= 2 grid steps so both v7x TensorCores get work,
        # and cap the block size.
        rows_per_block = max(1, min(B // 2, max(1, 256 // N)))
    if N % 8:  # in-kernel (Bt, N) <-> (Bt*N,) reshapes assume sublane-aligned N
        rows_per_block = 1
    rows_per_block = max(1, min(rows_per_block, B))
    while B % rows_per_block:
        rows_per_block -= 1
    grid_b = B // rows_per_block

    # --- parameter prep (in a real model this is done once at init and the ---
    # --- parameters are simply stored in bf16) ------------------------------
    # Fold the softmax scale into the q columns; keep the proj bias in f32.
    w_qkv = jnp.concatenate([w_qkv[:, :C] * scale, w_qkv[:, C:]], axis=1)
    w_qkv_b = w_qkv.astype(mxu_dtype)                    # (C, 3C)   bf16
    w_o_b = w_proj.reshape(H, Dh, C).astype(mxu_dtype)   # (H, Dh, C) bf16
    b_f32 = b_proj.reshape(1, C).astype(jnp.float32)     # (1, C)     f32
    x_b = x.astype(mxu_dtype)                            # (B, N, C)  bf16

    kernel = functools.partial(_fused_attention_kernel,
                               num_heads=H, mxu_dtype=mxu_dtype)

    def build(single_buffer_weights):
        def resident_spec(shape):
            zeros = (0,) * len(shape)
            if single_buffer_weights:
                # Constant index_map -> the block never changes; Buffered(1)
                # halves its resident VMEM vs the default double buffering.
                return pl.BlockSpec(shape, lambda i: zeros,
                                    pipeline_mode=pl.Buffered(1))
            return pl.BlockSpec(shape, lambda i: zeros)

        return pl.pallas_call(
            kernel,
            out_shape=jax.ShapeDtypeStruct((B, N, C), out_dtype),
            grid=(grid_b,),
            in_specs=[
                pl.BlockSpec((rows_per_block, N, C), lambda i: (i, 0, 0)),
                resident_spec((C, 3 * C)),
                resident_spec((H, Dh, C)),
                resident_spec((1, C)),
            ],
            out_specs=pl.BlockSpec((rows_per_block, N, C), lambda i: (i, 0, 0)),
            scratch_shapes=[pltpu.VMEM((rows_per_block * N, C), jnp.float32)],
            compiler_params=pltpu.CompilerParams(
                dimension_semantics=("parallel",),   # shards grid over v7x's 2 TCs
            ),
        )

    args = (x_b, w_qkv_b, w_o_b, b_f32)
    try:
        return build(single_buffer_weights=True)(*args)
    except Exception:
        # TODO(synk): pl.Buffered(1) single-buffering rejected on this
        # jax/libtpu build; fall back to default (double-buffered) weights.
        return build(single_buffer_weights=False)(*args)


# ------------------------------ reference ---------------------------------- #

def attention_reference(x, w_qkv, w_proj, b_proj, *, num_heads, scale):
    """Pure-JAX f32 reference mirroring the PyTorch module."""
    B, N, C = x.shape
    H = num_heads
    Dh = C // H
    qkv = (x @ w_qkv).reshape(B, N, 3, H, Dh).transpose(2, 0, 3, 1, 4)
    q, k, v = qkv[0], qkv[1], qkv[2]
    attn = jnp.einsum("bhqd,bhkd->bhqk", q, k) * scale
    attn = jax.nn.softmax(attn, axis=-1)
    y = jnp.einsum("bhqk,bhkd->bhqd", attn, v).transpose(0, 2, 1, 3).reshape(B, N, C)
    return y @ w_proj + b_proj


# -------------------------------- main -------------------------------------- #

if __name__ == "__main__":
    B, N, C = 2, 16, 64          # small shapes consistent with the module
    num_heads = 8
    head_dim = C // num_heads
    scale = head_dim ** (-0.5)   # qk_scale=None -> head_dim ** -0.5

    key = jax.random.PRNGKey(0)
    k_x, k_qkv, k_proj, k_b = jax.random.split(key, 4)

    x = jax.random.normal(k_x, (B, N, C), dtype=jnp.float32)
    # qkv_bias=False -> no qkv bias; proj has a bias (nn.Linear default).
    w_qkv = jax.random.normal(k_qkv, (C, 3 * C), dtype=jnp.float32) * 0.02
    w_proj = jax.random.normal(k_proj, (C, C), dtype=jnp.float32) * 0.02
    b_proj = jax.random.normal(k_b, (C,), dtype=jnp.float32) * 0.02

    out = attention_forward(
        x, w_qkv, w_proj, b_proj, num_heads=num_heads, scale=scale
    )
    out = jax.block_until_ready(out)

    ref = attention_reference(
        x, w_qkv, w_proj, b_proj, num_heads=num_heads, scale=scale
    )
    assert out.shape == (B, N, C)
    err = float(jnp.max(jnp.abs(out.astype(jnp.float32) - ref)))
    # bf16 MXU operands (f32 accumulation) + approx reciprocal vs f32 reference.
    assert err < 2e-2, f"max abs err {err}"
    print("KERNEL_OK")
</pallas_src>

<mosaic_0001>
module attributes {stable_mosaic.version = 11 : i64} {
  func.func @_fused_attention_kernel(%arg0: i32, %arg1: memref<1x16x64xbf16, #tpu.memory_space<vmem>>, %arg2: memref<64x192xbf16, #tpu.memory_space<vmem>>, %arg3: memref<8x8x64xbf16, #tpu.memory_space<vmem>>, %arg4: memref<1x64xf32, #tpu.memory_space<vmem>>, %arg5: memref<1x16x64xf32, #tpu.memory_space<vmem>>, %arg6: memref<16x64xf32, #tpu.memory_space<vmem>>) attributes {dimension_semantics = [#tpu.dimension_semantics<parallel>], iteration_bounds = array<i64: 2>, scalar_prefetch = 0 : i64, scratch_operands = 1 : i64, tpu.core_type = #tpu.core_type<tc>, window_params = [{transform_indices = @transform_0, window_bounds = array<i64: 1, 16, 64>}, {pipeline_mode = #tpu.pipeline_mode<synchronous>, transform_indices = @transform_1, window_bounds = array<i64: 64, 192>}, {pipeline_mode = #tpu.pipeline_mode<synchronous>, transform_indices = @transform_2, window_bounds = array<i64: 8, 8, 64>}, {pipeline_mode = #tpu.pipeline_mode<synchronous>, transform_indices = @transform_3, window_bounds = array<i64: 1, 64>}, {transform_indices = @transform_4, window_bounds = array<i64: 1, 16, 64>}]} {
    %c0 = arith.constant 0 : index
    %c0_0 = arith.constant 0 : index
    %c0_1 = arith.constant 0 : index
    %0 = vector.load %arg1[%c0, %c0_0, %c0_1] : memref<1x16x64xbf16, #tpu.memory_space<vmem>>, vector<1x16x64xbf16>
    %1 = vector.shape_cast %0 : vector<1x16x64xbf16> to vector<16x64xbf16>
    %c0_2 = arith.constant 0 : index
    %c0_3 = arith.constant 0 : index
    %2 = vector.load %arg2[%c0_2, %c0_3] : memref<64x192xbf16, #tpu.memory_space<vmem>>, vector<64x192xbf16>
    %cst = arith.constant dense<0.000000e+00> : vector<16x192xf32>
    %3 = tpu.matmul %1, %2, %cst {dimension_numbers = #tpu.dot_dimension_numbers<[1], [0], [0], [1], [0, 0, 1, 1], [], []>} : vector<16x64xbf16>, vector<64x192xbf16>, vector<16x192xf32> -> vector<16x192xf32>
    %c0_4 = arith.constant 0 : index
    %c0_5 = arith.constant 0 : index
    %4 = vector.load %arg4[%c0_4, %c0_5] : memref<1x64xf32, #tpu.memory_space<vmem>>, vector<1x64xf32>
    %5 = vector.shape_cast %4 : vector<1x64xf32> to vector<1x64xf32>
    %6 = vector.broadcast %5 : vector<1x64xf32> to vector<16x64xf32>
    %c0_6 = arith.constant 0 : index
    %c0_7 = arith.constant 0 : index
    %7 = vector.load %arg6[%c0_6, %c0_7] : memref<16x64xf32, #tpu.memory_space<vmem>>, vector<16x64xf32>
    tpu.vector_store %arg6[%c0_6, %c0_7], %6 {strides = array<i32>} : memref<16x64xf32, #tpu.memory_space<vmem>>, vector<16x64xf32>,
    %8 = vector.extract_strided_slice %3 {offsets = [0, 0], sizes = [16, 8], strides = [1, 1]} : vector<16x192xf32> to vector<16x8xf32>
    %9 = vector.shape_cast %8 : vector<16x8xf32> to vector<1x16x8xf32>
    %10 = arith.truncf %9 : vector<1x16x8xf32> to vector<1x16x8xbf16>
    %11 = vector.extract_strided_slice %3 {offsets = [0, 64], sizes = [16, 8], strides = [1, 1]} : vector<16x192xf32> to vector<16x8xf32>
    %12 = vector.shape_cast %11 : vector<16x8xf32> to vector<1x16x8xf32>
    %13 = arith.truncf %12 : vector<1x16x8xf32> to vector<1x16x8xbf16>
    %14 = vector.extract_strided_slice %3 {offsets = [0, 128], sizes = [16, 8], strides = [1, 1]} : vector<16x192xf32> to vector<16x8xf32>
    %15 = vector.shape_cast %14 : vector<16x8xf32> to vector<1x16x8xf32>
    %16 = arith.truncf %15 : vector<1x16x8xf32> to vector<1x16x8xbf16>
    "tpu.trace_start"() <{level = 10 : i32, message = "bnd,bmd->bnm"}> : () -> ()
    %cst_8 = arith.constant dense<0.000000e+00> : vector<1x16x16xf32>
    %17 = tpu.matmul %10, %13, %cst_8 {dimension_numbers = #tpu.dot_dimension_numbers<[2], [2], [1], [1], [0, 0, 0, 1, 1, 1], [0], [0]>} : vector<1x16x8xbf16>, vector<1x16x8xbf16>, vector<1x16x16xf32> -> vector<1x16x16xf32>
    "tpu.trace_stop"() : () -> ()
    %cst_9 = arith.constant dense<0xFF800000> : vector<1x16xf32>
    %18 = vector.multi_reduction <maximumf>, %17, %cst_9 [2] : vector<1x16x16xf32> to vector<1x16xf32>
    %19 = vector.shape_cast %18 : vector<1x16xf32> to vector<1x16x1xf32>
    %20 = vector.broadcast %19 : vector<1x16x1xf32> to vector<1x16x16xf32>
    %21 = arith.subf %17, %20 : vector<1x16x16xf32>
    %22 = math.exp %21 : vector<1x16x16xf32>
    %cst_10 = arith.constant dense<0.000000e+00> : vector<1x16xf32>
    %23 = vector.multi_reduction <add>, %22, %cst_10 [2] : vector<1x16x16xf32> to vector<1x16xf32>
    %24 = vector.shape_cast %23 : vector<1x16xf32> to vector<1x16x1xf32>
    %25 = tpu.reciprocal %24 {approx = true} : vector<1x16x1xf32> -> vector<1x16x1xf32>
    %26 = vector.broadcast %25 : vector<1x16x1xf32> to vector<1x16x16xf32>
    %27 = arith.mulf %22, %26 : vector<1x16x16xf32>
    %28 = arith.truncf %27 : vector<1x16x16xf32> to vector<1x16x16xbf16>
    "tpu.trace_start"() <{level = 10 : i32, message = "bnm,bmd->bnd"}> : () -> ()
    %cst_11 = arith.constant dense<0.000000e+00> : vector<1x16x8xf32>
    %29 = tpu.matmul %28, %16, %cst_11 {dimension_numbers = #tpu.dot_dimension_numbers<[2], [1], [1], [2], [0, 0, 0, 1, 1, 2], [0], [0]>} : vector<1x16x16xbf16>, vector<1x16x8xbf16>, vector<1x16x8xf32> -> vector<1x16x8xf32>
    "tpu.trace_stop"() : () -> ()
    %c0_12 = arith.constant 0 : index
    %c0_13 = arith.constant 0 : index
    %30 = vector.load %arg6[%c0_12, %c0_13] : memref<16x64xf32, #tpu.memory_space<vmem>>, vector<16x64xf32>
    %31 = vector.shape_cast %29 : vector<1x16x8xf32> to vector<16x8xf32>
    %32 = arith.truncf %31 : vector<16x8xf32> to vector<16x8xbf16>
    %c0_14 = arith.constant 0 : index
    %c0_15 = arith.constant 0 : index
    %c0_16 = arith.constant 0 : index
    %33 = vector.load %arg3[%c0_14, %c0_15, %c0_16] : memref<8x8x64xbf16, #tpu.memory_space<vmem>>, vector<1x8x64xbf16>
    %34 = vector.shape_cast %33 : vector<1x8x64xbf16> to vector<8x64xbf16>
    %cst_17 = arith.constant dense<0.000000e+00> : vector<16x64xf32>
    %35 = tpu.matmul %32, %34, %cst_17 {dimension_numbers = #tpu.dot_dimension_numbers<[1], [0], [0], [1], [0, 0, 1, 1], [], []>} : vector<16x8xbf16>, vector<8x64xbf16>, vector<16x64xf32> -> vector<16x64xf32>
    %36 = arith.addf %30, %35 : vector<16x64xf32>
    %c0_18 = arith.constant 0 : index
    %c0_19 = arith.constant 0 : index
    %37 = vector.load %arg6[%c0_18, %c0_19] : memref<16x64xf32, #tpu.memory_space<vmem>>, vector<16x64xf32>
    tpu.vector_store %arg6[%c0_18, %c0_19], %36 {strides = array<i32>} : memref<16x64xf32, #tpu.memory_space<vmem>>, vector<16x64xf32>,
    %38 = vector.extract_strided_slice %3 {offsets = [0, 8], sizes = [16, 8], strides = [1, 1]} : vector<16x192xf32> to vector<16x8xf32>
    %39 = vector.shape_cast %38 : vector<16x8xf32> to vector<1x16x8xf32>
    %40 = arith.truncf %39 : vector<1x16x8xf32> to vector<1x16x8xbf16>
    %41 = vector.extract_strided_slice %3 {offsets = [0, 72], sizes = [16, 8], strides = [1, 1]} : vector<16x192xf32> to vector<16x8xf32>
    %42 = vector.shape_cast %41 : vector<16x8xf32> to vector<1x16x8xf32>
    %43 = arith.truncf %42 : vector<1x16x8xf32> to vector<1x16x8xbf16>
    %44 = vector.extract_strided_slice %3 {offsets = [0, 136], sizes = [16, 8], strides = [1, 1]} : vector<16x192xf32> to vector<16x8xf32>
    %45 = vector.shape_cast %44 : vector<16x8xf32> to vector<1x16x8xf32>
    %46 = arith.truncf %45 : vector<1x16x8xf32> to vector<1x16x8xbf16>
    "tpu.trace_start"() <{level = 10 : i32, message = "bnd,bmd->bnm"}> : () -> ()
    %cst_20 = arith.constant dense<0.000000e+00> : vector<1x16x16xf32>
    %47 = tpu.matmul %40, %43, %cst_20 {dimension_numbers = #tpu.dot_dimension_numbers<[2], [2], [1], [1], [0, 0, 0, 1, 1, 1], [0], [0]>} : vector<1x16x8xbf16>, vector<1x16x8xbf16>, vector<1x16x16xf32> -> vector<1x16x16xf32>
    "tpu.trace_stop"() : () -> ()
    %cst_21 = arith.constant dense<0xFF800000> : vector<1x16xf32>
    %48 = vector.multi_reduction <maximumf>, %47, %cst_21 [2] : vector<1x16x16xf32> to vector<1x16xf32>
    %49 = vector.shape_cast %48 : vector<1x16xf32> to vector<1x16x1xf32>
    %50 = vector.broadcast %49 : vector<1x16x1xf32> to vector<1x16x16xf32>
    %51 = arith.subf %47, %50 : vector<1x16x16xf32>
    %52 = math.exp %51 : vector<1x16x16xf32>
    %cst_22 = arith.constant dense<0.000000e+00> : vector<1x16xf32>
    %53 = vector.multi_reduction <add>, %52, %cst_22 [2] : vector<1x16x16xf32> to vector<1x16xf32>
    %54 = vector.shape_cast %53 : vector<1x16xf32> to vector<1x16x1xf32>
    %55 = tpu.reciprocal %54 {approx = true} : vector<1x16x1xf32> -> vector<1x16x1xf32>
    %56 = vector.broadcast %55 : vector<1x16x1xf32> to vector<1x16x16xf32>
    %57 = arith.mulf %52, %56 : vector<1x16x16xf32>
    %58 = arith.truncf %57 : vector<1x16x16xf32> to vector<1x16x16xbf16>
    "tpu.trace_start"() <{level = 10 : i32, message = "bnm,bmd->bnd"}> : () -> ()
    %cst_23 = arith.constant dense<0.000000e+00> : vector<1x16x8xf32>
    %59 = tpu.matmul %58, %46, %cst_23 {dimension_numbers = #tpu.dot_dimension_numbers<[2], [1], [1], [2], [0, 0, 0, 1, 1, 2], [0], [0]>} : vector<1x16x16xbf16>, vector<1x16x8xbf16>, vector<1x16x8xf32> -> vector<1x16x8xf32>
    "tpu.trace_stop"() : () -> ()
    %c0_24 = arith.constant 0 : index
    %c0_25 = arith.constant 0 : index
    %60 = vector.load %arg6[%c0_24, %c0_25] : memref<16x64xf32, #tpu.memory_space<vmem>>, vector<16x64xf32>
    %61 = vector.shape_cast %59 : vector<1x16x8xf32> to vector<16x8xf32>
    %62 = arith.truncf %61 : vector<16x8xf32> to vector<16x8xbf16>
    %c1 = arith.constant 1 : index
    %c0_26 = arith.constant 0 : index
    %c0_27 = arith.constant 0 : index
    %63 = vector.load %arg3[%c1, %c0_26, %c0_27] : memref<8x8x64xbf16, #tpu.memory_space<vmem>>, vector<1x8x64xbf16>
    %64 = vector.shape_cast %63 : vector<1x8x64xbf16> to vector<8x64xbf16>
    %cst_28 = arith.constant dense<0.000000e+00> : vector<16x64xf32>
    %65 = tpu.matmul %62, %64, %cst_28 {dimension_numbers = #tpu.dot_dimension_numbers<[1], [0], [0], [1], [0, 0, 1, 1], [], []>} : vector<16x8xbf16>, vector<8x64xbf16>, vector<16x64xf32> -> vector<16x64xf32>
    %66 = arith.addf %60, %65 : vector<16x64xf32>
    %c0_29 = arith.constant 0 : index
    %c0_30 = arith.constant 0 : index
    %67 = vector.load %arg6[%c0_29, %c0_30] : memref<16x64xf32, #tpu.memory_space<vmem>>, vector<16x64xf32>
    tpu.vector_store %arg6[%c0_29, %c0_30], %66 {strides = array<i32>} : memref<16x64xf32, #tpu.memory_space<vmem>>, vector<16x64xf32>,
    %68 = vector.extract_strided_slice %3 {offsets = [0, 16], sizes = [16, 8], strides = [1, 1]} : vector<16x192xf32> to vector<16x8xf32>
    %69 = vector.shape_cast %68 : vector<16x8xf32> to vector<1x16x8xf32>
    %70 = arith.truncf %69 : vector<1x16x8xf32> to vector<1x16x8xbf16>
    %71 = vector.extract_strided_slice %3 {offsets = [0, 80], sizes = [16, 8], strides = [1, 1]} : vector<16x192xf32> to vector<16x8xf32>
    %72 = vector.shape_cast %71 : vector<16x8xf32> to vector<1x16x8xf32>
    %73 = arith.truncf %72 : vector<1x16x8xf32> to vector<1x16x8xbf16>
    %74 = vector.extract_strided_slice %3 {offsets = [0, 144], sizes = [16, 8], strides = [1, 1]} : vector<16x192xf32> to vector<16x8xf32>
    %75 = vector.shape_cast %74 : vector<16x8xf32> to vector<1x16x8xf32>
    %76 = arith.truncf %75 : vector<1x16x8xf32> to vector<1x16x8xbf16>
    "tpu.trace_start"() <{level = 10 : i32, message = "bnd,bmd->bnm"}> : () -> ()
    %cst_31 = arith.constant dense<0.000000e+00> : vector<1x16x16xf32>
    %77 = tpu.matmul %70, %73, %cst_31 {dimension_numbers = #tpu.dot_dimension_numbers<[2], [2], [1], [1], [0, 0, 0, 1, 1, 1], [0], [0]>} : vector<1x16x8xbf16>, vector<1x16x8xbf16>, vector<1x16x16xf32> -> vector<1x16x16xf32>
    "tpu.trace_stop"() : () -> ()
    %cst_32 = arith.constant dense<0xFF800000> : vector<1x16xf32>
    %78 = vector.multi_reduction <maximumf>, %77, %cst_32 [2] : vector<1x16x16xf32> to vector<1x16xf32>
    %79 = vector.shape_cast %78 : vector<1x16xf32> to vector<1x16x1xf32>
    %80 = vector.broadcast %79 : vector<1x16x1xf32> to vector<1x16x16xf32>
    %81 = arith.subf %77, %80 : vector<1x16x16xf32>
    %82 = math.exp %81 : vector<1x16x16xf32>
    %cst_33 = arith.constant dense<0.000000e+00> : vector<1x16xf32>
    %83 = vector.multi_reduction <add>, %82, %cst_33 [2] : vector<1x16x16xf32> to vector<1x16xf32>
    %84 = vector.shape_cast %83 : vector<1x16xf32> to vector<1x16x1xf32>
    %85 = tpu.reciprocal %84 {approx = true} : vector<1x16x1xf32> -> vector<1x16x1xf32>
    %86 = vector.broadcast %85 : vector<1x16x1xf32> to vector<1x16x16xf32>
    %87 = arith.mulf %82, %86 : vector<1x16x16xf32>
    %88 = arith.truncf %87 : vector<1x16x16xf32> to vector<1x16x16xbf16>
    "tpu.trace_start"() <{level = 10 : i32, message = "bnm,bmd->bnd"}> : () -> ()
    %cst_34 = arith.constant dense<0.000000e+00> : vector<1x16x8xf32>
    %89 = tpu.matmul %88, %76, %cst_34 {dimension_numbers = #tpu.dot_dimension_numbers<[2], [1], [1], [2], [0, 0, 0, 1, 1, 2], [0], [0]>} : vector<1x16x16xbf16>, vector<1x16x8xbf16>, vector<1x16x8xf32> -> vector<1x16x8xf32>
    "tpu.trace_stop"() : () -> ()
    %c0_35 = arith.constant 0 : index
    %c0_36 = arith.constant 0 : index
    %90 = vector.load %arg6[%c0_35, %c0_36] : memref<16x64xf32, #tpu.memory_space<vmem>>, vector<16x64xf32>
    %91 = vector.shape_cast %89 : vector<1x16x8xf32> to vector<16x8xf32>
    %92 = arith.truncf %91 : vector<16x8xf32> to vector<16x8xbf16>
    %c2 = arith.constant 2 : index
    %c0_37 = arith.constant 0 : index
    %c0_38 = arith.constant 0 : index
    %93 = vector.load %arg3[%c2, %c0_37, %c0_38] : memref<8x8x64xbf16, #tpu.memory_space<vmem>>, vector<1x8x64xbf16>
    %94 = vector.shape_cast %93 : vector<1x8x64xbf16> to vector<8x64xbf16>
    %cst_39 = arith.constant dense<0.000000e+00> : vector<16x64xf32>
    %95 = tpu.matmul %92, %94, %cst_39 {dimension_numbers = #tpu.dot_dimension_numbers<[1], [0], [0], [1], [0, 0, 1, 1], [], []>} : vector<16x8xbf16>, vector<8x64xbf16>, vector<16x64xf32> -> vector<16x64xf32>
    %96 = arith.addf %90, %95 : vector<16x64xf32>
    %c0_40 = arith.constant 0 : index
    %c0_41 = arith.constant 0 : index
    %97 = vector.load %arg6[%c0_40, %c0_41] : memref<16x64xf32, #tpu.memory_space<vmem>>, vector<16x64xf32>
    tpu.vector_store %arg6[%c0_40, %c0_41], %96 {strides = array<i32>} : memref<16x64xf32, #tpu.memory_space<vmem>>, vector<16x64xf32>,
    %98 = vector.extract_strided_slice %3 {offsets = [0, 24], sizes = [16, 8], strides = [1, 1]} : vector<16x192xf32> to vector<16x8xf32>
    %99 = vector.shape_cast %98 : vector<16x8xf32> to vector<1x16x8xf32>
    %100 = arith.truncf %99 : vector<1x16x8xf32> to vector<1x16x8xbf16>
    %101 = vector.extract_strided_slice %3 {offsets = [0, 88], sizes = [16, 8], strides = [1, 1]} : vector<16x192xf32> to vector<16x8xf32>
    %102 = vector.shape_cast %101 : vector<16x8xf32> to vector<1x16x8xf32>
    %103 = arith.truncf %102 : vector<1x16x8xf32> to vector<1x16x8xbf16>
    %104 = vector.extract_strided_slice %3 {offsets = [0, 152], sizes = [16, 8], strides = [1, 1]} : vector<16x192xf32> to vector<16x8xf32>
    %105 = vector.shape_cast %104 : vector<16x8xf32> to vector<1x16x8xf32>
    %106 = arith.truncf %105 : vector<1x16x8xf32> to vector<1x16x8xbf16>
    "tpu.trace_start"() <{level = 10 : i32, message = "bnd,bmd->bnm"}> : () -> ()
    %cst_42 = arith.constant dense<0.000000e+00> : vector<1x16x16xf32>
    %107 = tpu.matmul %100, %103, %cst_42 {dimension_numbers = #tpu.dot_dimension_numbers<[2], [2], [1], [1], [0, 0, 0, 1, 1, 1], [0], [0]>} : vector<1x16x8xbf16>, vector<1x16x8xbf16>, vector<1x16x16xf32> -> vector<1x16x16xf32>
    "tpu.trace_stop"() : () -> ()
    %cst_43 = arith.constant dense<0xFF800000> : vector<1x16xf32>
    %108 = vector.multi_reduction <maximumf>, %107, %cst_43 [2] : vector<1x16x16xf32> to vector<1x16xf32>
    %109 = vector.shape_cast %108 : vector<1x16xf32> to vector<1x16x1xf32>
    %110 = vector.broadcast %109 : vector<1x16x1xf32> to vector<1x16x16xf32>
    %111 = arith.subf %107, %110 : vector<1x16x16xf32>
    %112 = math.exp %111 : vector<1x16x16xf32>
    %cst_44 = arith.constant dense<0.000000e+00> : vector<1x16xf32>
    %113 = vector.multi_reduction <add>, %112, %cst_44 [2] : vector<1x16x16xf32> to vector<1x16xf32>
    %114 = vector.shape_cast %113 : vector<1x16xf32> to vector<1x16x1xf32>
    %115 = tpu.reciprocal %114 {approx = true} : vector<1x16x1xf32> -> vector<1x16x1xf32>
    %116 = vector.broadcast %115 : vector<1x16x1xf32> to vector<1x16x16xf32>
    %117 = arith.mulf %112, %116 : vector<1x16x16xf32>
    %118 = arith.truncf %117 : vector<1x16x16xf32> to vector<1x16x16xbf16>
    "tpu.trace_start"() <{level = 10 : i32, message = "bnm,bmd->bnd"}> : () -> ()
    %cst_45 = arith.constant dense<0.000000e+00> : vector<1x16x8xf32>
    %119 = tpu.matmul %118, %106, %cst_45 {dimension_numbers = #tpu.dot_dimension_numbers<[2], [1], [1], [2], [0, 0, 0, 1, 1, 2], [0], [0]>} : vector<1x16x16xbf16>, vector<1x16x8xbf16>, vector<1x16x8xf32> -> vector<1x16x8xf32>
    "tpu.trace_stop"() : () -> ()
    %c0_46 = arith.constant 0 : index
    %c0_47 = arith.constant 0 : index
    %120 = vector.load %arg6[%c0_46, %c0_47] : memref<16x64xf32, #tpu.memory_space<vmem>>, vector<16x64xf32>
    %121 = vector.shape_cast %119 : vector<1x16x8xf32> to vector<16x8xf32>
    %122 = arith.truncf %121 : vector<16x8xf32> to vector<16x8xbf16>
    %c3 = arith.constant 3 : index
    %c0_48 = arith.constant 0 : index
    %c0_49 = arith.constant 0 : index
    %123 = vector.load %arg3[%c3, %c0_48, %c0_49] : memref<8x8x64xbf16, #tpu.memory_space<vmem>>, vector<1x8x64xbf16>
    %124 = vector.shape_cast %123 : vector<1x8x64xbf16> to vector<8x64xbf16>
    %cst_50 = arith.constant dense<0.000000e+00> : vector<16x64xf32>
    %125 = tpu.matmul %122, %124, %cst_50 {dimension_numbers = #tpu.dot_dimension_numbers<[1], [0], [0], [1], [0, 0, 1, 1], [], []>} : vector<16x8xbf16>, vector<8x64xbf16>, vector<16x64xf32> -> vector<16x64xf32>
    %126 = arith.addf %120, %125 : vector<16x64xf32>
    %c0_51 = arith.constant 0 : index
    %c0_52 = arith.constant 0 : index
    %127 = vector.load %arg6[%c0_51, %c0_52] : memref<16x64xf32, #tpu.memory_space<vmem>>, vector<16x64xf32>
    tpu.vector_store %arg6[%c0_51, %c0_52], %126 {strides = array<i32>} : memref<16x64xf32, #tpu.memory_space<vmem>>, vector<16x64xf32>,
    %128 = vector.extract_strided_slice %3 {offsets = [0, 32], sizes = [16, 8], strides = [1, 1]} : vector<16x192xf32> to vector<16x8xf32>
    %129 = vector.shape_cast %128 : vector<16x8xf32> to vector<1x16x8xf32>
    %130 = arith.truncf %129 : vector<1x16x8xf32> to vector<1x16x8xbf16>
    %131 = vector.extract_strided_slice %3 {offsets = [0, 96], sizes = [16, 8], strides = [1, 1]} : vector<16x192xf32> to vector<16x8xf32>
    %132 = vector.shape_cast %131 : vector<16x8xf32> to vector<1x16x8xf32>
    %133 = arith.truncf %132 : vector<1x16x8xf32> to vector<1x16x8xbf16>
    %134 = vector.extract_strided_slice %3 {offsets = [0, 160], sizes = [16, 8], strides = [1, 1]} : vector<16x192xf32> to vector<16x8xf32>
    %135 = vector.shape_cast %134 : vector<16x8xf32> to vector<1x16x8xf32>
    %136 = arith.truncf %135 : vector<1x16x8xf32> to vector<1x16x8xbf16>
    "tpu.trace_start"() <{level = 10 : i32, message = "bnd,bmd->bnm"}> : () -> ()
    %cst_53 = arith.constant dense<0.000000e+00> : vector<1x16x16xf32>
    %137 = tpu.matmul %130, %133, %cst_53 {dimension_numbers = #tpu.dot_dimension_numbers<[2], [2], [1], [1], [0, 0, 0, 1, 1, 1], [0], [0]>} : vector<1x16x8xbf16>, vector<1x16x8xbf16>, vector<1x16x16xf32> -> vector<1x16x16xf32>
    "tpu.trace_stop"() : () -> ()
    %cst_54 = arith.constant dense<0xFF800000> : vector<1x16xf32>
    %138 = vector.multi_reduction <maximumf>, %137, %cst_54 [2] : vector<1x16x16xf32> to vector<1x16xf32>
    %139 = vector.shape_cast %138 : vector<1x16xf32> to vector<1x16x1xf32>
    %140 = vector.broadcast %139 : vector<1x16x1xf32> to vector<1x16x16xf32>
    %141 = arith.subf %137, %140 : vector<1x16x16xf32>
    %142 = math.exp %141 : vector<1x16x16xf32>
    %cst_55 = arith.constant dense<0.000000e+00> : vector<1x16xf32>
    %143 = vector.multi_reduction <add>, %142, %cst_55 [2] : vector<1x16x16xf32> to vector<1x16xf32>
    %144 = vector.shape_cast %143 : vector<1x16xf32> to vector<1x16x1xf32>
    %145 = tpu.reciprocal %144 {approx = true} : vector<1x16x1xf32> -> vector<1x16x1xf32>
    %146 = vector.broadcast %145 : vector<1x16x1xf32> to vector<1x16x16xf32>
    %147 = arith.mulf %142, %146 : vector<1x16x16xf32>
    %148 = arith.truncf %147 : vector<1x16x16xf32> to vector<1x16x16xbf16>
    "tpu.trace_start"() <{level = 10 : i32, message = "bnm,bmd->bnd"}> : () -> ()
    %cst_56 = arith.constant dense<0.000000e+00> : vector<1x16x8xf32>
    %149 = tpu.matmul %148, %136, %cst_56 {dimension_numbers = #tpu.dot_dimension_numbers<[2], [1], [1], [2], [0, 0, 0, 1, 1, 2], [0], [0]>} : vector<1x16x16xbf16>, vector<1x16x8xbf16>, vector<1x16x8xf32> -> vector<1x16x8xf32>
    "tpu.trace_stop"() : () -> ()
    %c0_57 = arith.constant 0 : index
    %c0_58 = arith.constant 0 : index
    %150 = vector.load %arg6[%c0_57, %c0_58] : memref<16x64xf32, #tpu.memory_space<vmem>>, vector<16x64xf32>
    %151 = vector.shape_cast %149 : vector<1x16x8xf32> to vector<16x8xf32>
    %152 = arith.truncf %151 : vector<16x8xf32> to vector<16x8xbf16>
    %c4 = arith.constant 4 : index
    %c0_59 = arith.constant 0 : index
    %c0_60 = arith.constant 0 : index
    %153 = vector.load %arg3[%c4, %c0_59, %c0_60] : memref<8x8x64xbf16, #tpu.memory_space<vmem>>, vector<1x8x64xbf16>
    %154 = vector.shape_cast %153 : vector<1x8x64xbf16> to vector<8x64xbf16>
    %cst_61 = arith.constant dense<0.000000e+00> : vector<16x64xf32>
    %155 = tpu.matmul %152, %154, %cst_61 {dimension_numbers = #tpu.dot_dimension_numbers<[1], [0], [0], [1], [0, 0, 1, 1], [], []>} : vector<16x8xbf16>, vector<8x64xbf16>, vector<16x64xf32> -> vector<16x64xf32>
    %156 = arith.addf %150, %155 : vector<16x64xf32>
    %c0_62 = arith.constant 0 : index
    %c0_63 = arith.constant 0 : index
    %157 = vector.load %arg6[%c0_62, %c0_63] : memref<16x64xf32, #tpu.memory_space<vmem>>, vector<16x64xf32>
    tpu.vector_store %arg6[%c0_62, %c0_63], %156 {strides = array<i32>} : memref<16x64xf32, #tpu.memory_space<vmem>>, vector<16x64xf32>,
    %158 = vector.extract_strided_slice %3 {offsets = [0, 40], sizes = [16, 8], strides = [1, 1]} : vector<16x192xf32> to vector<16x8xf32>
    %159 = vector.shape_cast %158 : vector<16x8xf32> to vector<1x16x8xf32>
    %160 = arith.truncf %159 : vector<1x16x8xf32> to vector<1x16x8xbf16>
    %161 = vector.extract_strided_slice %3 {offsets = [0, 104], sizes = [16, 8], strides = [1, 1]} : vector<16x192xf32> to vector<16x8xf32>
    %162 = vector.shape_cast %161 : vector<16x8xf32> to vector<1x16x8xf32>
    %163 = arith.truncf %162 : vector<1x16x8xf32> to vector<1x16x8xbf16>
    %164 = vector.extract_strided_slice %3 {offsets = [0, 168], sizes = [16, 8], strides = [1, 1]} : vector<16x192xf32> to vector<16x8xf32>
    %165 = vector.shape_cast %164 : vector<16x8xf32> to vector<1x16x8xf32>
    %166 = arith.truncf %165 : vector<1x16x8xf32> to vector<1x16x8xbf16>
    "tpu.trace_start"() <{level = 10 : i32, message = "bnd,bmd->bnm"}> : () -> ()
    %cst_64 = arith.constant dense<0.000000e+00> : vector<1x16x16xf32>
    %167 = tpu.matmul %160, %163, %cst_64 {dimension_numbers = #tpu.dot_dimension_numbers<[2], [2], [1], [1], [0, 0, 0, 1, 1, 1], [0], [0]>} : vector<1x16x8xbf16>, vector<1x16x8xbf16>, vector<1x16x16xf32> -> vector<1x16x16xf32>
    "tpu.trace_stop"() : () -> ()
    %cst_65 = arith.constant dense<0xFF800000> : vector<1x16xf32>
    %168 = vector.multi_reduction <maximumf>, %167, %cst_65 [2] : vector<1x16x16xf32> to vector<1x16xf32>
    %169 = vector.shape_cast %168 : vector<1x16xf32> to vector<1x16x1xf32>
    %170 = vector.broadcast %169 : vector<1x16x1xf32> to vector<1x16x16xf32>
    %171 = arith.subf %167, %170 : vector<1x16x16xf32>
    %172 = math.exp %171 : vector<1x16x16xf32>
    %cst_66 = arith.constant dense<0.000000e+00> : vector<1x16xf32>
    %173 = vector.multi_reduction <add>, %172, %cst_66 [2] : vector<1x16x16xf32> to vector<1x16xf32>
    %174 = vector.shape_cast %173 : vector<1x16xf32> to vector<1x16x1xf32>
    %175 = tpu.reciprocal %174 {approx = true} : vector<1x16x1xf32> -> vector<1x16x1xf32>
    %176 = vector.broadcast %175 : vector<1x16x1xf32> to vector<1x16x16xf32>
    %177 = arith.mulf %172, %176 : vector<1x16x16xf32>
    %178 = arith.truncf %177 : vector<1x16x16xf32> to vector<1x16x16xbf16>
    "tpu.trace_start"() <{level = 10 : i32, message = "bnm,bmd->bnd"}> : () -> ()
    %cst_67 = arith.constant dense<0.000000e+00> : vector<1x16x8xf32>
    %179 = tpu.matmul %178, %166, %cst_67 {dimension_numbers = #tpu.dot_dimension_numbers<[2], [1], [1], [2], [0, 0, 0, 1, 1, 2], [0], [0]>} : vector<1x16x16xbf16>, vector<1x16x8xbf16>, vector<1x16x8xf32> -> vector<1x16x8xf32>
    "tpu.trace_stop"() : () -> ()
    %c0_68 = arith.constant 0 : index
    %c0_69 = arith.constant 0 : index
    %180 = vector.load %arg6[%c0_68, %c0_69] : memref<16x64xf32, #tpu.memory_space<vmem>>, vector<16x64xf32>
    %181 = vector.shape_cast %179 : vector<1x16x8xf32> to vector<16x8xf32>
    %182 = arith.truncf %181 : vector<16x8xf32> to vector<16x8xbf16>
    %c5 = arith.constant 5 : index
    %c0_70 = arith.constant 0 : index
    %c0_71 = arith.constant 0 : index
    %183 = vector.load %arg3[%c5, %c0_70, %c0_71] : memref<8x8x64xbf16, #tpu.memory_space<vmem>>, vector<1x8x64xbf16>
    %184 = vector.shape_cast %183 : vector<1x8x64xbf16> to vector<8x64xbf16>
    %cst_72 = arith.constant dense<0.000000e+00> : vector<16x64xf32>
    %185 = tpu.matmul %182, %184, %cst_72 {dimension_numbers = #tpu.dot_dimension_numbers<[1], [0], [0], [1], [0, 0, 1, 1], [], []>} : vector<16x8xbf16>, vector<8x64xbf16>, vector<16x64xf32> -> vector<16x64xf32>
    %186 = arith.addf %180, %185 : vector<16x64xf32>
    %c0_73 = arith.constant 0 : index
    %c0_74 = arith.constant 0 : index
    %187 = vector.load %arg6[%c0_73, %c0_74] : memref<16x64xf32, #tpu.memory_space<vmem>>, vector<16x64xf32>
    tpu.vector_store %arg6[%c0_73, %c0_74], %186 {strides = array<i32>} : memref<16x64xf32, #tpu.memory_space<vmem>>, vector<16x64xf32>,
    %188 = vector.extract_strided_slice %3 {offsets = [0, 48], sizes = [16, 8], strides = [1, 1]} : vector<16x192xf32> to vector<16x8xf32>
    %189 = vector.shape_cast %188 : vector<16x8xf32> to vector<1x16x8xf32>
    %190 = arith.truncf %189 : vector<1x16x8xf32> to vector<1x16x8xbf16>
    %191 = vector.extract_strided_slice %3 {offsets = [0, 112], sizes = [16, 8], strides = [1, 1]} : vector<16x192xf32> to vector<16x8xf32>
    %192 = vector.shape_cast %191 : vector<16x8xf32> to vector<1x16x8xf32>
    %193 = arith.truncf %192 : vector<1x16x8xf32> to vector<1x16x8xbf16>
    %194 = vector.extract_strided_slice %3 {offsets = [0, 176], sizes = [16, 8], strides = [1, 1]} : vector<16x192xf32> to vector<16x8xf32>
    %195 = vector.shape_cast %194 : vector<16x8xf32> to vector<1x16x8xf32>
    %196 = arith.truncf %195 : vector<1x16x8xf32> to vector<1x16x8xbf16>
    "tpu.trace_start"() <{level = 10 : i32, message = "bnd,bmd->bnm"}> : () -> ()
    %cst_75 = arith.constant dense<0.000000e+00> : vector<1x16x16xf32>
    %197 = tpu.matmul %190, %193, %cst_75 {dimension_numbers = #tpu.dot_dimension_numbers<[2], [2], [1], [1], [0, 0, 0, 1, 1, 1], [0], [0]>} : vector<1x16x8xbf16>, vector<1x16x8xbf16>, vector<1x16x16xf32> -> vector<1x16x16xf32>
    "tpu.trace_stop"() : () -> ()
    %cst_76 = arith.constant dense<0xFF800000> : vector<1x16xf32>
    %198 = vector.multi_reduction <maximumf>, %197, %cst_76 [2] : vector<1x16x16xf32> to vector<1x16xf32>
    %199 = vector.shape_cast %198 : vector<1x16xf32> to vector<1x16x1xf32>
    %200 = vector.broadcast %199 : vector<1x16x1xf32> to vector<1x16x16xf32>
    %201 = arith.subf %197, %200 : vector<1x16x16xf32>
    %202 = math.exp %201 : vector<1x16x16xf32>
    %cst_77 = arith.constant dense<0.000000e+00> : vector<1x16xf32>
    %203 = vector.multi_reduction <add>, %202, %cst_77 [2] : vector<1x16x16xf32> to vector<1x16xf32>
    %204 = vector.shape_cast %203 : vector<1x16xf32> to vector<1x16x1xf32>
    %205 = tpu.reciprocal %204 {approx = true} : vector<1x16x1xf32> -> vector<1x16x1xf32>
    %206 = vector.broadcast %205 : vector<1x16x1xf32> to vector<1x16x16xf32>
    %207 = arith.mulf %202, %206 : vector<1x16x16xf32>
    %208 = arith.truncf %207 : vector<1x16x16xf32> to vector<1x16x16xbf16>
    "tpu.trace_start"() <{level = 10 : i32, message = "bnm,bmd->bnd"}> : () -> ()
    %cst_78 = arith.constant dense<0.000000e+00> : vector<1x16x8xf32>
    %209 = tpu.matmul %208, %196, %cst_78 {dimension_numbers = #tpu.dot_dimension_numbers<[2], [1], [1], [2], [0, 0, 0, 1, 1, 2], [0], [0]>} : vector<1x16x16xbf16>, vector<1x16x8xbf16>, vector<1x16x8xf32> -> vector<1x16x8xf32>
    "tpu.trace_stop"() : () -> ()
    %c0_79 = arith.constant 0 : index
    %c0_80 = arith.constant 0 : index
    %210 = vector.load %arg6[%c0_79, %c0_80] : memref<16x64xf32, #tpu.memory_space<vmem>>, vector<16x64xf32>
    %211 = vector.shape_cast %209 : vector<1x16x8xf32> to vector<16x8xf32>
    %212 = arith.truncf %211 : vector<16x8xf32> to vector<16x8xbf16>
    %c6 = arith.constant 6 : index
    %c0_81 = arith.constant 0 : index
    %c0_82 = arith.constant 0 : index
    %213 = vector.load %arg3[%c6, %c0_81, %c0_82] : memref<8x8x64xbf16, #tpu.memory_space<vmem>>, vector<1x8x64xbf16>
    %214 = vector.shape_cast %213 : vector<1x8x64xbf16> to vector<8x64xbf16>
    %cst_83 = arith.constant dense<0.000000e+00> : vector<16x64xf32>
    %215 = tpu.matmul %212, %214, %cst_83 {dimension_numbers = #tpu.dot_dimension_numbers<[1], [0], [0], [1], [0, 0, 1, 1], [], []>} : vector<16x8xbf16>, vector<8x64xbf16>, vector<16x64xf32> -> vector<16x64xf32>
    %216 = arith.addf %210, %215 : vector<16x64xf32>
    %c0_84 = arith.constant 0 : index
    %c0_85 = arith.constant 0 : index
    %217 = vector.load %arg6[%c0_84, %c0_85] : memref<16x64xf32, #tpu.memory_space<vmem>>, vector<16x64xf32>
    tpu.vector_store %arg6[%c0_84, %c0_85], %216 {strides = array<i32>} : memref<16x64xf32, #tpu.memory_space<vmem>>, vector<16x64xf32>,
    %218 = vector.extract_strided_slice %3 {offsets = [0, 56], sizes = [16, 8], strides = [1, 1]} : vector<16x192xf32> to vector<16x8xf32>
    %219 = vector.shape_cast %218 : vector<16x8xf32> to vector<1x16x8xf32>
    %220 = arith.truncf %219 : vector<1x16x8xf32> to vector<1x16x8xbf16>
    %221 = vector.extract_strided_slice %3 {offsets = [0, 120], sizes = [16, 8], strides = [1, 1]} : vector<16x192xf32> to vector<16x8xf32>
    %222 = vector.shape_cast %221 : vector<16x8xf32> to vector<1x16x8xf32>
    %223 = arith.truncf %222 : vector<1x16x8xf32> to vector<1x16x8xbf16>
    %224 = vector.extract_strided_slice %3 {offsets = [0, 184], sizes = [16, 8], strides = [1, 1]} : vector<16x192xf32> to vector<16x8xf32>
    %225 = vector.shape_cast %224 : vector<16x8xf32> to vector<1x16x8xf32>
    %226 = arith.truncf %225 : vector<1x16x8xf32> to vector<1x16x8xbf16>
    "tpu.trace_start"() <{level = 10 : i32, message = "bnd,bmd->bnm"}> : () -> ()
    %cst_86 = arith.constant dense<0.000000e+00> : vector<1x16x16xf32>
    %227 = tpu.matmul %220, %223, %cst_86 {dimension_numbers = #tpu.dot_dimension_numbers<[2], [2], [1], [1], [0, 0, 0, 1, 1, 1], [0], [0]>} : vector<1x16x8xbf16>, vector<1x16x8xbf16>, vector<1x16x16xf32> -> vector<1x16x16xf32>
    "tpu.trace_stop"() : () -> ()
    %cst_87 = arith.constant dense<0xFF800000> : vector<1x16xf32>
    %228 = vector.multi_reduction <maximumf>, %227, %cst_87 [2] : vector<1x16x16xf32> to vector<1x16xf32>
    %229 = vector.shape_cast %228 : vector<1x16xf32> to vector<1x16x1xf32>
    %230 = vector.broadcast %229 : vector<1x16x1xf32> to vector<1x16x16xf32>
    %231 = arith.subf %227, %230 : vector<1x16x16xf32>
    %232 = math.exp %231 : vector<1x16x16xf32>
    %cst_88 = arith.constant dense<0.000000e+00> : vector<1x16xf32>
    %233 = vector.multi_reduction <add>, %232, %cst_88 [2] : vector<1x16x16xf32> to vector<1x16xf32>
    %234 = vector.shape_cast %233 : vector<1x16xf32> to vector<1x16x1xf32>
    %235 = tpu.reciprocal %234 {approx = true} : vector<1x16x1xf32> -> vector<1x16x1xf32>
    %236 = vector.broadcast %235 : vector<1x16x1xf32> to vector<1x16x16xf32>
    %237 = arith.mulf %232, %236 : vector<1x16x16xf32>
    %238 = arith.truncf %237 : vector<1x16x16xf32> to vector<1x16x16xbf16>
    "tpu.trace_start"() <{level = 10 : i32, message = "bnm,bmd->bnd"}> : () -> ()
    %cst_89 = arith.constant dense<0.000000e+00> : vector<1x16x8xf32>
    %239 = tpu.matmul %238, %226, %cst_89 {dimension_numbers = #tpu.dot_dimension_numbers<[2], [1], [1], [2], [0, 0, 0, 1, 1, 2], [0], [0]>} : vector<1x16x16xbf16>, vector<1x16x8xbf16>, vector<1x16x8xf32> -> vector<1x16x8xf32>
    "tpu.trace_stop"() : () -> ()
    %c0_90 = arith.constant 0 : index
    %c0_91 = arith.constant 0 : index
    %240 = vector.load %arg6[%c0_90, %c0_91] : memref<16x64xf32, #tpu.memory_space<vmem>>, vector<16x64xf32>
    %241 = vector.shape_cast %239 : vector<1x16x8xf32> to vector<16x8xf32>
    %242 = arith.truncf %241 : vector<16x8xf32> to vector<16x8xbf16>
    %c7 = arith.constant 7 : index
    %c0_92 = arith.constant 0 : index
    %c0_93 = arith.constant 0 : index
    %243 = vector.load %arg3[%c7, %c0_92, %c0_93] : memref<8x8x64xbf16, #tpu.memory_space<vmem>>, vector<1x8x64xbf16>
    %244 = vector.shape_cast %243 : vector<1x8x64xbf16> to vector<8x64xbf16>
    %cst_94 = arith.constant dense<0.000000e+00> : vector<16x64xf32>
    %245 = tpu.matmul %242, %244, %cst_94 {dimension_numbers = #tpu.dot_dimension_numbers<[1], [0], [0], [1], [0, 0, 1, 1], [], []>} : vector<16x8xbf16>, vector<8x64xbf16>, vector<16x64xf32> -> vector<16x64xf32>
    %246 = arith.addf %240, %245 : vector<16x64xf32>
    %c0_95 = arith.constant 0 : index
    %c0_96 = arith.constant 0 : index
    %247 = vector.load %arg6[%c0_95, %c0_96] : memref<16x64xf32, #tpu.memory_space<vmem>>, vector<16x64xf32>
    tpu.vector_store %arg6[%c0_95, %c0_96], %246 {strides = array<i32>} : memref<16x64xf32, #tpu.memory_space<vmem>>, vector<16x64xf32>,
    %c0_97 = arith.constant 0 : index
    %c0_98 = arith.constant 0 : index
    %248 = vector.load %arg6[%c0_97, %c0_98] : memref<16x64xf32, #tpu.memory_space<vmem>>, vector<16x64xf32>
    %249 = vector.shape_cast %248 : vector<16x64xf32> to vector<1x16x64xf32>
    %c0_99 = arith.constant 0 : index
    %c0_100 = arith.constant 0 : index
    %c0_101 = arith.constant 0 : index
    %250 = vector.load %arg5[%c0_99, %c0_100, %c0_101] : memref<1x16x64xf32, #tpu.memory_space<vmem>>, vector<1x16x64xf32>
    tpu.vector_store %arg5[%c0_99, %c0_100, %c0_101], %249 {strides = array<i32>} : memref<1x16x64xf32, #tpu.memory_space<vmem>>, vector<1x16x64xf32>,
    return
  }
  func.func @transform_0(%arg0: i32) -> (i32, i32, i32) {
    %c0_i32 = arith.constant 0 : i32
    %c0_i32_0 = arith.constant 0 : i32
    %c0_i32_1 = arith.constant 0 : i32
    return %arg0, %c0_i32, %c0_i32_0 : i32, i32, i32
  }
  func.func @transform_1(%arg0: i32) -> (i32, i32) {
    %c0_i32 = arith.constant 0 : i32
    %c0_i32_0 = arith.constant 0 : i32
    %c0_i32_1 = arith.constant 0 : i32
    return %c0_i32, %c0_i32_0 : i32, i32
  }
  func.func @transform_2(%arg0: i32) -> (i32, i32, i32) {
    %c0_i32 = arith.constant 0 : i32
    %c0_i32_0 = arith.constant 0 : i32
    %c0_i32_1 = arith.constant 0 : i32
    %c0_i32_2 = arith.constant 0 : i32
    return %c0_i32, %c0_i32_0, %c0_i32_1 : i32, i32, i32
  }
  func.func @transform_3(%arg0: i32) -> (i32, i32) {
    %c0_i32 = arith.constant 0 : i32
    %c0_i32_0 = arith.constant 0 : i32
    %c0_i32_1 = arith.constant 0 : i32
    return %c0_i32, %c0_i32_0 : i32, i32
  }
  func.func @transform_4(%arg0: i32) -> (i32, i32, i32) {
    %c0_i32 = arith.constant 0 : i32
    %c0_i32_0 = arith.constant 0 : i32
    %c0_i32_1 = arith.constant 0 : i32
    return %arg0, %c0_i32, %c0_i32_0 : i32, i32, i32
  }
}

module attributes {stable_mosaic.version = 11 : i64} {
  func.func @_fused_attention_kernel(%arg0: i32, %arg1: memref<1x16x64xbf16, #tpu.memory_space<vmem>>, %arg2: memref<64x192xbf16, #tpu.memory_space<vmem>>, %arg3: memref<8x8x64xbf16, #tpu.memory_space<vmem>>, %arg4: memref<1x64xf32, #tpu.memory_space<vmem>>, %arg5: memref<1x16x64xf32, #tpu.memory_space<vmem>>, %arg6: memref<16x64xf32, #tpu.memory_space<vmem>>) attributes {dimension_semantics = [#tpu.dimension_semantics<parallel>], iteration_bounds = array<i64: 2>, scalar_prefetch = 0 : i64, scratch_operands = 1 : i64, tpu.core_type = #tpu.core_type<tc>, window_params = [{transform_indices = @transform_0, window_bounds = array<i64: 1, 16, 64>}, {pipeline_mode = #tpu.pipeline_mode<synchronous>, transform_indices = @transform_1, window_bounds = array<i64: 64, 192>}, {pipeline_mode = #tpu.pipeline_mode<synchronous>, transform_indices = @transform_2, window_bounds = array<i64: 8, 8, 64>}, {pipeline_mode = #tpu.pipeline_mode<synchronous>, transform_indices = @transform_3, window_bounds = array<i64: 1, 64>}, {transform_indices = @transform_4, window_bounds = array<i64: 1, 16, 64>}]} {
    %c0 = arith.constant 0 : index
    %c0_0 = arith.constant 0 : index
    %c0_1 = arith.constant 0 : index
    %0 = vector.load %arg1[%c0, %c0_0, %c0_1] : memref<1x16x64xbf16, #tpu.memory_space<vmem>>, vector<1x16x64xbf16>
    %1 = vector.shape_cast %0 : vector<1x16x64xbf16> to vector<16x64xbf16>
    %c0_2 = arith.constant 0 : index
    %c0_3 = arith.constant 0 : index
    %2 = vector.load %arg2[%c0_2, %c0_3] : memref<64x192xbf16, #tpu.memory_space<vmem>>, vector<64x192xbf16>
    %cst = arith.constant dense<0.000000e+00> : vector<16x192xf32>
    %3 = tpu.matmul %1, %2, %cst {dimension_numbers = #tpu.dot_dimension_numbers<[1], [0], [0], [1], [0, 0, 1, 1], [], []>} : vector<16x64xbf16>, vector<64x192xbf16>, vector<16x192xf32> -> vector<16x192xf32>
    %c0_4 = arith.constant 0 : index
    %c0_5 = arith.constant 0 : index
    %4 = vector.load %arg4[%c0_4, %c0_5] : memref<1x64xf32, #tpu.memory_space<vmem>>, vector<1x64xf32>
    %5 = vector.shape_cast %4 : vector<1x64xf32> to vector<1x64xf32>
    %6 = vector.broadcast %5 : vector<1x64xf32> to vector<16x64xf32>
    %c0_6 = arith.constant 0 : index
    %c0_7 = arith.constant 0 : index
    %7 = vector.load %arg6[%c0_6, %c0_7] : memref<16x64xf32, #tpu.memory_space<vmem>>, vector<16x64xf32>
    tpu.vector_store %arg6[%c0_6, %c0_7], %6 {strides = array<i32>} : memref<16x64xf32, #tpu.memory_space<vmem>>, vector<16x64xf32>,
    %8 = vector.extract_strided_slice %3 {offsets = [0, 0], sizes = [16, 8], strides = [1, 1]} : vector<16x192xf32> to vector<16x8xf32>
    %9 = vector.shape_cast %8 : vector<16x8xf32> to vector<1x16x8xf32>
    %10 = arith.truncf %9 : vector<1x16x8xf32> to vector<1x16x8xbf16>
    %11 = vector.extract_strided_slice %3 {offsets = [0, 64], sizes = [16, 8], strides = [1, 1]} : vector<16x192xf32> to vector<16x8xf32>
    %12 = vector.shape_cast %11 : vector<16x8xf32> to vector<1x16x8xf32>
    %13 = arith.truncf %12 : vector<1x16x8xf32> to vector<1x16x8xbf16>
    %14 = vector.extract_strided_slice %3 {offsets = [0, 128], sizes = [16, 8], strides = [1, 1]} : vector<16x192xf32> to vector<16x8xf32>
    %15 = vector.shape_cast %14 : vector<16x8xf32> to vector<1x16x8xf32>
    %16 = arith.truncf %15 : vector<1x16x8xf32> to vector<1x16x8xbf16>
    "tpu.trace_start"() <{level = 10 : i32, message = "bnd,bmd->bnm"}> : () -> ()
    %cst_8 = arith.constant dense<0.000000e+00> : vector<1x16x16xf32>
    %17 = tpu.matmul %10, %13, %cst_8 {dimension_numbers = #tpu.dot_dimension_numbers<[2], [2], [1], [1], [0, 0, 0, 1, 1, 1], [0], [0]>} : vector<1x16x8xbf16>, vector<1x16x8xbf16>, vector<1x16x16xf32> -> vector<1x16x16xf32>
    "tpu.trace_stop"() : () -> ()
    %cst_9 = arith.constant dense<0xFF800000> : vector<1x16xf32>
    %18 = vector.multi_reduction <maximumf>, %17, %cst_9 [2] : vector<1x16x16xf32> to vector<1x16xf32>
    %19 = vector.shape_cast %18 : vector<1x16xf32> to vector<1x16x1xf32>
    %20 = vector.broadcast %19 : vector<1x16x1xf32> to vector<1x16x16xf32>
    %21 = arith.subf %17, %20 : vector<1x16x16xf32>
    %22 = math.exp %21 : vector<1x16x16xf32>
    %cst_10 = arith.constant dense<0.000000e+00> : vector<1x16xf32>
    %23 = vector.multi_reduction <add>, %22, %cst_10 [2] : vector<1x16x16xf32> to vector<1x16xf32>
    %24 = vector.shape_cast %23 : vector<1x16xf32> to vector<1x16x1xf32>
    %25 = tpu.reciprocal %24 {approx = true} : vector<1x16x1xf32> -> vector<1x16x1xf32>
    %26 = vector.broadcast %25 : vector<1x16x1xf32> to vector<1x16x16xf32>
    %27 = arith.mulf %22, %26 : vector<1x16x16xf32>
    %28 = arith.truncf %27 : vector<1x16x16xf32> to vector<1x16x16xbf16>
    "tpu.trace_start"() <{level = 10 : i32, message = "bnm,bmd->bnd"}> : () -> ()
    %cst_11 = arith.constant dense<0.000000e+00> : vector<1x16x8xf32>
    %29 = tpu.matmul %28, %16, %cst_11 {dimension_numbers = #tpu.dot_dimension_numbers<[2], [1], [1], [2], [0, 0, 0, 1, 1, 2], [0], [0]>} : vector<1x16x16xbf16>, vector<1x16x8xbf16>, vector<1x16x8xf32> -> vector<1x16x8xf32>
    "tpu.trace_stop"() : () -> ()
    %c0_12 = arith.constant 0 : index
    %c0_13 = arith.constant 0 : index
    %30 = vector.load %arg6[%c0_12, %c0_13] : memref<16x64xf32, #tpu.memory_space<vmem>>, vector<16x64xf32>
    %31 = vector.shape_cast %29 : vector<1x16x8xf32> to vector<16x8xf32>
    %32 = arith.truncf %31 : vector<16x8xf32> to vector<16x8xbf16>
    %c0_14 = arith.constant 0 : index
    %c0_15 = arith.constant 0 : index
    %c0_16 = arith.constant 0 : index
    %33 = vector.load %arg3[%c0_14, %c0_15, %c0_16] : memref<8x8x64xbf16, #tpu.memory_space<vmem>>, vector<1x8x64xbf16>
    %34 = vector.shape_cast %33 : vector<1x8x64xbf16> to vector<8x64xbf16>
    %cst_17 = arith.constant dense<0.000000e+00> : vector<16x64xf32>
    %35 = tpu.matmul %32, %34, %cst_17 {dimension_numbers = #tpu.dot_dimension_numbers<[1], [0], [0], [1], [0, 0, 1, 1], [], []>} : vector<16x8xbf16>, vector<8x64xbf16>, vector<16x64xf32> -> vector<16x64xf32>
    %36 = arith.addf %30, %35 : vector<16x64xf32>
    %c0_18 = arith.constant 0 : index
    %c0_19 = arith.constant 0 : index
    %37 = vector.load %arg6[%c0_18, %c0_19] : memref<16x64xf32, #tpu.memory_space<vmem>>, vector<16x64xf32>
    tpu.vector_store %arg6[%c0_18, %c0_19], %36 {strides = array<i32>} : memref<16x64xf32, #tpu.memory_space<vmem>>, vector<16x64xf32>,
    %38 = vector.extract_strided_slice %3 {offsets = [0, 8], sizes = [16, 8], strides = [1, 1]} : vector<16x192xf32> to vector<16x8xf32>
    %39 = vector.shape_cast %38 : vector<16x8xf32> to vector<1x16x8xf32>
    %40 = arith.truncf %39 : vector<1x16x8xf32> to vector<1x16x8xbf16>
    %41 = vector.extract_strided_slice %3 {offsets = [0, 72], sizes = [16, 8], strides = [1, 1]} : vector<16x192xf32> to vector<16x8xf32>
    %42 = vector.shape_cast %41 : vector<16x8xf32> to vector<1x16x8xf32>
    %43 = arith.truncf %42 : vector<1x16x8xf32> to vector<1x16x8xbf16>
    %44 = vector.extract_strided_slice %3 {offsets = [0, 136], sizes = [16, 8], strides = [1, 1]} : vector<16x192xf32> to vector<16x8xf32>
    %45 = vector.shape_cast %44 : vector<16x8xf32> to vector<1x16x8xf32>
    %46 = arith.truncf %45 : vector<1x16x8xf32> to vector<1x16x8xbf16>
    "tpu.trace_start"() <{level = 10 : i32, message = "bnd,bmd->bnm"}> : () -> ()
    %cst_20 = arith.constant dense<0.000000e+00> : vector<1x16x16xf32>
    %47 = tpu.matmul %40, %43, %cst_20 {dimension_numbers = #tpu.dot_dimension_numbers<[2], [2], [1], [1], [0, 0, 0, 1, 1, 1], [0], [0]>} : vector<1x16x8xbf16>, vector<1x16x8xbf16>, vector<1x16x16xf32> -> vector<1x16x16xf32>
    "tpu.trace_stop"() : () -> ()
    %cst_21 = arith.constant dense<0xFF800000> : vector<1x16xf32>
    %48 = vector.multi_reduction <maximumf>, %47, %cst_21 [2] : vector<1x16x16xf32> to vector<1x16xf32>
    %49 = vector.shape_cast %48 : vector<1x16xf32> to vector<1x16x1xf32>
    %50 = vector.broadcast %49 : vector<1x16x1xf32> to vector<1x16x16xf32>
    %51 = arith.subf %47, %50 : vector<1x16x16xf32>
    %52 = math.exp %51 : vector<1x16x16xf32>
    %cst_22 = arith.constant dense<0.000000e+00> : vector<1x16xf32>
    %53 = vector.multi_reduction <add>, %52, %cst_22 [2] : vector<1x16x16xf32> to vector<1x16xf32>
    %54 = vector.shape_cast %53 : vector<1x16xf32> to vector<1x16x1xf32>
    %55 = tpu.reciprocal %54 {approx = true} : vector<1x16x1xf32> -> vector<1x16x1xf32>
    %56 = vector.broadcast %55 : vector<1x16x1xf32> to vector<1x16x16xf32>
    %57 = arith.mulf %52, %56 : vector<1x16x16xf32>
    %58 = arith.truncf %57 : vector<1x16x16xf32> to vector<1x16x16xbf16>
    "tpu.trace_start"() <{level = 10 : i32, message = "bnm,bmd->bnd"}> : () -> ()
    %cst_23 = arith.constant dense<0.000000e+00> : vector<1x16x8xf32>
    %59 = tpu.matmul %58, %46, %cst_23 {dimension_numbers = #tpu.dot_dimension_numbers<[2], [1], [1], [2], [0, 0, 0, 1, 1, 2], [0], [0]>} : vector<1x16x16xbf16>, vector<1x16x8xbf16>, vector<1x16x8xf32> -> vector<1x16x8xf32>
    "tpu.trace_stop"() : () -> ()
    %c0_24 = arith.constant 0 : index
    %c0_25 = arith.constant 0 : index
    %60 = vector.load %arg6[%c0_24, %c0_25] : memref<16x64xf32, #tpu.memory_space<vmem>>, vector<16x64xf32>
    %61 = vector.shape_cast %59 : vector<1x16x8xf32> to vector<16x8xf32>
    %62 = arith.truncf %61 : vector<16x8xf32> to vector<16x8xbf16>
    %c1 = arith.constant 1 : index
    %c0_26 = arith.constant 0 : index
    %c0_27 = arith.constant 0 : index
    %63 = vector.load %arg3[%c1, %c0_26, %c0_27] : memref<8x8x64xbf16, #tpu.memory_space<vmem>>, vector<1x8x64xbf16>
    %64 = vector.shape_cast %63 : vector<1x8x64xbf16> to vector<8x64xbf16>
    %cst_28 = arith.constant dense<0.000000e+00> : vector<16x64xf32>
    %65 = tpu.matmul %62, %64, %cst_28 {dimension_numbers = #tpu.dot_dimension_numbers<[1], [0], [0], [1], [0, 0, 1, 1], [], []>} : vector<16x8xbf16>, vector<8x64xbf16>, vector<16x64xf32> -> vector<16x64xf32>
    %66 = arith.addf %60, %65 : vector<16x64xf32>
    %c0_29 = arith.constant 0 : index
    %c0_30 = arith.constant 0 : index
    %67 = vector.load %arg6[%c0_29, %c0_30] : memref<16x64xf32, #tpu.memory_space<vmem>>, vector<16x64xf32>
    tpu.vector_store %arg6[%c0_29, %c0_30], %66 {strides = array<i32>} : memref<16x64xf32, #tpu.memory_space<vmem>>, vector<16x64xf32>,
    %68 = vector.extract_strided_slice %3 {offsets = [0, 16], sizes = [16, 8], strides = [1, 1]} : vector<16x192xf32> to vector<16x8xf32>
    %69 = vector.shape_cast %68 : vector<16x8xf32> to vector<1x16x8xf32>
    %70 = arith.truncf %69 : vector<1x16x8xf32> to vector<1x16x8xbf16>
    %71 = vector.extract_strided_slice %3 {offsets = [0, 80], sizes = [16, 8], strides = [1, 1]} : vector<16x192xf32> to vector<16x8xf32>
    %72 = vector.shape_cast %71 : vector<16x8xf32> to vector<1x16x8xf32>
    %73 = arith.truncf %72 : vector<1x16x8xf32> to vector<1x16x8xbf16>
    %74 = vector.extract_strided_slice %3 {offsets = [0, 144], sizes = [16, 8], strides = [1, 1]} : vector<16x192xf32> to vector<16x8xf32>
    %75 = vector.shape_cast %74 : vector<16x8xf32> to vector<1x16x8xf32>
    %76 = arith.truncf %75 : vector<1x16x8xf32> to vector<1x16x8xbf16>
    "tpu.trace_start"() <{level = 10 : i32, message = "bnd,bmd->bnm"}> : () -> ()
    %cst_31 = arith.constant dense<0.000000e+00> : vector<1x16x16xf32>
    %77 = tpu.matmul %70, %73, %cst_31 {dimension_numbers = #tpu.dot_dimension_numbers<[2], [2], [1], [1], [0, 0, 0, 1, 1, 1], [0], [0]>} : vector<1x16x8xbf16>, vector<1x16x8xbf16>, vector<1x16x16xf32> -> vector<1x16x16xf32>
    "tpu.trace_stop"() : () -> ()
    %cst_32 = arith.constant dense<0xFF800000> : vector<1x16xf32>
    %78 = vector.multi_reduction <maximumf>, %77, %cst_32 [2] : vector<1x16x16xf32> to vector<1x16xf32>
    %79 = vector.shape_cast %78 : vector<1x16xf32> to vector<1x16x1xf32>
    %80 = vector.broadcast %79 : vector<1x16x1xf32> to vector<1x16x16xf32>
    %81 = arith.subf %77, %80 : vector<1x16x16xf32>
    %82 = math.exp %81 : vector<1x16x16xf32>
    %cst_33 = arith.constant dense<0.000000e+00> : vector<1x16xf32>
    %83 = vector.multi_reduction <add>, %82, %cst_33 [2] : vector<1x16x16xf32> to vector<1x16xf32>
    %84 = vector.shape_cast %83 : vector<1x16xf32> to vector<1x16x1xf32>
    %85 = tpu.reciprocal %84 {approx = true} : vector<1x16x1xf32> -> vector<1x16x1xf32>
    %86 = vector.broadcast %85 : vector<1x16x1xf32> to vector<1x16x16xf32>
    %87 = arith.mulf %82, %86 : vector<1x16x16xf32>
    %88 = arith.truncf %87 : vector<1x16x16xf32> to vector<1x16x16xbf16>
    "tpu.trace_start"() <{level = 10 : i32, message = "bnm,bmd->bnd"}> : () -> ()
    %cst_34 = arith.constant dense<0.000000e+00> : vector<1x16x8xf32>
    %89 = tpu.matmul %88, %76, %cst_34 {dimension_numbers = #tpu.dot_dimension_numbers<[2], [1], [1], [2], [0, 0, 0, 1, 1, 2], [0], [0]>} : vector<1x16x16xbf16>, vector<1x16x8xbf16>, vector<1x16x8xf32> -> vector<1x16x8xf32>
    "tpu.trace_stop"() : () -> ()
    %c0_35 = arith.constant 0 : index
    %c0_36 = arith.constant 0 : index
    %90 = vector.load %arg6[%c0_35, %c0_36] : memref<16x64xf32, #tpu.memory_space<vmem>>, vector<16x64xf32>
    %91 = vector.shape_cast %89 : vector<1x16x8xf32> to vector<16x8xf32>
    %92 = arith.truncf %91 : vector<16x8xf32> to vector<16x8xbf16>
    %c2 = arith.constant 2 : index
    %c0_37 = arith.constant 0 : index
    %c0_38 = arith.constant 0 : index
    %93 = vector.load %arg3[%c2, %c0_37, %c0_38] : memref<8x8x64xbf16, #tpu.memory_space<vmem>>, vector<1x8x64xbf16>
    %94 = vector.shape_cast %93 : vector<1x8x64xbf16> to vector<8x64xbf16>
    %cst_39 = arith.constant dense<0.000000e+00> : vector<16x64xf32>
    %95 = tpu.matmul %92, %94, %cst_39 {dimension_numbers = #tpu.dot_dimension_numbers<[1], [0], [0], [1], [0, 0, 1, 1], [], []>} : vector<16x8xbf16>, vector<8x64xbf16>, vector<16x64xf32> -> vector<16x64xf32>
    %96 = arith.addf %90, %95 : vector<16x64xf32>
    %c0_40 = arith.constant 0 : index
    %c0_41 = arith.constant 0 : index
    %97 = vector.load %arg6[%c0_40, %c0_41] : memref<16x64xf32, #tpu.memory_space<vmem>>, vector<16x64xf32>
    tpu.vector_store %arg6[%c0_40, %c0_41], %96 {strides = array<i32>} : memref<16x64xf32, #tpu.memory_space<vmem>>, vector<16x64xf32>,
    %98 = vector.extract_strided_slice %3 {offsets = [0, 24], sizes = [16, 8], strides = [1, 1]} : vector<16x192xf32> to vector<16x8xf32>
    %99 = vector.shape_cast %98 : vector<16x8xf32> to vector<1x16x8xf32>
    %100 = arith.truncf %99 : vector<1x16x8xf32> to vector<1x16x8xbf16>
    %101 = vector.extract_strided_slice %3 {offsets = [0, 88], sizes = [16, 8], strides = [1, 1]} : vector<16x192xf32> to vector<16x8xf32>
    %102 = vector.shape_cast %101 : vector<16x8xf32> to vector<1x16x8xf32>
    %103 = arith.truncf %102 : vector<1x16x8xf32> to vector<1x16x8xbf16>
    %104 = vector.extract_strided_slice %3 {offsets = [0, 152], sizes = [16, 8], strides = [1, 1]} : vector<16x192xf32> to vector<16x8xf32>
    %105 = vector.shape_cast %104 : vector<16x8xf32> to vector<1x16x8xf32>
    %106 = arith.truncf %105 : vector<1x16x8xf32> to vector<1x16x8xbf16>
    "tpu.trace_start"() <{level = 10 : i32, message = "bnd,bmd->bnm"}> : () -> ()
    %cst_42 = arith.constant dense<0.000000e+00> : vector<1x16x16xf32>
    %107 = tpu.matmul %100, %103, %cst_42 {dimension_numbers = #tpu.dot_dimension_numbers<[2], [2], [1], [1], [0, 0, 0, 1, 1, 1], [0], [0]>} : vector<1x16x8xbf16>, vector<1x16x8xbf16>, vector<1x16x16xf32> -> vector<1x16x16xf32>
    "tpu.trace_stop"() : () -> ()
    %cst_43 = arith.constant dense<0xFF800000> : vector<1x16xf32>
    %108 = vector.multi_reduction <maximumf>, %107, %cst_43 [2] : vector<1x16x16xf32> to vector<1x16xf32>
    %109 = vector.shape_cast %108 : vector<1x16xf32> to vector<1x16x1xf32>
    %110 = vector.broadcast %109 : vector<1x16x1xf32> to vector<1x16x16xf32>
    %111 = arith.subf %107, %110 : vector<1x16x16xf32>
    %112 = math.exp %111 : vector<1x16x16xf32>
    %cst_44 = arith.constant dense<0.000000e+00> : vector<1x16xf32>
    %113 = vector.multi_reduction <add>, %112, %cst_44 [2] : vector<1x16x16xf32> to vector<1x16xf32>
    %114 = vector.shape_cast %113 : vector<1x16xf32> to vector<1x16x1xf32>
    %115 = tpu.reciprocal %114 {approx = true} : vector<1x16x1xf32> -> vector<1x16x1xf32>
    %116 = vector.broadcast %115 : vector<1x16x1xf32> to vector<1x16x16xf32>
    %117 = arith.mulf %112, %116 : vector<1x16x16xf32>
    %118 = arith.truncf %117 : vector<1x16x16xf32> to vector<1x16x16xbf16>
    "tpu.trace_start"() <{level = 10 : i32, message = "bnm,bmd->bnd"}> : () -> ()
    %cst_45 = arith.constant dense<0.000000e+00> : vector<1x16x8xf32>
    %119 = tpu.matmul %118, %106, %cst_45 {dimension_numbers = #tpu.dot_dimension_numbers<[2], [1], [1], [2], [0, 0, 0, 1, 1, 2], [0], [0]>} : vector<1x16x16xbf16>, vector<1x16x8xbf16>, vector<1x16x8xf32> -> vector<1x16x8xf32>
    "tpu.trace_stop"() : () -> ()
    %c0_46 = arith.constant 0 : index
    %c0_47 = arith.constant 0 : index
    %120 = vector.load %arg6[%c0_46, %c0_47] : memref<16x64xf32, #tpu.memory_space<vmem>>, vector<16x64xf32>
    %121 = vector.shape_cast %119 : vector<1x16x8xf32> to vector<16x8xf32>
    %122 = arith.truncf %121 : vector<16x8xf32> to vector<16x8xbf16>
    %c3 = arith.constant 3 : index
    %c0_48 = arith.constant 0 : index
    %c0_49 = arith.constant 0 : index
    %123 = vector.load %arg3[%c3, %c0_48, %c0_49] : memref<8x8x64xbf16, #tpu.memory_space<vmem>>, vector<1x8x64xbf16>
    %124 = vector.shape_cast %123 : vector<1x8x64xbf16> to vector<8x64xbf16>
    %cst_50 = arith.constant dense<0.000000e+00> : vector<16x64xf32>
    %125 = tpu.matmul %122, %124, %cst_50 {dimension_numbers = #tpu.dot_dimension_numbers<[1], [0], [0], [1], [0, 0, 1, 1], [], []>} : vector<16x8xbf16>, vector<8x64xbf16>, vector<16x64xf32> -> vector<16x64xf32>
    %126 = arith.addf %120, %125 : vector<16x64xf32>
    %c0_51 = arith.constant 0 : index
    %c0_52 = arith.constant 0 : index
    %127 = vector.load %arg6[%c0_51, %c0_52] : memref<16x64xf32, #tpu.memory_space<vmem>>, vector<16x64xf32>
    tpu.vector_store %arg6[%c0_51, %c0_52], %126 {strides = array<i32>} : memref<16x64xf32, #tpu.memory_space<vmem>>, vector<16x64xf32>,
    %128 = vector.extract_strided_slice %3 {offsets = [0, 32], sizes = [16, 8], strides = [1, 1]} : vector<16x192xf32> to vector<16x8xf32>
    %129 = vector.shape_cast %128 : vector<16x8xf32> to vector<1x16x8xf32>
    %130 = arith.truncf %129 : vector<1x16x8xf32> to vector<1x16x8xbf16>
    %131 = vector.extract_strided_slice %3 {offsets = [0, 96], sizes = [16, 8], strides = [1, 1]} : vector<16x192xf32> to vector<16x8xf32>
    %132 = vector.shape_cast %131 : vector<16x8xf32> to vector<1x16x8xf32>
    %133 = arith.truncf %132 : vector<1x16x8xf32> to vector<1x16x8xbf16>
    %134 = vector.extract_strided_slice %3 {offsets = [0, 160], sizes = [16, 8], strides = [1, 1]} : vector<16x192xf32> to vector<16x8xf32>
    %135 = vector.shape_cast %134 : vector<16x8xf32> to vector<1x16x8xf32>
    %136 = arith.truncf %135 : vector<1x16x8xf32> to vector<1x16x8xbf16>
    "tpu.trace_start"() <{level = 10 : i32, message = "bnd,bmd->bnm"}> : () -> ()
    %cst_53 = arith.constant dense<0.000000e+00> : vector<1x16x16xf32>
    %137 = tpu.matmul %130, %133, %cst_53 {dimension_numbers = #tpu.dot_dimension_numbers<[2], [2], [1], [1], [0, 0, 0, 1, 1, 1], [0], [0]>} : vector<1x16x8xbf16>, vector<1x16x8xbf16>, vector<1x16x16xf32> -> vector<1x16x16xf32>
    "tpu.trace_stop"() : () -> ()
    %cst_54 = arith.constant dense<0xFF800000> : vector<1x16xf32>
    %138 = vector.multi_reduction <maximumf>, %137, %cst_54 [2] : vector<1x16x16xf32> to vector<1x16xf32>
    %139 = vector.shape_cast %138 : vector<1x16xf32> to vector<1x16x1xf32>
    %140 = vector.broadcast %139 : vector<1x16x1xf32> to vector<1x16x16xf32>
    %141 = arith.subf %137, %140 : vector<1x16x16xf32>
    %142 = math.exp %141 : vector<1x16x16xf32>
    %cst_55 = arith.constant dense<0.000000e+00> : vector<1x16xf32>
    %143 = vector.multi_reduction <add>, %142, %cst_55 [2] : vector<1x16x16xf32> to vector<1x16xf32>
    %144 = vector.shape_cast %143 : vector<1x16xf32> to vector<1x16x1xf32>
    %145 = tpu.reciprocal %144 {approx = true} : vector<1x16x1xf32> -> vector<1x16x1xf32>
    %146 = vector.broadcast %145 : vector<1x16x1xf32> to vector<1x16x16xf32>
    %147 = arith.mulf %142, %146 : vector<1x16x16xf32>
    %148 = arith.truncf %147 : vector<1x16x16xf32> to vector<1x16x16xbf16>
    "tpu.trace_start"() <{level = 10 : i32, message = "bnm,bmd->bnd"}> : () -> ()
    %cst_56 = arith.constant dense<0.000000e+00> : vector<1x16x8xf32>
    %149 = tpu.matmul %148, %136, %cst_56 {dimension_numbers = #tpu.dot_dimension_numbers<[2], [1], [1], [2], [0, 0, 0, 1, 1, 2], [0], [0]>} : vector<1x16x16xbf16>, vector<1x16x8xbf16>, vector<1x16x8xf32> -> vector<1x16x8xf32>
    "tpu.trace_stop"() : () -> ()
    %c0_57 = arith.constant 0 : index
    %c0_58 = arith.constant 0 : index
    %150 = vector.load %arg6[%c0_57, %c0_58] : memref<16x64xf32, #tpu.memory_space<vmem>>, vector<16x64xf32>
    %151 = vector.shape_cast %149 : vector<1x16x8xf32> to vector<16x8xf32>
    %152 = arith.truncf %151 : vector<16x8xf32> to vector<16x8xbf16>
    %c4 = arith.constant 4 : index
    %c0_59 = arith.constant 0 : index
    %c0_60 = arith.constant 0 : index
    %153 = vector.load %arg3[%c4, %c0_59, %c0_60] : memref<8x8x64xbf16, #tpu.memory_space<vmem>>, vector<1x8x64xbf16>
    %154 = vector.shape_cast %153 : vector<1x8x64xbf16> to vector<8x64xbf16>
    %cst_61 = arith.constant dense<0.000000e+00> : vector<16x64xf32>
    %155 = tpu.matmul %152, %154, %cst_61 {dimension_numbers = #tpu.dot_dimension_numbers<[1], [0], [0], [1], [0, 0, 1, 1], [], []>} : vector<16x8xbf16>, vector<8x64xbf16>, vector<16x64xf32> -> vector<16x64xf32>
    %156 = arith.addf %150, %155 : vector<16x64xf32>
    %c0_62 = arith.constant 0 : index
    %c0_63 = arith.constant 0 : index
    %157 = vector.load %arg6[%c0_62, %c0_63] : memref<16x64xf32, #tpu.memory_space<vmem>>, vector<16x64xf32>
    tpu.vector_store %arg6[%c0_62, %c0_63], %156 {strides = array<i32>} : memref<16x64xf32, #tpu.memory_space<vmem>>, vector<16x64xf32>,
    %158 = vector.extract_strided_slice %3 {offsets = [0, 40], sizes = [16, 8], strides = [1, 1]} : vector<16x192xf32> to vector<16x8xf32>
    %159 = vector.shape_cast %158 : vector<16x8xf32> to vector<1x16x8xf32>
    %160 = arith.truncf %159 : vector<1x16x8xf32> to vector<1x16x8xbf16>
    %161 = vector.extract_strided_slice %3 {offsets = [0, 104], sizes = [16, 8], strides = [1, 1]} : vector<16x192xf32> to vector<16x8xf32>
    %162 = vector.shape_cast %161 : vector<16x8xf32> to vector<1x16x8xf32>
    %163 = arith.truncf %162 : vector<1x16x8xf32> to vector<1x16x8xbf16>
    %164 = vector.extract_strided_slice %3 {offsets = [0, 168], sizes = [16, 8], strides = [1, 1]} : vector<16x192xf32> to vector<16x8xf32>
    %165 = vector.shape_cast %164 : vector<16x8xf32> to vector<1x16x8xf32>
    %166 = arith.truncf %165 : vector<1x16x8xf32> to vector<1x16x8xbf16>
    "tpu.trace_start"() <{level = 10 : i32, message = "bnd,bmd->bnm"}> : () -> ()
    %cst_64 = arith.constant dense<0.000000e+00> : vector<1x16x16xf32>
    %167 = tpu.matmul %160, %163, %cst_64 {dimension_numbers = #tpu.dot_dimension_numbers<[2], [2], [1], [1], [0, 0, 0, 1, 1, 1], [0], [0]>} : vector<1x16x8xbf16>, vector<1x16x8xbf16>, vector<1x16x16xf32> -> vector<1x16x16xf32>
    "tpu.trace_stop"() : () -> ()
    %cst_65 = arith.constant dense<0xFF800000> : vector<1x16xf32>
    %168 = vector.multi_reduction <maximumf>, %167, %cst_65 [2] : vector<1x16x16xf32> to vector<1x16xf32>
    %169 = vector.shape_cast %168 : vector<1x16xf32> to vector<1x16x1xf32>
    %170 = vector.broadcast %169 : vector<1x16x1xf32> to vector<1x16x16xf32>
    %171 = arith.subf %167, %170 : vector<1x16x16xf32>
    %172 = math.exp %171 : vector<1x16x16xf32>
    %cst_66 = arith.constant dense<0.000000e+00> : vector<1x16xf32>
    %173 = vector.multi_reduction <add>, %172, %cst_66 [2] : vector<1x16x16xf32> to vector<1x16xf32>
    %174 = vector.shape_cast %173 : vector<1x16xf32> to vector<1x16x1xf32>
    %175 = tpu.reciprocal %174 {approx = true} : vector<1x16x1xf32> -> vector<1x16x1xf32>
    %176 = vector.broadcast %175 : vector<1x16x1xf32> to vector<1x16x16xf32>
    %177 = arith.mulf %172, %176 : vector<1x16x16xf32>
    %178 = arith.truncf %177 : vector<1x16x16xf32> to vector<1x16x16xbf16>
    "tpu.trace_start"() <{level = 10 : i32, message = "bnm,bmd->bnd"}> : () -> ()
    %cst_67 = arith.constant dense<0.000000e+00> : vector<1x16x8xf32>
    %179 = tpu.matmul %178, %166, %cst_67 {dimension_numbers = #tpu.dot_dimension_numbers<[2], [1], [1], [2], [0, 0, 0, 1, 1, 2], [0], [0]>} : vector<1x16x16xbf16>, vector<1x16x8xbf16>, vector<1x16x8xf32> -> vector<1x16x8xf32>
    "tpu.trace_stop"() : () -> ()
    %c0_68 = arith.constant 0 : index
    %c0_69 = arith.constant 0 : index
    %180 = vector.load %arg6[%c0_68, %c0_69] : memref<16x64xf32, #tpu.memory_space<vmem>>, vector<16x64xf32>
    %181 = vector.shape_cast %179 : vector<1x16x8xf32> to vector<16x8xf32>
    %182 = arith.truncf %181 : vector<16x8xf32> to vector<16x8xbf16>
    %c5 = arith.constant 5 : index
    %c0_70 = arith.constant 0 : index
    %c0_71 = arith.constant 0 : index
    %183 = vector.load %arg3[%c5, %c0_70, %c0_71] : memref<8x8x64xbf16, #tpu.memory_space<vmem>>, vector<1x8x64xbf16>
    %184 = vector.shape_cast %183 : vector<1x8x64xbf16> to vector<8x64xbf16>
    %cst_72 = arith.constant dense<0.000000e+00> : vector<16x64xf32>
    %185 = tpu.matmul %182, %184, %cst_72 {dimension_numbers = #tpu.dot_dimension_numbers<[1], [0], [0], [1], [0, 0, 1, 1], [], []>} : vector<16x8xbf16>, vector<8x64xbf16>, vector<16x64xf32> -> vector<16x64xf32>
    %186 = arith.addf %180, %185 : vector<16x64xf32>
    %c0_73 = arith.constant 0 : index
    %c0_74 = arith.constant 0 : index
    %187 = vector.load %arg6[%c0_73, %c0_74] : memref<16x64xf32, #tpu.memory_space<vmem>>, vector<16x64xf32>
    tpu.vector_store %arg6[%c0_73, %c0_74], %186 {strides = array<i32>} : memref<16x64xf32, #tpu.memory_space<vmem>>, vector<16x64xf32>,
    %188 = vector.extract_strided_slice %3 {offsets = [0, 48], sizes = [16, 8], strides = [1, 1]} : vector<16x192xf32> to vector<16x8xf32>
    %189 = vector.shape_cast %188 : vector<16x8xf32> to vector<1x16x8xf32>
    %190 = arith.truncf %189 : vector<1x16x8xf32> to vector<1x16x8xbf16>
    %191 = vector.extract_strided_slice %3 {offsets = [0, 112], sizes = [16, 8], strides = [1, 1]} : vector<16x192xf32> to vector<16x8xf32>
    %192 = vector.shape_cast %191 : vector<16x8xf32> to vector<1x16x8xf32>
    %193 = arith.truncf %192 : vector<1x16x8xf32> to vector<1x16x8xbf16>
    %194 = vector.extract_strided_slice %3 {offsets = [0, 176], sizes = [16, 8], strides = [1, 1]} : vector<16x192xf32> to vector<16x8xf32>
    %195 = vector.shape_cast %194 : vector<16x8xf32> to vector<1x16x8xf32>
    %196 = arith.truncf %195 : vector<1x16x8xf32> to vector<1x16x8xbf16>
    "tpu.trace_start"() <{level = 10 : i32, message = "bnd,bmd->bnm"}> : () -> ()
    %cst_75 = arith.constant dense<0.000000e+00> : vector<1x16x16xf32>
    %197 = tpu.matmul %190, %193, %cst_75 {dimension_numbers = #tpu.dot_dimension_numbers<[2], [2], [1], [1], [0, 0, 0, 1, 1, 1], [0], [0]>} : vector<1x16x8xbf16>, vector<1x16x8xbf16>, vector<1x16x16xf32> -> vector<1x16x16xf32>
    "tpu.trace_stop"() : () -> ()
    %cst_76 = arith.constant dense<0xFF800000> : vector<1x16xf32>
    %198 = vector.multi_reduction <maximumf>, %197, %cst_76 [2] : vector<1x16x16xf32> to vector<1x16xf32>
    %199 = vector.shape_cast %198 : vector<1x16xf32> to vector<1x16x1xf32>
    %200 = vector.broadcast %199 : vector<1x16x1xf32> to vector<1x16x16xf32>
    %201 = arith.subf %197, %200 : vector<1x16x16xf32>
    %202 = math.exp %201 : vector<1x16x16xf32>
    %cst_77 = arith.constant dense<0.000000e+00> : vector<1x16xf32>
    %203 = vector.multi_reduction <add>, %202, %cst_77 [2] : vector<1x16x16xf32> to vector<1x16xf32>
    %204 = vector.shape_cast %203 : vector<1x16xf32> to vector<1x16x1xf32>
    %205 = tpu.reciprocal %204 {approx = true} : vector<1x16x1xf32> -> vector<1x16x1xf32>
    %206 = vector.broadcast %205 : vector<1x16x1xf32> to vector<1x16x16xf32>
    %207 = arith.mulf %202, %206 : vector<1x16x16xf32>
    %208 = arith.truncf %207 : vector<1x16x16xf32> to vector<1x16x16xbf16>
    "tpu.trace_start"() <{level = 10 : i32, message = "bnm,bmd->bnd"}> : () -> ()
    %cst_78 = arith.constant dense<0.000000e+00> : vector<1x16x8xf32>
    %209 = tpu.matmul %208, %196, %cst_78 {dimension_numbers = #tpu.dot_dimension_numbers<[2], [1], [1], [2], [0, 0, 0, 1, 1, 2], [0], [0]>} : vector<1x16x16xbf16>, vector<1x16x8xbf16>, vector<1x16x8xf32> -> vector<1x16x8xf32>
    "tpu.trace_stop"() : () -> ()
    %c0_79 = arith.constant 0 : index
    %c0_80 = arith.constant 0 : index
    %210 = vector.load %arg6[%c0_79, %c0_80] : memref<16x64xf32, #tpu.memory_space<vmem>>, vector<16x64xf32>
    %211 = vector.shape_cast %209 : vector<1x16x8xf32> to vector<16x8xf32>
    %212 = arith.truncf %211 : vector<16x8xf32> to vector<16x8xbf16>
    %c6 = arith.constant 6 : index
    %c0_81 = arith.constant 0 : index
    %c0_82 = arith.constant 0 : index
    %213 = vector.load %arg3[%c6, %c0_81, %c0_82] : memref<8x8x64xbf16, #tpu.memory_space<vmem>>, vector<1x8x64xbf16>
    %214 = vector.shape_cast %213 : vector<1x8x64xbf16> to vector<8x64xbf16>
    %cst_83 = arith.constant dense<0.000000e+00> : vector<16x64xf32>
    %215 = tpu.matmul %212, %214, %cst_83 {dimension_numbers = #tpu.dot_dimension_numbers<[1], [0], [0], [1], [0, 0, 1, 1], [], []>} : vector<16x8xbf16>, vector<8x64xbf16>, vector<16x64xf32> -> vector<16x64xf32>
    %216 = arith.addf %210, %215 : vector<16x64xf32>
    %c0_84 = arith.constant 0 : index
    %c0_85 = arith.constant 0 : index
    %217 = vector.load %arg6[%c0_84, %c0_85] : memref<16x64xf32, #tpu.memory_space<vmem>>, vector<16x64xf32>
    tpu.vector_store %arg6[%c0_84, %c0_85], %216 {strides = array<i32>} : memref<16x64xf32, #tpu.memory_space<vmem>>, vector<16x64xf32>,
    %218 = vector.extract_strided_slice %3 {offsets = [0, 56], sizes = [16, 8], strides = [1, 1]} : vector<16x192xf32> to vector<16x8xf32>
    %219 = vector.shape_cast %218 : vector<16x8xf32> to vector<1x16x8xf32>
    %220 = arith.truncf %219 : vector<1x16x8xf32> to vector<1x16x8xbf16>
    %221 = vector.extract_strided_slice %3 {offsets = [0, 120], sizes = [16, 8], strides = [1, 1]} : vector<16x192xf32> to vector<16x8xf32>
    %222 = vector.shape_cast %221 : vector<16x8xf32> to vector<1x16x8xf32>
    %223 = arith.truncf %222 : vector<1x16x8xf32> to vector<1x16x8xbf16>
    %224 = vector.extract_strided_slice %3 {offsets = [0, 184], sizes = [16, 8], strides = [1, 1]} : vector<16x192xf32> to vector<16x8xf32>
    %225 = vector.shape_cast %224 : vector<16x8xf32> to vector<1x16x8xf32>
    %226 = arith.truncf %225 : vector<1x16x8xf32> to vector<1x16x8xbf16>
    "tpu.trace_start"() <{level = 10 : i32, message = "bnd,bmd->bnm"}> : () -> ()
    %cst_86 = arith.constant dense<0.000000e+00> : vector<1x16x16xf32>
    %227 = tpu.matmul %220, %223, %cst_86 {dimension_numbers = #tpu.dot_dimension_numbers<[2], [2], [1], [1], [0, 0, 0, 1, 1, 1], [0], [0]>} : vector<1x16x8xbf16>, vector<1x16x8xbf16>, vector<1x16x16xf32> -> vector<1x16x16xf32>
    "tpu.trace_stop"() : () -> ()
    %cst_87 = arith.constant dense<0xFF800000> : vector<1x16xf32>
    %228 = vector.multi_reduction <maximumf>, %227, %cst_87 [2] : vector<1x16x16xf32> to vector<1x16xf32>
    %229 = vector.shape_cast %228 : vector<1x16xf32> to vector<1x16x1xf32>
    %230 = vector.broadcast %229 : vector<1x16x1xf32> to vector<1x16x16xf32>
    %231 = arith.subf %227, %230 : vector<1x16x16xf32>
    %232 = math.exp %231 : vector<1x16x16xf32>
    %cst_88 = arith.constant dense<0.000000e+00> : vector<1x16xf32>
    %233 = vector.multi_reduction <add>, %232, %cst_88 [2] : vector<1x16x16xf32> to vector<1x16xf32>
    %234 = vector.shape_cast %233 : vector<1x16xf32> to vector<1x16x1xf32>
    %235 = tpu.reciprocal %234 {approx = true} : vector<1x16x1xf32> -> vector<1x16x1xf32>
    %236 = vector.broadcast %235 : vector<1x16x1xf32> to vector<1x16x16xf32>
    %237 = arith.mulf %232, %236 : vector<1x16x16xf32>
    %238 = arith.truncf %237 : vector<1x16x16xf32> to vector<1x16x16xbf16>
    "tpu.trace_start"() <{level = 10 : i32, message = "bnm,bmd->bnd"}> : () -> ()
    %cst_89 = arith.constant dense<0.000000e+00> : vector<1x16x8xf32>
    %239 = tpu.matmul %238, %226, %cst_89 {dimension_numbers = #tpu.dot_dimension_numbers<[2], [1], [1], [2], [0, 0, 0, 1, 1, 2], [0], [0]>} : vector<1x16x16xbf16>, vector<1x16x8xbf16>, vector<1x16x8xf32> -> vector<1x16x8xf32>
    "tpu.trace_stop"() : () -> ()
    %c0_90 = arith.constant 0 : index
    %c0_91 = arith.constant 0 : index
    %240 = vector.load %arg6[%c0_90, %c0_91] : memref<16x64xf32, #tpu.memory_space<vmem>>, vector<16x64xf32>
    %241 = vector.shape_cast %239 : vector<1x16x8xf32> to vector<16x8xf32>
    %242 = arith.truncf %241 : vector<16x8xf32> to vector<16x8xbf16>
    %c7 = arith.constant 7 : index
    %c0_92 = arith.constant 0 : index
    %c0_93 = arith.constant 0 : index
    %243 = vector.load %arg3[%c7, %c0_92, %c0_93] : memref<8x8x64xbf16, #tpu.memory_space<vmem>>, vector<1x8x64xbf16>
    %244 = vector.shape_cast %243 : vector<1x8x64xbf16> to vector<8x64xbf16>
    %cst_94 = arith.constant dense<0.000000e+00> : vector<16x64xf32>
    %245 = tpu.matmul %242, %244, %cst_94 {dimension_numbers = #tpu.dot_dimension_numbers<[1], [0], [0], [1], [0, 0, 1, 1], [], []>} : vector<16x8xbf16>, vector<8x64xbf16>, vector<16x64xf32> -> vector<16x64xf32>
    %246 = arith.addf %240, %245 : vector<16x64xf32>
    %c0_95 = arith.constant 0 : index
    %c0_96 = arith.constant 0 : index
    %247 = vector.load %arg6[%c0_95, %c0_96] : memref<16x64xf32, #tpu.memory_space<vmem>>, vector<16x64xf32>
    tpu.vector_store %arg6[%c0_95, %c0_96], %246 {strides = array<i32>} : memref<16x64xf32, #tpu.memory_space<vmem>>, vector<16x64xf32>,
    %c0_97 = arith.constant 0 : index
    %c0_98 = arith.constant 0 : index
    %248 = vector.load %arg6[%c0_97, %c0_98] : memref<16x64xf32, #tpu.memory_space<vmem>>, vector<16x64xf32>
    %249 = vector.shape_cast %248 : vector<16x64xf32> to vector<1x16x64xf32>
    %c0_99 = arith.constant 0 : index
    %c0_100 = arith.constant 0 : index
    %c0_101 = arith.constant 0 : index
    %250 = vector.load %arg5[%c0_99, %c0_100, %c0_101] : memref<1x16x64xf32, #tpu.memory_space<vmem>>, vector<1x16x64xf32>
    tpu.vector_store %arg5[%c0_99, %c0_100, %c0_101], %249 {strides = array<i32>} : memref<1x16x64xf32, #tpu.memory_space<vmem>>, vector<1x16x64xf32>,
    return
  }
  func.func @transform_0(%arg0: i32) -> (i32, i32, i32) {
    %c0_i32 = arith.constant 0 : i32
    %c0_i32_0 = arith.constant 0 : i32
    %c0_i32_1 = arith.constant 0 : i32
    return %arg0, %c0_i32, %c0_i32_0 : i32, i32, i32
  }
  func.func @transform_1(%arg0: i32) -> (i32, i32) {
    %c0_i32 = arith.constant 0 : i32
    %c0_i32_0 = arith.constant 0 : i32
    %c0_i32_1 = arith.constant 0 : i32
    return %c0_i32, %c0_i32_0 : i32, i32
  }
  func.func @transform_2(%arg0: i32) -> (i32, i32, i32) {
    %c0_i32 = arith.constant 0 : i32
    %c0_i32_0 = arith.constant 0 : i32
    %c0_i32_1 = arith.constant 0 : i32
    %c0_i32_2 = arith.constant 0 : i32
    return %c0_i32, %c0_i32_0, %c0_i32_1 : i32, i32, i32
  }
  func.func @transform_3(%arg0: i32) -> (i32, i32) {
    %c0_i32 = arith.constant 0 : i32
    %c0_i32_0 = arith.constant 0 : i32
    %c0_i32_1 = arith.constant 0 : i32
    return %c0_i32, %c0_i32_0 : i32, i32
  }
  func.func @transform_4(%arg0: i32) -> (i32, i32, i32) {
    %c0_i32 = arith.constant 0 : i32
    %c0_i32_0 = arith.constant 0 : i32
    %c0_i32_1 = arith.constant 0 : i32
    return %arg0, %c0_i32, %c0_i32_0 : i32, i32, i32
  }
}

</mosaic_0001>

<llo_original>
// kernel: tpu_custom_call.1
$region0: #{tpu_custom_call.1}
  #allocation0 [shape = 'u32[]', space=smem, size = 0x4, offset = 0x4, fixed_abs, tag = 'smem constant byte address 0x4 - core index']
  #allocation1 [shape = 'u32[72,128]{1,0:T(1,128)}', space=vmem, size = 0x9000, scoped, tag = 'internal scratch']
  #allocation2 [shape = 'f32[16,64]{1,0:T(8,128)}', space=vmem, size = 0x2000, scoped, tag = 'scratch operand']
  %s0 = inlined_call_operand.hbm [shape: bf16[2,16,64], index: 0, kind: input, shape index: {}]
  %s1 = inlined_call_operand.hbm [shape: bf16[64,192], index: 1, kind: input, shape index: {}]
  %s2 = inlined_call_operand.hbm [shape: bf16[8,8,64], index: 2, kind: input, shape index: {}]
  %s3 = inlined_call_operand.vmem [shape: f32[1,64], index: 3, kind: input, shape index: {}]
  %s4 = inlined_call_operand.hbm [shape: f32[2,16,64], index: 4, kind: output, shape index: {}]
  %s5 = sld [smem:[#allocation0]]
  $region61: #{tpu_custom_call.1} parent=0
    _
  %s7 = ssub.s32 1, %s5
  %s8 = scalar_select 0, %s7, %s5
  $region1: #{tpu_custom_call.1} parent=0
    #allocation3 [shape = 'u8[8192]{0}', space=vmem, size = 0x2000, scoped, tag = 'input window, operand 0']
    #allocation4 [shape = 's32[2]{0}', space=sflag, size = 0x8, scoped, tag = 'scoped memory for tpu_custom_call.1']
    #allocation5 [shape = 's32[2]{0}', space=sflag, size = 0x8, scoped, tag = 'scoped memory for tpu_custom_call.1']
    #allocation6 [shape = 'u8[32768]{0}', space=vmem, size = 0x8000, scoped, tag = 'input window, operand 1, single buffered']
    #allocation7 [shape = 's32[1]{0}', space=sflag, size = 0x4, scoped, tag = 'scoped memory for tpu_custom_call.1']
    #allocation8 [shape = 'u8[16384]{0}', space=vmem, size = 0x4000, scoped, tag = 'input window, operand 2, single buffered']
    #allocation9 [shape = 'u8[16384]{0}', space=vmem, size = 0x4000, scoped, tag = 'output window, operand 0']
    %9 = vsyncpa [#allocation4], 0
    %s10 = scalar_lea.sflag [#allocation4], 1
    %11 = vsyncpa %s10, 0
    %12 = vsyncpa [#allocation7], 0
    %13 = vsyncpa [#allocation5], 0
    %s14 = scalar_lea.sflag [#allocation5], 1
    %15 = vsyncpa %s14, 0
    loop: start=0, step=1, limit=4
    $region2: #{tpu_custom_call.1} parent=1 // loop_pre_header
      _
    $region3: #{tpu_custom_call.1} parent=1 // loop_header
      %s17 = sphi 0, %s21
      %p18 = scmp.ge.s32.totalorder %s17, 4
      %s27 = sphi 0, %s29
      %s30 = sphi 0, %s27
      %s31 = sphi 0, %s30
      %s47 = sphi 0, %s31
      %s51 = sphi 0, %s51
      %s53 = sphi 0, %s51
      %s54 = sphi 0, %s53
      %s68 = sphi 0, %s54
      %s72 = sphi 0, %s72
      %s74 = sphi 0, %s72
      %s75 = sphi 0, %s74
      %s89 = sphi 0, %s75
      %s93 = sphi 0, %s93
      %s95 = sphi 0, %s93
      %s96 = sphi 0, %s95
      %s110 = sphi 0, %s96
      %s116 = sphi 0, %s118
      %s119 = sphi 0, %s116
      %s120 = sphi 0, %s119
      %s136 = sphi 0, %s120
    $region4: #{tpu_custom_call.1} parent=1 // loop_header_branch
      %20 = sbr.rel (%p18) target = $region8
    $region5: #{tpu_custom_call.1} parent=1 // loop_body
      %s22 = ssub.s32 %s17, 1
      %s23 = ssub.s32 %s17, 2
      %s24 = sadd.s32 %s17, 1
      %s25 = ssub.s32 %s17, %s24
      %p26 = scmp.eq.s32.totalorder %s25, 0
      %s28 = sadd.s32 %s27, 1
      %s29 = scalar_select %p26, %s27, %s28
      %p32 = pneg %p26
      %p33 = scmp.eq.s32.totalorder %s17, 1
      %p34 = por %p32, %p33
      %p35 = scmp.ne.s32.totalorder %s27, %s30
      %p36 = scmp.eq.s32.totalorder %s17, 0
      %p37 = por %p35, %p36
      %p38 = scmp.ne.s32.totalorder %s27, %s30
      %p39 = scmp.eq.s32.totalorder %s22, 1
      %p40 = por %p38, %p39
      %p41 = scmp.ne.s32.totalorder %s30, %s31
      %p42 = scmp.eq.s32.totalorder %s22, 0
      %p43 = por %p41, %p42
      %p44 = scmp.ne.s32.totalorder %s30, %s31
      %p45 = scmp.eq.s32.totalorder %s23, 1
      %p46 = por %p44, %p45
      %p48 = scmp.ne.s32.totalorder %s31, %s47
      %p49 = scmp.eq.s32.totalorder %s23, 0
      %p50 = por %p48, %p49
      %s52 = sadd.s32 %s51, 1
      %p55 = scmp.eq.s32.totalorder %s17, 1
      %p56 = scmp.ne.s32.totalorder %s51, %s53
      %p57 = scmp.eq.s32.totalorder %s17, 0
      %p58 = por %p56, %p57
      %p59 = scmp.ne.s32.totalorder %s51, %s53
      %p60 = scmp.eq.s32.totalorder %s22, 1
      %p61 = por %p59, %p60
      %p62 = scmp.ne.s32.totalorder %s53, %s54
      %p63 = scmp.eq.s32.totalorder %s22, 0
      %p64 = por %p62, %p63
      %p65 = scmp.ne.s32.totalorder %s53, %s54
      %p66 = scmp.eq.s32.totalorder %s23, 1
      %p67 = por %p65, %p66
      %p69 = scmp.ne.s32.totalorder %s54, %s68
      %p70 = scmp.eq.s32.totalorder %s23, 0
      %p71 = por %p69, %p70
      %s73 = sadd.s32 %s72, 1
      %p76 = scmp.eq.s32.totalorder %s17, 1
      %p77 = scmp.ne.s32.totalorder %s72, %s74
      %p78 = scmp.eq.s32.totalorder %s17, 0
      %p79 = por %p77, %p78
      %p80 = scmp.ne.s32.totalorder %s72, %s74
      %p81 = scmp.eq.s32.totalorder %s22, 1
      %p82 = por %p80, %p81
      %p83 = scmp.ne.s32.totalorder %s74, %s75
      %p84 = scmp.eq.s32.totalorder %s22, 0
      %p85 = por %p83, %p84
      %p86 = scmp.ne.s32.totalorder %s74, %s75
      %p87 = scmp.eq.s32.totalorder %s23, 1
      %p88 = por %p86, %p87
      %p90 = scmp.ne.s32.totalorder %s75, %s89
      %p91 = scmp.eq.s32.totalorder %s23, 0
      %p92 = por %p90, %p91
      %s94 = sadd.s32 %s93, 1
      %p97 = scmp.eq.s32.totalorder %s17, 1
      %p98 = scmp.ne.s32.totalorder %s93, %s95
      %p99 = scmp.eq.s32.totalorder %s17, 0
      %p100 = por %p98, %p99
      %p101 = scmp.ne.s32.totalorder %s93, %s95
      %p102 = scmp.eq.s32.totalorder %s22, 1
      %p103 = por %p101, %p102
      %p104 = scmp.ne.s32.totalorder %s95, %s96
      %p105 = scmp.eq.s32.totalorder %s22, 0
      %p106 = por %p104, %p105
      %p107 = scmp.ne.s32.totalorder %s95, %s96
      %p108 = scmp.eq.s32.totalorder %s23, 1
      %p109 = por %p107, %p108
      %p111 = scmp.ne.s32.totalorder %s96, %s110
      %p112 = scmp.eq.s32.totalorder %s23, 0
      %p113 = por %p111, %p112
      %s114 = ssub.s32 %s17, %s24
      %p115 = scmp.eq.s32.totalorder %s114, 0
      %s117 = sadd.s32 %s116, 1
      %s118 = scalar_select %p115, %s116, %s117
      %p121 = pneg %p115
      %p122 = scmp.eq.s32.totalorder %s17, 1
      %p123 = por %p121, %p122
      %p124 = scmp.ne.s32.totalorder %s116, %s119
      %p125 = scmp.eq.s32.totalorder %s17, 0
      %p126 = por %p124, %p125
      %p127 = scmp.ne.s32.totalorder %s116, %s119
      %p128 = scmp.eq.s32.totalorder %s22, 1
      %p129 = por %p127, %p128
      %p130 = scmp.ne.s32.totalorder %s119, %s120
      %p131 = scmp.eq.s32.totalorder %s22, 0
      %p132 = por %p130, %p131
      %p133 = scmp.ne.s32.totalorder %s119, %s120
      %p134 = scmp.eq.s32.totalorder %s23, 1
      %p135 = por %p133, %p134
      %p137 = scmp.ne.s32.totalorder %s120, %s136
      %p138 = scmp.eq.s32.totalorder %s23, 0
      %p139 = por %p137, %p138
      %p140 = scmp.le.s32.totalorder 1, %s17
      %p141 = scmp.lt.s32.totalorder %s17, 3
      %p142 = pnand %p140, %p141
      %p143 = pneg %p142
      // Predicated region
      $region9: #{tpu_custom_call.1} parent=5 // pred_check
        _
      $region10: #{tpu_custom_call.1} parent=5 // pred_check_branch
        %145 = sbr.rel (%p142) target = $region12
      $region11: #{tpu_custom_call.1} parent=5 // pred_region
        %s146 = ssub.s32 %s17, 1
        // Predicated region
        $region13: #{tpu_custom_call.1} parent=11 // pred_check
          %p147 = pneg %p64
        $region14: #{tpu_custom_call.1} parent=11 // pred_check_branch
          %149 = sbr.rel (%p147) target = $region16
        $region15: #{tpu_custom_call.1} parent=11 // pred_region
          %151 = vsyncadd [#allocation7], 0
          %s152 = sshll.u32 %s1, 4
          %s153 = int_to_ptr.hbm [resolvable:$true] %s152
          %s154 = sshll.u32 [#allocation6], 4
          %s155 = int_to_ptr.vmem [resolvable:$true] %s154
          %160 = dma.hbm_to_vmem [thread:$0]  %s153, 1024, %s155, [#allocation7], 128, 128, 8
        $region16: #{tpu_custom_call.1} parent=11 // pred_fallthru
          _
        // Predicated region
        $region17: #{tpu_custom_call.1} parent=11 // pred_check
          %p161 = pneg %p85
        $region18: #{tpu_custom_call.1} parent=11 // pred_check_branch
          %163 = sbr.rel (%p161) target = $region20
        $region19: #{tpu_custom_call.1} parent=11 // pred_region
          %165 = vsyncadd [#allocation7], 0
          %s166 = sshll.u32 %s2, 4
          %s167 = int_to_ptr.hbm [resolvable:$true] %s166
          %s168 = sshll.u32 [#allocation8], 4
          %s169 = int_to_ptr.vmem [resolvable:$true] %s168
          %174 = dma.hbm_to_vmem [thread:$0]  %s167, 512, %s169, [#allocation7], 64, 64, 4
        $region20: #{tpu_custom_call.1} parent=11 // pred_fallthru
          _
        // Predicated region
        $region21: #{tpu_custom_call.1} parent=11 // pred_check
          %p175 = pneg %p106
        $region22: #{tpu_custom_call.1} parent=11 // pred_check_branch
          %177 = sbr.rel (%p175) target = $region24
        $region23: #{tpu_custom_call.1} parent=11 // pred_region
          _
        $region24: #{tpu_custom_call.1} parent=11 // pred_fallthru
          _
      $region12: #{tpu_custom_call.1} parent=5 // pred_fallthru
        _
      %p178 = scmp.lt.s32.totalorder %s17, 2
      // Predicated region
      $region25: #{tpu_custom_call.1} parent=5 // pred_check
        %p179 = pneg %p178
      $region26: #{tpu_custom_call.1} parent=5 // pred_check_branch
        %181 = sbr.rel (%p179) target = $region28
      $region27: #{tpu_custom_call.1} parent=5 // pred_region
        // Predicated region
        $region29: #{tpu_custom_call.1} parent=27 // pred_check
          %p182 = pneg %p37
        $region30: #{tpu_custom_call.1} parent=27 // pred_check_branch
          %184 = sbr.rel (%p182) target = $region32
        $region31: #{tpu_custom_call.1} parent=27 // pred_region
          %s185 = sand.u32 %s27, 1
          %s186 = scalar_lea.sflag [#allocation4], %s185
          %s187 = sand.u32 %s27, 1
          %s188 = smul.addr %s187, 8
          %s189 = scalar_lea.vmem [#allocation3], %s188
          %191 = vsyncadd %s186, 0
          %s192 = smul.addr %s17, 2
          %s193 = smul.addr %s192, 4
          %s194 = scalar_lea.hbm %s0, %s193
          %s195 = sshll.u32 %s194, 4
          %s196 = int_to_ptr.hbm [resolvable:$true] %s195
          %s197 = sshll.u32 %s189, 4
          %s198 = int_to_ptr.vmem [resolvable:$true] %s197
          %203 = dma.hbm_to_vmem [thread:$0]  %s196, 128, %s198, %s186, 64, 64, 4
        $region32: #{tpu_custom_call.1} parent=27 // pred_fallthru
          _
      $region28: #{tpu_custom_call.1} parent=5 // pred_fallthru
        _
      %p204 = scmp.le.s32.totalorder 1, %s17
      %p205 = scmp.lt.s32.totalorder %s17, 3
      %p206 = pnand %p204, %p205
      %p207 = pneg %p206
      // Predicated region
      $region33: #{tpu_custom_call.1} parent=5 // pred_check
        _
      $region34: #{tpu_custom_call.1} parent=5 // pred_check_branch
        %209 = sbr.rel (%p206) target = $region36
      $region35: #{tpu_custom_call.1} parent=5 // pred_region
        %s210 = ssub.s32 %s17, 1
        %s211 = sand.u32 %s30, 1
        %s212 = scalar_lea.sflag [#allocation4], %s211
        %s213 = sand.u32 %s30, 1
        %s214 = smul.addr %s213, 8
        %s215 = scalar_lea.vmem [#allocation3], %s214
        // Predicated region
        $region37: #{tpu_custom_call.1} parent=35 // pred_check
          %p216 = pneg %p43
        $region38: #{tpu_custom_call.1} parent=35 // pred_check_branch
          %218 = sbr.rel (%p216) target = $region40
        $region39: #{tpu_custom_call.1} parent=35 // pred_region
          %220 = dma.done %s212, 128
        $region40: #{tpu_custom_call.1} parent=35 // pred_fallthru
          _
        // Predicated region
        $region41: #{tpu_custom_call.1} parent=35 // pred_check
          %p221 = pneg %p64
        $region42: #{tpu_custom_call.1} parent=35 // pred_check_branch
          %223 = sbr.rel (%p221) target = $region44
        $region43: #{tpu_custom_call.1} parent=35 // pred_region
          %225 = dma.done [#allocation7], 1024
        $region44: #{tpu_custom_call.1} parent=35 // pred_fallthru
          _
        // Predicated region
        $region45: #{tpu_custom_call.1} parent=35 // pred_check
          %p226 = pneg %p85
        $region46: #{tpu_custom_call.1} parent=35 // pred_check_branch
          %228 = sbr.rel (%p226) target = $region48
        $region47: #{tpu_custom_call.1} parent=35 // pred_region
          %230 = dma.done [#allocation7], 512
        $region48: #{tpu_custom_call.1} parent=35 // pred_fallthru
          _
        %s231 = sand.u32 %s30, 1
        %s232 = scalar_lea.sflag [#allocation4], %s231
        %s233 = sand.u32 %s30, 1
        %s234 = smul.addr %s233, 8
        %s235 = scalar_lea.vmem [#allocation3], %s234
        %p236 = pneg %p43
        %p237 = pneg %p40
        %p238 = pneg %p64
        %p239 = pneg %p61
        %p240 = pneg %p85
        %p241 = pneg %p82
        %p242 = pneg %p106
        %p243 = pneg %p103
        %p244 = pneg %p132
        %p245 = pneg %p129
        %s246 = sand.u32 %s119, 1
        %s247 = scalar_lea.sflag [#allocation5], %s246
        %s248 = sand.u32 %s119, 1
        %s249 = smul.addr %s248, 16
        %s250 = scalar_lea.vmem [#allocation9], %s249
        %v252 = vld [vmem:[%s215] sm:$0xf]
        %v253 = vld [vmem:[%s215 + $0x4] sm:$0xf]
        %v254 = vld [vmem:[#allocation6] sm:$0xff]
        %v255 = vld [vmem:[#allocation6 + $0x8] sm:$0xff]
        %v256 = vld [vmem:[#allocation6 + $0x10] sm:$0xff]
        %v257 = vld [vmem:[#allocation6 + $0x18] sm:$0xff]
        %v258 = vld [vmem:[#allocation6 + $0x20] sm:$0xff]
        %v259 = vld [vmem:[#allocation6 + $0x28] sm:$0xff]
        %v260 = vld [vmem:[#allocation6 + $0x30] sm:$0xff]
        %v261 = vld [vmem:[#allocation6 + $0x38] sm:$0xff]
        %v264 = vunpack.c.l.b16 %v252
        %v265 = vunpack.c.l.b16 %v253
        %v266 = vpack.c.b16 %v265, %v264
        %v275 = vunpack.c.l.b16 %v254
        %v276 = vunpack.c.h.b16 %v254
        %v277 = vunpack.c.l.b16 %v255
        %v278 = vunpack.c.h.b16 %v255
        %v279 = vunpack.c.l.b16 %v256
        %v280 = vunpack.c.h.b16 %v256
        %v281 = vunpack.c.l.b16 %v257
        %v282 = vunpack.c.h.b16 %v257
        %v283 = vunpack.c.l.b16 %v258
        %v284 = vunpack.c.h.b16 %v258
        %v285 = vunpack.c.l.b16 %v259
        %v286 = vunpack.c.h.b16 %v259
        %v287 = vunpack.c.l.b16 %v260
        %v288 = vunpack.c.h.b16 %v260
        %v289 = vunpack.c.l.b16 %v261
        %v290 = vunpack.c.h.b16 %v261
        %v291 = vpack.c.b16 %v277, %v275
        %v292 = vpack.c.b16 %v278, %v276
        %v293 = vpack.c.b16 %v281, %v279
        %v294 = vpack.c.b16 %v282, %v280
        %v295 = vpack.c.b16 %v285, %v283
        %v296 = vpack.c.b16 %v286, %v284
        %v297 = vpack.c.b16 %v289, %v287
        %v298 = vpack.c.b16 %v290, %v288
        %vm307 = vcmask 523264
        %v309 = vsel %vm307, %v266, 0
        %311 = vmatpush.bf16.msra.mxu0 0
        %312 = vmatpush.bf16.msra.mxu0 0
        %313 = vmatpush.bf16.msra.mxu0 0
        %314 = vmatpush.bf16.msra.mxu0 0
        %315 = vmatpush.bf16.msra.mxu0 %v297
        %316 = vmatpush.bf16.msra.mxu0 %v295
        %317 = vmatpush.bf16.msra.mxu0 %v293
        %318 = vmatpush.bf16.msra.mxu0 %v291
        %319 = vmatmul.bf16.gmra.mxu0 %v309
        %v320 = vpop.f32.mrf.mxu0
        %v321 = vadd.f32 0.0, %v320
        %v322 = vpop.f32.mrf.mxu0
        %v323 = vadd.f32 0.0, %v322
        %324 = vdwg.mxu0
        %325 = vmatpush.bf16.msra.mxu0 0
        %326 = vmatpush.bf16.msra.mxu0 0
        %327 = vmatpush.bf16.msra.mxu0 0
        %328 = vmatpush.bf16.msra.mxu0 0
        %329 = vmatpush.bf16.msra.mxu0 %v298
        %330 = vmatpush.bf16.msra.mxu0 %v296
        %331 = vmatpush.bf16.msra.mxu0 %v294
        %332 = vmatpush.bf16.msra.mxu0 %v292
        %333 = vmatmul.bf16.gmra.mxu0 %v309
        %v334 = vpop.f32.mrf.mxu0
        %v335 = vadd.f32 0.0, %v334
        %v336 = vpop.f32.mrf.mxu0
        %v337 = vadd.f32 0.0, %v336
        %338 = vdwg.mxu0
        %v339 = vld [vmem:[%s3] sm:$0x1]
        %v341 = vperm.slane %v339, 0
        %343 = vst.msk [vmem:[#allocation2] sm:$0xff] %vm307, %v341
        %344 = vst.msk [vmem:[#allocation2 + $0x8] sm:$0xff] %vm307, %v341
        %v345 = vpack.c.bf16 %v321, %v321
        %v346 = vpack.c.bf16 %v323, %v323
        %v347 = vpack.c.bf16 %v335, %v335
        %v348 = vpack.c.bf16 %v337, %v337
        %v351 = vunpack.c.l.b16 %v345
        %v352 = vunpack.c.l.b16 %v346
        %v353 = vpack.c.b16 %v352, %v351
        %354 = vrot.lane.b32.xlu0 %v353, 64
        %v355 = vpop.permute.xlu0 %354
        %vm356 = vcmask 64512
        %v358 = vsel %vm356, %v353, 0
        %v361 = vsel %vm356, %v355, 0
        %363 = vmatpush.bf16.xpose.msra.mxu0 0
        %364 = vmatpush.bf16.xpose.msra.mxu0 0
        %365 = vmatpush.bf16.xpose.msra.mxu0 0
        %366 = vmatpush.bf16.xpose.msra.mxu0 0
        %367 = vmatpush.bf16.xpose.msra.mxu0 0
        %368 = vmatpush.bf16.xpose.msra.mxu0 0
        %369 = vmatpush.bf16.xpose.msra.mxu0 0
        %370 = vmatpush.bf16.xpose.msra.mxu0 %v361
        %371 = vmatmul.bf16.gmra.mxu0 %v358
        %v372 = vpop.f32.mrf.mxu0
        %v373 = vadd.f32 0.0, %v372
        %v374 = vpop.f32.mrf.mxu0
        %v375 = vadd.f32 0.0, %v374
        %376 = vdwg.mxu0
        %vm377 = vcmask 130048
        %v378 = vsel %vm377, %v373, -inf
        %379 = vmax.xlane.f32.xlu0 %v378
        %v380 = vpop.xlane.xlu0 %379
        %v381 = vsel %vm377, %v375, -inf
        %382 = vmax.xlane.f32.xlu0 %v381
        %v383 = vpop.xlane.xlu0 %382
        %v384 = vsub.f32 %v373, %v380
        %v385 = vsub.f32 %v375, %v383
        %v386 = vmul.f32 %v384, 1.442695
        %v387 = vpow.pop %v386
        %v388 = vmul.f32 %v385, 1.442695
        %v389 = vpow.pop %v388
        %v390 = vsel %vm377, %v387, 0.0
        %391 = vadd.xlane.f32.xlu0 %v390
        %v392 = vpop.xlane.xlu0 %391
        %v393 = vsel %vm377, %v389, 0.0
        %394 = vadd.xlane.f32.xlu0 %v393
        %v395 = vpop.xlane.xlu0 %394
        %v396 = vrcp.pop %v392
        %v397 = vrcp.pop %v395
        %v398 = vmul.f32 %v387, %v396
        %v399 = vmul.f32 %v389, %v397
        %v400 = vpack.c.bf16 %v398, %v398
        %v401 = vpack.c.bf16 %v399, %v399
        %v404 = vunpack.c.l.b16 %v400
        %v405 = vunpack.c.l.b16 %v401
        %v406 = vpack.c.b16 %v405, %v404
        %v409 = vunpack.c.l.b16 %v347
        %v410 = vunpack.c.l.b16 %v348
        %v411 = vpack.c.b16 %v410, %v409
        %v414 = vsel %vm377, %v406, 0
        %416 = vmatpush.bf16.msra.mxu0 0
        %417 = vmatpush.bf16.msra.mxu0 0
        %418 = vmatpush.bf16.msra.mxu0 0
        %419 = vmatpush.bf16.msra.mxu0 0
        %420 = vmatpush.bf16.msra.mxu0 0
        %421 = vmatpush.bf16.msra.mxu0 0
        %422 = vmatpush.bf16.msra.mxu0 0
        %423 = vmatpush.bf16.msra.mxu0 %v411
        %424 = vmatmul.bf16.gmra.mxu0 %v414
        %v425 = vpop.f32.mrf.mxu0
        %v426 = vadd.f32 0.0, %v425
        %v427 = vpop.f32.mrf.mxu0
        %v428 = vadd.f32 0.0, %v427
        %429 = vdwg.mxu0
        %v430 = vld [vmem:[#allocation2] sm:$0xff]
        %v431 = vld [vmem:[#allocation2 + $0x8] sm:$0xff]
        %v432 = vpack.c.bf16 %v428, %v426
        %v433 = vld [vmem:[#allocation8] sm:$0xf]
        %v435 = vsel %vm356, %v432, 0
        %vm437 = vcmask 1043456
        %v439 = vsel %vm437, %v433, 0
        %441 = vmatpush.bf16.msra.mxu0 0
        %442 = vmatpush.bf16.msra.mxu0 0
        %443 = vmatpush.bf16.msra.mxu0 0
        %444 = vmatpush.bf16.msra.mxu0 0
        %445 = vmatpush.bf16.msra.mxu0 0
        %446 = vmatpush.bf16.msra.mxu0 0
        %447 = vmatpush.bf16.msra.mxu0 0
        %448 = vmatpush.bf16.msra.mxu0 %v439
        %449 = vmatmul.bf16.gmra.mxu0 %v435
        %v450 = vpop.f32.mrf.mxu0
        %v451 = vadd.f32 0.0, %v450
        %v452 = vpop.f32.mrf.mxu0
        %v453 = vadd.f32 0.0, %v452
        %454 = vdwg.mxu0
        %v455 = vadd.f32 %v430, %v451
        %v456 = vadd.f32 %v431, %v453
        %457 = vst.msk [vmem:[#allocation2] sm:$0xff] %vm307, %v455
        %458 = vst.msk [vmem:[#allocation2 + $0x8] sm:$0xff] %vm307, %v456
        %459 = vrot.lane.b32.xlu0 %v353, 120
        %v460 = vpop.permute.xlu0 %459
        %461 = vrot.lane.b32.xlu0 %v353, 56
        %v462 = vpop.permute.xlu0 %461
        %v464 = vsel %vm356, %v460, 0
        %v467 = vsel %vm356, %v462, 0
        %469 = vmatpush.bf16.xpose.msra.mxu0 0
        %470 = vmatpush.bf16.xpose.msra.mxu0 0
        %471 = vmatpush.bf16.xpose.msra.mxu0 0
        %472 = vmatpush.bf16.xpose.msra.mxu0 0
        %473 = vmatpush.bf16.xpose.msra.mxu0 0
        %474 = vmatpush.bf16.xpose.msra.mxu0 0
        %475 = vmatpush.bf16.xpose.msra.mxu0 0
        %476 = vmatpush.bf16.xpose.msra.mxu0 %v467
        %477 = vmatmul.bf16.gmra.mxu0 %v464
        %v478 = vpop.f32.mrf.mxu0
        %v479 = vadd.f32 0.0, %v478
        %v480 = vpop.f32.mrf.mxu0
        %v481 = vadd.f32 0.0, %v480
        %482 = vdwg.mxu0
        %v483 = vsel %vm377, %v479, -inf
        %484 = vmax.xlane.f32.xlu0 %v483
        %v485 = vpop.xlane.xlu0 %484
        %v486 = vsel %vm377, %v481, -inf
        %487 = vmax.xlane.f32.xlu0 %v486
        %v488 = vpop.xlane.xlu0 %487
        %v489 = vsub.f32 %v479, %v485
        %v490 = vsub.f32 %v481, %v488
        %v491 = vmul.f32 %v489, 1.442695
        %v492 = vpow.pop %v491
        %v493 = vmul.f32 %v490, 1.442695
        %v494 = vpow.pop %v493
        %v495 = vsel %vm377, %v492, 0.0
        %496 = vadd.xlane.f32.xlu0 %v495
        %v497 = vpop.xlane.xlu0 %496
        %v498 = vsel %vm377, %v494, 0.0
        %499 = vadd.xlane.f32.xlu0 %v498
        %v500 = vpop.xlane.xlu0 %499
        %v501 = vrcp.pop %v497
        %v502 = vrcp.pop %v500
        %v503 = vmul.f32 %v492, %v501
        %v504 = vmul.f32 %v494, %v502
        %v505 = vpack.c.bf16 %v503, %v503
        %v506 = vpack.c.bf16 %v504, %v504
        %v509 = vunpack.c.l.b16 %v505
        %v510 = vunpack.c.l.b16 %v506
        %v511 = vpack.c.b16 %v510, %v509
        %512 = vrot.lane.b32.xlu0 %v411, 120
        %v513 = vpop.permute.xlu0 %512
        %v516 = vsel %vm377, %v511, 0
        %518 = vmatpush.bf16.msra.mxu0 0
        %519 = vmatpush.bf16.msra.mxu0 0
        %520 = vmatpush.bf16.msra.mxu0 0
        %521 = vmatpush.bf16.msra.mxu0 0
        %522 = vmatpush.bf16.msra.mxu0 0
        %523 = vmatpush.bf16.msra.mxu0 0
        %524 = vmatpush.bf16.msra.mxu0 0
        %525 = vmatpush.bf16.msra.mxu0 %v513
        %526 = vmatmul.bf16.gmra.mxu0 %v516
        %v527 = vpop.f32.mrf.mxu0
        %v528 = vadd.f32 0.0, %v527
        %v529 = vpop.f32.mrf.mxu0
        %v530 = vadd.f32 0.0, %v529
        %531 = vdwg.mxu0
        %v532 = vld [vmem:[#allocation2] sm:$0xff]
        %v533 = vld [vmem:[#allocation2 + $0x8] sm:$0xff]
        %v534 = vpack.c.bf16 %v530, %v528
        %s535 = scalar_lea.vmem [#allocation8], 4
        %v536 = vld [vmem:[%s535] sm:$0xf]
        %v538 = vsel %vm356, %v534, 0
        %v541 = vsel %vm437, %v536, 0
        %543 = vmatpush.bf16.msra.mxu0 0
        %544 = vmatpush.bf16.msra.mxu0 0
        %545 = vmatpush.bf16.msra.mxu0 0
        %546 = vmatpush.bf16.msra.mxu0 0
        %547 = vmatpush.bf16.msra.mxu0 0
        %548 = vmatpush.bf16.msra.mxu0 0
        %549 = vmatpush.bf16.msra.mxu0 0
        %550 = vmatpush.bf16.msra.mxu0 %v541
        %551 = vmatmul.bf16.gmra.mxu0 %v538
        %v552 = vpop.f32.mrf.mxu0
        %v553 = vadd.f32 0.0, %v552
        %v554 = vpop.f32.mrf.mxu0
        %v555 = vadd.f32 0.0, %v554
        %556 = vdwg.mxu0
        %v557 = vadd.f32 %v532, %v553
        %v558 = vadd.f32 %v533, %v555
        %559 = vst.msk [vmem:[#allocation2] sm:$0xff] %vm307, %v557
        %560 = vst.msk [vmem:[#allocation2 + $0x8] sm:$0xff] %vm307, %v558
        %561 = vrot.lane.b32.xlu0 %v353, 112
        %v562 = vpop.permute.xlu0 %561
        %563 = vrot.lane.b32.xlu0 %v353, 48
        %v564 = vpop.permute.xlu0 %563
        %v566 = vsel %vm356, %v562, 0
        %v569 = vsel %vm356, %v564, 0
        %571 = vmatpush.bf16.xpose.msra.mxu0 0
        %572 = vmatpush.bf16.xpose.msra.mxu0 0
        %573 = vmatpush.bf16.xpose.msra.mxu0 0
        %574 = vmatpush.bf16.xpose.msra.mxu0 0
        %575 = vmatpush.bf16.xpose.msra.mxu0 0
        %576 = vmatpush.bf16.xpose.msra.mxu0 0
        %577 = vmatpush.bf16.xpose.msra.mxu0 0
        %578 = vmatpush.bf16.xpose.msra.mxu0 %v569
        %579 = vmatmul.bf16.gmra.mxu0 %v566
        %v580 = vpop.f32.mrf.mxu0
        %v581 = vadd.f32 0.0, %v580
        %v582 = vpop.f32.mrf.mxu0
        %v583 = vadd.f32 0.0, %v582
        %584 = vdwg.mxu0
        %v585 = vsel %vm377, %v581, -inf
        %586 = vmax.xlane.f32.xlu0 %v585
        %v587 = vpop.xlane.xlu0 %586
        %v588 = vsel %vm377, %v583, -inf
        %589 = vmax.xlane.f32.xlu0 %v588
        %v590 = vpop.xlane.xlu0 %589
        %v591 = vsub.f32 %v581, %v587
        %v592 = vsub.f32 %v583, %v590
        %v593 = vmul.f32 %v591, 1.442695
        %v594 = vpow.pop %v593
        %v595 = vmul.f32 %v592, 1.442695
        %v596 = vpow.pop %v595
        %v597 = vsel %vm377, %v594, 0.0
        %598 = vadd.xlane.f32.xlu0 %v597
        %v599 = vpop.xlane.xlu0 %598
        %v600 = vsel %vm377, %v596, 0.0
        %601 = vadd.xlane.f32.xlu0 %v600
        %v602 = vpop.xlane.xlu0 %601
        %v603 = vrcp.pop %v599
        %v604 = vrcp.pop %v602
        %v605 = vmul.f32 %v594, %v603
        %v606 = vmul.f32 %v596, %v604
        %v607 = vpack.c.bf16 %v605, %v605
        %v608 = vpack.c.bf16 %v606, %v606
        %v611 = vunpack.c.l.b16 %v607
        %v612 = vunpack.c.l.b16 %v608
        %v613 = vpack.c.b16 %v612, %v611
        %614 = vrot.lane.b32.xlu0 %v411, 112
        %v615 = vpop.permute.xlu0 %614
        %v618 = vsel %vm377, %v613, 0
        %620 = vmatpush.bf16.msra.mxu0 0
        %621 = vmatpush.bf16.msra.mxu0 0
        %622 = vmatpush.bf16.msra.mxu0 0
        %623 = vmatpush.bf16.msra.mxu0 0
        %624 = vmatpush.bf16.msra.mxu0 0
        %625 = vmatpush.bf16.msra.mxu0 0
        %626 = vmatpush.bf16.msra.mxu0 0
        %627 = vmatpush.bf16.msra.mxu0 %v615
        %628 = vmatmul.bf16.gmra.mxu0 %v618
        %v629 = vpop.f32.mrf.mxu0
        %v630 = vadd.f32 0.0, %v629
        %v631 = vpop.f32.mrf.mxu0
        %v632 = vadd.f32 0.0, %v631
        %633 = vdwg.mxu0
        %v634 = vld [vmem:[#allocation2] sm:$0xff]
        %v635 = vld [vmem:[#allocation2 + $0x8] sm:$0xff]
        %v636 = vpack.c.bf16 %v632, %v630
        %s637 = scalar_lea.vmem [#allocation8], 8
        %v638 = vld [vmem:[%s637] sm:$0xf]
        %v640 = vsel %vm356, %v636, 0
        %v643 = vsel %vm437, %v638, 0
        %645 = vmatpush.bf16.msra.mxu0 0
        %646 = vmatpush.bf16.msra.mxu0 0
        %647 = vmatpush.bf16.msra.mxu0 0
        %648 = vmatpush.bf16.msra.mxu0 0
        %649 = vmatpush.bf16.msra.mxu0 0
        %650 = vmatpush.bf16.msra.mxu0 0
        %651 = vmatpush.bf16.msra.mxu0 0
        %652 = vmatpush.bf16.msra.mxu0 %v643
        %653 = vmatmul.bf16.gmra.mxu0 %v640
        %v654 = vpop.f32.mrf.mxu0
        %v655 = vadd.f32 0.0, %v654
        %v656 = vpop.f32.mrf.mxu0
        %v657 = vadd.f32 0.0, %v656
        %658 = vdwg.mxu0
        %v659 = vadd.f32 %v634, %v655
        %v660 = vadd.f32 %v635, %v657
        %661 = vst.msk [vmem:[#allocation2] sm:$0xff] %vm307, %v659
        %662 = vst.msk [vmem:[#allocation2 + $0x8] sm:$0xff] %vm307, %v660
        %663 = vrot.lane.b32.xlu0 %v353, 104
        %v664 = vpop.permute.xlu0 %663
        %665 = vrot.lane.b32.xlu0 %v353, 40
        %v666 = vpop.permute.xlu0 %665
        %v668 = vsel %vm356, %v664, 0
        %v671 = vsel %vm356, %v666, 0
        %673 = vmatpush.bf16.xpose.msra.mxu0 0
        %674 = vmatpush.bf16.xpose.msra.mxu0 0
        %675 = vmatpush.bf16.xpose.msra.mxu0 0
        %676 = vmatpush.bf16.xpose.msra.mxu0 0
        %677 = vmatpush.bf16.xpose.msra.mxu0 0
        %678 = vmatpush.bf16.xpose.msra.mxu0 0
        %679 = vmatpush.bf16.xpose.msra.mxu0 0
        %680 = vmatpush.bf16.xpose.msra.mxu0 %v671
        %681 = vmatmul.bf16.gmra.mxu0 %v668
        %v682 = vpop.f32.mrf.mxu0
        %v683 = vadd.f32 0.0, %v682
        %v684 = vpop.f32.mrf.mxu0
        %v685 = vadd.f32 0.0, %v684
        %686 = vdwg.mxu0
        %v687 = vsel %vm377, %v683, -inf
        %688 = vmax.xlane.f32.xlu0 %v687
        %v689 = vpop.xlane.xlu0 %688
        %v690 = vsel %vm377, %v685, -inf
        %691 = vmax.xlane.f32.xlu0 %v690
        %v692 = vpop.xlane.xlu0 %691
        %v693 = vsub.f32 %v683, %v689
        %v694 = vsub.f32 %v685, %v692
        %v695 = vmul.f32 %v693, 1.442695
        %v696 = vpow.pop %v695
        %v697 = vmul.f32 %v694, 1.442695
        %v698 = vpow.pop %v697
        %v699 = vsel %vm377, %v696, 0.0
        %700 = vadd.xlane.f32.xlu0 %v699
        %v701 = vpop.xlane.xlu0 %700
        %v702 = vsel %vm377, %v698, 0.0
        %703 = vadd.xlane.f32.xlu0 %v702
        %v704 = vpop.xlane.xlu0 %703
        %v705 = vrcp.pop %v701
        %v706 = vrcp.pop %v704
        %v707 = vmul.f32 %v696, %v705
        %v708 = vmul.f32 %v698, %v706
        %v709 = vpack.c.bf16 %v707, %v707
        %v710 = vpack.c.bf16 %v708, %v708
        %v713 = vunpack.c.l.b16 %v709
        %v714 = vunpack.c.l.b16 %v710
        %v715 = vpack.c.b16 %v714, %v713
        %716 = vrot.lane.b32.xlu0 %v411, 104
        %v717 = vpop.permute.xlu0 %716
        %v720 = vsel %vm377, %v715, 0
        %722 = vmatpush.bf16.msra.mxu0 0
        %723 = vmatpush.bf16.msra.mxu0 0
        %724 = vmatpush.bf16.msra.mxu0 0
        %725 = vmatpush.bf16.msra.mxu0 0
        %726 = vmatpush.bf16.msra.mxu0 0
        %727 = vmatpush.bf16.msra.mxu0 0
        %728 = vmatpush.bf16.msra.mxu0 0
        %729 = vmatpush.bf16.msra.mxu0 %v717
        %730 = vmatmul.bf16.gmra.mxu0 %v720
        %v731 = vpop.f32.mrf.mxu0
        %v732 = vadd.f32 0.0, %v731
        %v733 = vpop.f32.mrf.mxu0
        %v734 = vadd.f32 0.0, %v733
        %735 = vdwg.mxu0
        %v736 = vld [vmem:[#allocation2] sm:$0xff]
        %v737 = vld [vmem:[#allocation2 + $0x8] sm:$0xff]
        %v738 = vpack.c.bf16 %v734, %v732
        %s739 = scalar_lea.vmem [#allocation8], 12
        %v740 = vld [vmem:[%s739] sm:$0xf]
        %v742 = vsel %vm356, %v738, 0
        %v745 = vsel %vm437, %v740, 0
        %747 = vmatpush.bf16.msra.mxu0 0
        %748 = vmatpush.bf16.msra.mxu0 0
        %749 = vmatpush.bf16.msra.mxu0 0
        %750 = vmatpush.bf16.msra.mxu0 0
        %751 = vmatpush.bf16.msra.mxu0 0
        %752 = vmatpush.bf16.msra.mxu0 0
        %753 = vmatpush.bf16.msra.mxu0 0
        %754 = vmatpush.bf16.msra.mxu0 %v745
        %755 = vmatmul.bf16.gmra.mxu0 %v742
        %v756 = vpop.f32.mrf.mxu0
        %v757 = vadd.f32 0.0, %v756
        %v758 = vpop.f32.mrf.mxu0
        %v759 = vadd.f32 0.0, %v758
        %760 = vdwg.mxu0
        %v761 = vadd.f32 %v736, %v757
        %v762 = vadd.f32 %v737, %v759
        %763 = vst.msk [vmem:[#allocation2] sm:$0xff] %vm307, %v761
        %764 = vst.msk [vmem:[#allocation2 + $0x8] sm:$0xff] %vm307, %v762
        %765 = vrot.lane.b32.xlu0 %v353, 96
        %v766 = vpop.permute.xlu0 %765
        %767 = vrot.lane.b32.xlu0 %v353, 32
        %v768 = vpop.permute.xlu0 %767
        %v770 = vsel %vm356, %v766, 0
        %v773 = vsel %vm356, %v768, 0
        %775 = vmatpush.bf16.xpose.msra.mxu0 0
        %776 = vmatpush.bf16.xpose.msra.mxu0 0
        %777 = vmatpush.bf16.xpose.msra.mxu0 0
        %778 = vmatpush.bf16.xpose.msra.mxu0 0
        %779 = vmatpush.bf16.xpose.msra.mxu0 0
        %780 = vmatpush.bf16.xpose.msra.mxu0 0
        %781 = vmatpush.bf16.xpose.msra.mxu0 0
        %782 = vmatpush.bf16.xpose.msra.mxu0 %v773
        %783 = vmatmul.bf16.gmra.mxu0 %v770
        %v784 = vpop.f32.mrf.mxu0
        %v785 = vadd.f32 0.0, %v784
        %v786 = vpop.f32.mrf.mxu0
        %v787 = vadd.f32 0.0, %v786
        %788 = vdwg.mxu0
        %v789 = vsel %vm377, %v785, -inf
        %790 = vmax.xlane.f32.xlu0 %v789
        %v791 = vpop.xlane.xlu0 %790
        %v792 = vsel %vm377, %v787, -inf
        %793 = vmax.xlane.f32.xlu0 %v792
        %v794 = vpop.xlane.xlu0 %793
        %v795 = vsub.f32 %v785, %v791
        %v796 = vsub.f32 %v787, %v794
        %v797 = vmul.f32 %v795, 1.442695
        %v798 = vpow.pop %v797
        %v799 = vmul.f32 %v796, 1.442695
        %v800 = vpow.pop %v799
        %v801 = vsel %vm377, %v798, 0.0
        %802 = vadd.xlane.f32.xlu0 %v801
        %v803 = vpop.xlane.xlu0 %802
        %v804 = vsel %vm377, %v800, 0.0
        %805 = vadd.xlane.f32.xlu0 %v804
        %v806 = vpop.xlane.xlu0 %805
        %v807 = vrcp.pop %v803
        %v808 = vrcp.pop %v806
        %v809 = vmul.f32 %v798, %v807
        %v810 = vmul.f32 %v800, %v808
        %v811 = vpack.c.bf16 %v809, %v809
        %v812 = vpack.c.bf16 %v810, %v810
        %v815 = vunpack.c.l.b16 %v811
        %v816 = vunpack.c.l.b16 %v812
        %v817 = vpack.c.b16 %v816, %v815
        %818 = vrot.lane.b32.xlu0 %v411, 96
        %v819 = vpop.permute.xlu0 %818
        %v822 = vsel %vm377, %v817, 0
        %824 = vmatpush.bf16.msra.mxu0 0
        %825 = vmatpush.bf16.msra.mxu0 0
        %826 = vmatpush.bf16.msra.mxu0 0
        %827 = vmatpush.bf16.msra.mxu0 0
        %828 = vmatpush.bf16.msra.mxu0 0
        %829 = vmatpush.bf16.msra.mxu0 0
        %830 = vmatpush.bf16.msra.mxu0 0
        %831 = vmatpush.bf16.msra.mxu0 %v819
        %832 = vmatmul.bf16.gmra.mxu0 %v822
        %v833 = vpop.f32.mrf.mxu0
        %v834 = vadd.f32 0.0, %v833
        %v835 = vpop.f32.mrf.mxu0
        %v836 = vadd.f32 0.0, %v835
        %837 = vdwg.mxu0
        %v838 = vld [vmem:[#allocation2] sm:$0xff]
        %v839 = vld [vmem:[#allocation2 + $0x8] sm:$0xff]
        %v840 = vpack.c.bf16 %v836, %v834
        %s841 = scalar_lea.vmem [#allocation8], 16
        %v842 = vld [vmem:[%s841] sm:$0xf]
        %v844 = vsel %vm356, %v840, 0
        %v847 = vsel %vm437, %v842, 0
        %849 = vmatpush.bf16.msra.mxu0 0
        %850 = vmatpush.bf16.msra.mxu0 0
        %851 = vmatpush.bf16.msra.mxu0 0
        %852 = vmatpush.bf16.msra.mxu0 0
        %853 = vmatpush.bf16.msra.mxu0 0
        %854 = vmatpush.bf16.msra.mxu0 0
        %855 = vmatpush.bf16.msra.mxu0 0
        %856 = vmatpush.bf16.msra.mxu0 %v847
        %857 = vmatmul.bf16.gmra.mxu0 %v844
        %v858 = vpop.f32.mrf.mxu0
        %v859 = vadd.f32 0.0, %v858
        %v860 = vpop.f32.mrf.mxu0
        %v861 = vadd.f32 0.0, %v860
        %862 = vdwg.mxu0
        %v863 = vadd.f32 %v838, %v859
        %v864 = vadd.f32 %v839, %v861
        %865 = vst.msk [vmem:[#allocation2] sm:$0xff] %vm307, %v863
        %866 = vst.msk [vmem:[#allocation2 + $0x8] sm:$0xff] %vm307, %v864
        %867 = vrot.lane.b32.xlu0 %v353, 88
        %v868 = vpop.permute.xlu0 %867
        %869 = vrot.lane.b32.xlu0 %v353, 24
        %v870 = vpop.permute.xlu0 %869
        %v872 = vsel %vm356, %v868, 0
        %v875 = vsel %vm356, %v870, 0
        %877 = vmatpush.bf16.xpose.msra.mxu0 0
        %878 = vmatpush.bf16.xpose.msra.mxu0 0
        %879 = vmatpush.bf16.xpose.msra.mxu0 0
        %880 = vmatpush.bf16.xpose.msra.mxu0 0
        %881 = vmatpush.bf16.xpose.msra.mxu0 0
        %882 = vmatpush.bf16.xpose.msra.mxu0 0
        %883 = vmatpush.bf16.xpose.msra.mxu0 0
        %884 = vmatpush.bf16.xpose.msra.mxu0 %v875
        %885 = vmatmul.bf16.gmra.mxu0 %v872
        %v886 = vpop.f32.mrf.mxu0
        %v887 = vadd.f32 0.0, %v886
        %v888 = vpop.f32.mrf.mxu0
        %v889 = vadd.f32 0.0, %v888
        %890 = vdwg.mxu0
        %v891 = vsel %vm377, %v887, -inf
        %892 = vmax.xlane.f32.xlu0 %v891
        %v893 = vpop.xlane.xlu0 %892
        %v894 = vsel %vm377, %v889, -inf
        %895 = vmax.xlane.f32.xlu0 %v894
        %v896 = vpop.xlane.xlu0 %895
        %v897 = vsub.f32 %v887, %v893
        %v898 = vsub.f32 %v889, %v896
        %v899 = vmul.f32 %v897, 1.442695
        %v900 = vpow.pop %v899
        %v901 = vmul.f32 %v898, 1.442695
        %v902 = vpow.pop %v901
        %v903 = vsel %vm377, %v900, 0.0
        %904 = vadd.xlane.f32.xlu0 %v903
        %v905 = vpop.xlane.xlu0 %904
        %v906 = vsel %vm377, %v902, 0.0
        %907 = vadd.xlane.f32.xlu0 %v906
        %v908 = vpop.xlane.xlu0 %907
        %v909 = vrcp.pop %v905
        %v910 = vrcp.pop %v908
        %v911 = vmul.f32 %v900, %v909
        %v912 = vmul.f32 %v902, %v910
        %v913 = vpack.c.bf16 %v911, %v911
        %v914 = vpack.c.bf16 %v912, %v912
        %v917 = vunpack.c.l.b16 %v913
        %v918 = vunpack.c.l.b16 %v914
        %v919 = vpack.c.b16 %v918, %v917
        %920 = vrot.lane.b32.xlu0 %v411, 88
        %v921 = vpop.permute.xlu0 %920
        %v924 = vsel %vm377, %v919, 0
        %926 = vmatpush.bf16.msra.mxu0 0
        %927 = vmatpush.bf16.msra.mxu0 0
        %928 = vmatpush.bf16.msra.mxu0 0
        %929 = vmatpush.bf16.msra.mxu0 0
        %930 = vmatpush.bf16.msra.mxu0 0
        %931 = vmatpush.bf16.msra.mxu0 0
        %932 = vmatpush.bf16.msra.mxu0 0
        %933 = vmatpush.bf16.msra.mxu0 %v921
        %934 = vmatmul.bf16.gmra.mxu0 %v924
        %v935 = vpop.f32.mrf.mxu0
        %v936 = vadd.f32 0.0, %v935
        %v937 = vpop.f32.mrf.mxu0
        %v938 = vadd.f32 0.0, %v937
        %939 = vdwg.mxu0
        %v940 = vld [vmem:[#allocation2] sm:$0xff]
        %v941 = vld [vmem:[#allocation2 + $0x8] sm:$0xff]
        %v942 = vpack.c.bf16 %v938, %v936
        %s943 = scalar_lea.vmem [#allocation8], 20
        %v944 = vld [vmem:[%s943] sm:$0xf]
        %v946 = vsel %vm356, %v942, 0
        %v949 = vsel %vm437, %v944, 0
        %951 = vmatpush.bf16.msra.mxu0 0
        %952 = vmatpush.bf16.msra.mxu0 0
        %953 = vmatpush.bf16.msra.mxu0 0
        %954 = vmatpush.bf16.msra.mxu0 0
        %955 = vmatpush.bf16.msra.mxu0 0
        %956 = vmatpush.bf16.msra.mxu0 0
        %957 = vmatpush.bf16.msra.mxu0 0
        %958 = vmatpush.bf16.msra.mxu0 %v949
        %959 = vmatmul.bf16.gmra.mxu0 %v946
        %v960 = vpop.f32.mrf.mxu0
        %v961 = vadd.f32 0.0, %v960
        %v962 = vpop.f32.mrf.mxu0
        %v963 = vadd.f32 0.0, %v962
        %964 = vdwg.mxu0
        %v965 = vadd.f32 %v940, %v961
        %v966 = vadd.f32 %v941, %v963
        %967 = vst.msk [vmem:[#allocation2] sm:$0xff] %vm307, %v965
        %968 = vst.msk [vmem:[#allocation2 + $0x8] sm:$0xff] %vm307, %v966
        %969 = vrot.lane.b32.xlu0 %v353, 80
        %v970 = vpop.permute.xlu0 %969
        %971 = vrot.lane.b32.xlu0 %v353, 16
        %v972 = vpop.permute.xlu0 %971
        %v974 = vsel %vm356, %v970, 0
        %v977 = vsel %vm356, %v972, 0
        %979 = vmatpush.bf16.xpose.msra.mxu0 0
        %980 = vmatpush.bf16.xpose.msra.mxu0 0
        %981 = vmatpush.bf16.xpose.msra.mxu0 0
        %982 = vmatpush.bf16.xpose.msra.mxu0 0
        %983 = vmatpush.bf16.xpose.msra.mxu0 0
        %984 = vmatpush.bf16.xpose.msra.mxu0 0
        %985 = vmatpush.bf16.xpose.msra.mxu0 0
        %986 = vmatpush.bf16.xpose.msra.mxu0 %v977
        %987 = vmatmul.bf16.gmra.mxu0 %v974
        %v988 = vpop.f32.mrf.mxu0
        %v989 = vadd.f32 0.0, %v988
        %v990 = vpop.f32.mrf.mxu0
        %v991 = vadd.f32 0.0, %v990
        %992 = vdwg.mxu0
        %v993 = vsel %vm377, %v989, -inf
        %994 = vmax.xlane.f32.xlu0 %v993
        %v995 = vpop.xlane.xlu0 %994
        %v996 = vsel %vm377, %v991, -inf
        %997 = vmax.xlane.f32.xlu0 %v996
        %v998 = vpop.xlane.xlu0 %997
        %v999 = vsub.f32 %v989, %v995
        %v1000 = vsub.f32 %v991, %v998
        %v1001 = vmul.f32 %v999, 1.442695
        %v1002 = vpow.pop %v1001
        %v1003 = vmul.f32 %v1000, 1.442695
        %v1004 = vpow.pop %v1003
        %v1005 = vsel %vm377, %v1002, 0.0
        %1006 = vadd.xlane.f32.xlu0 %v1005
        %v1007 = vpop.xlane.xlu0 %1006
        %v1008 = vsel %vm377, %v1004, 0.0
        %1009 = vadd.xlane.f32.xlu0 %v1008
        %v1010 = vpop.xlane.xlu0 %1009
        %v1011 = vrcp.pop %v1007
        %v1012 = vrcp.pop %v1010
        %v1013 = vmul.f32 %v1002, %v1011
        %v1014 = vmul.f32 %v1004, %v1012
        %v1015 = vpack.c.bf16 %v1013, %v1013
        %v1016 = vpack.c.bf16 %v1014, %v1014
        %v1019 = vunpack.c.l.b16 %v1015
        %v1020 = vunpack.c.l.b16 %v1016
        %v1021 = vpack.c.b16 %v1020, %v1019
        %1022 = vrot.lane.b32.xlu0 %v411, 80
        %v1023 = vpop.permute.xlu0 %1022
        %v1026 = vsel %vm377, %v1021, 0
        %1028 = vmatpush.bf16.msra.mxu0 0
        %1029 = vmatpush.bf16.msra.mxu0 0
        %1030 = vmatpush.bf16.msra.mxu0 0
        %1031 = vmatpush.bf16.msra.mxu0 0
        %1032 = vmatpush.bf16.msra.mxu0 0
        %1033 = vmatpush.bf16.msra.mxu0 0
        %1034 = vmatpush.bf16.msra.mxu0 0
        %1035 = vmatpush.bf16.msra.mxu0 %v1023
        %1036 = vmatmul.bf16.gmra.mxu0 %v1026
        %v1037 = vpop.f32.mrf.mxu0
        %v1038 = vadd.f32 0.0, %v1037
        %v1039 = vpop.f32.mrf.mxu0
        %v1040 = vadd.f32 0.0, %v1039
        %1041 = vdwg.mxu0
        %v1042 = vld [vmem:[#allocation2] sm:$0xff]
        %v1043 = vld [vmem:[#allocation2 + $0x8] sm:$0xff]
        %v1044 = vpack.c.bf16 %v1040, %v1038
        %s1045 = scalar_lea.vmem [#allocation8], 24
        %v1046 = vld [vmem:[%s1045] sm:$0xf]
        %v1048 = vsel %vm356, %v1044, 0
        %v1051 = vsel %vm437, %v1046, 0
        %1053 = vmatpush.bf16.msra.mxu0 0
        %1054 = vmatpush.bf16.msra.mxu0 0
        %1055 = vmatpush.bf16.msra.mxu0 0
        %1056 = vmatpush.bf16.msra.mxu0 0
        %1057 = vmatpush.bf16.msra.mxu0 0
        %1058 = vmatpush.bf16.msra.mxu0 0
        %1059 = vmatpush.bf16.msra.mxu0 0
        %1060 = vmatpush.bf16.msra.mxu0 %v1051
        %1061 = vmatmul.bf16.gmra.mxu0 %v1048
        %v1062 = vpop.f32.mrf.mxu0
        %v1063 = vadd.f32 0.0, %v1062
        %v1064 = vpop.f32.mrf.mxu0
        %v1065 = vadd.f32 0.0, %v1064
        %1066 = vdwg.mxu0
        %v1067 = vadd.f32 %v1042, %v1063
        %v1068 = vadd.f32 %v1043, %v1065
        %1069 = vst.msk [vmem:[#allocation2] sm:$0xff] %vm307, %v1067
        %1070 = vst.msk [vmem:[#allocation2 + $0x8] sm:$0xff] %vm307, %v1068
        %1071 = vrot.lane.b32.xlu0 %v353, 72
        %v1072 = vpop.permute.xlu0 %1071
        %1073 = vrot.lane.b32.xlu0 %v353, 8
        %v1074 = vpop.permute.xlu0 %1073
        %v1076 = vsel %vm356, %v1072, 0
        %v1079 = vsel %vm356, %v1074, 0
        %1081 = vmatpush.bf16.xpose.msra.mxu0 0
        %1082 = vmatpush.bf16.xpose.msra.mxu0 0
        %1083 = vmatpush.bf16.xpose.msra.mxu0 0
        %1084 = vmatpush.bf16.xpose.msra.mxu0 0
        %1085 = vmatpush.bf16.xpose.msra.mxu0 0
        %1086 = vmatpush.bf16.xpose.msra.mxu0 0
        %1087 = vmatpush.bf16.xpose.msra.mxu0 0
        %1088 = vmatpush.bf16.xpose.msra.mxu0 %v1079
        %1089 = vmatmul.bf16.gmra.mxu0 %v1076
        %v1090 = vpop.f32.mrf.mxu0
        %v1091 = vadd.f32 0.0, %v1090
        %v1092 = vpop.f32.mrf.mxu0
        %v1093 = vadd.f32 0.0, %v1092
        %1094 = vdwg.mxu0
        %v1095 = vsel %vm377, %v1091, -inf
        %1096 = vmax.xlane.f32.xlu0 %v1095
        %v1097 = vpop.xlane.xlu0 %1096
        %v1098 = vsel %vm377, %v1093, -inf
        %1099 = vmax.xlane.f32.xlu0 %v1098
        %v1100 = vpop.xlane.xlu0 %1099
        %v1101 = vsub.f32 %v1091, %v1097
        %v1102 = vsub.f32 %v1093, %v1100
        %v1103 = vmul.f32 %v1101, 1.442695
        %v1104 = vpow.pop %v1103
        %v1105 = vmul.f32 %v1102, 1.442695
        %v1106 = vpow.pop %v1105
        %v1107 = vsel %vm377, %v1104, 0.0
        %1108 = vadd.xlane.f32.xlu0 %v1107
        %v1109 = vpop.xlane.xlu0 %1108
        %v1110 = vsel %vm377, %v1106, 0.0
        %1111 = vadd.xlane.f32.xlu0 %v1110
        %v1112 = vpop.xlane.xlu0 %1111
        %v1113 = vrcp.pop %v1109
        %v1114 = vrcp.pop %v1112
        %v1115 = vmul.f32 %v1104, %v1113
        %v1116 = vmul.f32 %v1106, %v1114
        %v1117 = vpack.c.bf16 %v1115, %v1115
        %v1118 = vpack.c.bf16 %v1116, %v1116
        %v1121 = vunpack.c.l.b16 %v1117
        %v1122 = vunpack.c.l.b16 %v1118
        %v1123 = vpack.c.b16 %v1122, %v1121
        %1124 = vrot.lane.b32.xlu0 %v411, 72
        %v1125 = vpop.permute.xlu0 %1124
        %v1128 = vsel %vm377, %v1123, 0
        %1130 = vmatpush.bf16.msra.mxu0 0
        %1131 = vmatpush.bf16.msra.mxu0 0
        %1132 = vmatpush.bf16.msra.mxu0 0
        %1133 = vmatpush.bf16.msra.mxu0 0
        %1134 = vmatpush.bf16.msra.mxu0 0
        %1135 = vmatpush.bf16.msra.mxu0 0
        %1136 = vmatpush.bf16.msra.mxu0 0
        %1137 = vmatpush.bf16.msra.mxu0 %v1125
        %1138 = vmatmul.bf16.gmra.mxu0 %v1128
        %v1139 = vpop.f32.mrf.mxu0
        %v1140 = vadd.f32 0.0, %v1139
        %v1141 = vpop.f32.mrf.mxu0
        %v1142 = vadd.f32 0.0, %v1141
        %1143 = vdwg.mxu0
        %v1144 = vld [vmem:[#allocation2] sm:$0xff]
        %v1145 = vld [vmem:[#allocation2 + $0x8] sm:$0xff]
        %v1146 = vpack.c.bf16 %v1142, %v1140
        %s1147 = scalar_lea.vmem [#allocation8], 28
        %v1148 = vld [vmem:[%s1147] sm:$0xf]
        %v1150 = vsel %vm356, %v1146, 0
        %v1153 = vsel %vm437, %v1148, 0
        %1155 = vmatpush.bf16.msra.mxu0 0
        %1156 = vmatpush.bf16.msra.mxu0 0
        %1157 = vmatpush.bf16.msra.mxu0 0
        %1158 = vmatpush.bf16.msra.mxu0 0
        %1159 = vmatpush.bf16.msra.mxu0 0
        %1160 = vmatpush.bf16.msra.mxu0 0
        %1161 = vmatpush.bf16.msra.mxu0 0
        %1162 = vmatpush.bf16.msra.mxu0 %v1153
        %1163 = vmatmul.bf16.gmra.mxu0 %v1150
        %v1164 = vpop.f32.mrf.mxu0
        %v1165 = vadd.f32 0.0, %v1164
        %v1166 = vpop.f32.mrf.mxu0
        %v1167 = vadd.f32 0.0, %v1166
        %1168 = vdwg.mxu0
        %v1169 = vadd.f32 %v1144, %v1165
        %v1170 = vadd.f32 %v1145, %v1167
        %1171 = vst.msk [vmem:[#allocation2] sm:$0xff] %vm307, %v1169
        %1172 = vst.msk [vmem:[#allocation2 + $0x8] sm:$0xff] %vm307, %v1170
        %v1173 = vld [vmem:[#allocation2] sm:$0xff]
        %v1174 = vld [vmem:[#allocation2 + $0x8] sm:$0xff]
        %1175 = vst.msk [vmem:[%s250] sm:$0xff] %vm307, %v1173
        %1176 = vst.msk [vmem:[%s250 + $0x8] sm:$0xff] %vm307, %v1174
        %s1177 = sand.u32 %s119, 1
        %s1178 = scalar_lea.sflag [#allocation5], %s1177
        %s1179 = sand.u32 %s119, 1
        %s1180 = smul.addr %s1179, 16
        %s1181 = scalar_lea.vmem [#allocation9], %s1180
        // Predicated region
        $region49: #{tpu_custom_call.1} parent=35 // pred_check
          %p1182 = pneg %p129
        $region50: #{tpu_custom_call.1} parent=35 // pred_check_branch
          %1184 = sbr.rel (%p1182) target = $region52
        $region51: #{tpu_custom_call.1} parent=35 // pred_region
          %1186 = vsyncadd %s1178, 0
          %s1187 = smul.addr %s22, 2
          %s1188 = smul.addr %s1187, 8
          %s1189 = scalar_lea.hbm %s4, %s1188
          %s1190 = sshll.u32 %s1181, 4
          %s1191 = int_to_ptr.vmem [resolvable:$true] %s1190
          %s1192 = sshll.u32 %s1189, 4
          %s1193 = int_to_ptr.hbm [resolvable:$true] %s1192
          %1198 = dma.vmem_to_hbm [thread:$0]  %s1191, 256, %s1193, %s1178, 128, 128, 8
        $region52: #{tpu_custom_call.1} parent=35 // pred_fallthru
          _
      $region36: #{tpu_custom_call.1} parent=5 // pred_fallthru
        _
      %p1199 = scmp.le.s32.totalorder 2, %s17
      // Predicated region
      $region53: #{tpu_custom_call.1} parent=5 // pred_check
        %p1200 = pneg %p1199
      $region54: #{tpu_custom_call.1} parent=5 // pred_check_branch
        %1202 = sbr.rel (%p1200) target = $region56
      $region55: #{tpu_custom_call.1} parent=5 // pred_region
        %s1203 = ssub.s32 %s17, 2
        // Predicated region
        $region57: #{tpu_custom_call.1} parent=55 // pred_check
          %p1204 = pneg %p135
        $region58: #{tpu_custom_call.1} parent=55 // pred_check_branch
          %1206 = sbr.rel (%p1204) target = $region60
        $region59: #{tpu_custom_call.1} parent=55 // pred_region
          %s1207 = sand.u32 %s120, 1
          %s1208 = scalar_lea.sflag [#allocation5], %s1207
          %s1209 = sand.u32 %s120, 1
          %s1210 = smul.addr %s1209, 16
          %s1211 = scalar_lea.vmem [#allocation9], %s1210
          %1213 = dma.done %s1208, 256
        $region60: #{tpu_custom_call.1} parent=55 // pred_fallthru
          _
      $region56: #{tpu_custom_call.1} parent=5 // pred_fallthru
        _
    $region6: #{tpu_custom_call.1} parent=1 // loop_footer
      %s21 = sadd.s32 1, %s17
    $region7: #{tpu_custom_call.1} parent=1 // loop_footer_branch
      %16 = sbr.rel target = $region3
    $region8: #{tpu_custom_call.1} parent=1 // loop_exit
      _
    %1214 = vsyncpa [#allocation4], 1
    %s1215 = scalar_lea.sflag [#allocation4], 1
    %1216 = vsyncpa %s1215, 1
    %1217 = vsyncpa [#allocation7], 1
    %1218 = vsyncpa [#allocation5], 1
    %s1219 = scalar_lea.sflag [#allocation5], 1
    %1220 = vsyncpa %s1219, 1

// kernel: tpu_custom_call.1
$region0: #{tpu_custom_call.1}
  #allocation0 [shape = 'u32[]', space=smem, size = 0x4, offset = 0x4, fixed_abs, tag = 'smem constant byte address 0x4 - core index']
  #allocation1 [shape = 'u32[72,128]{1,0:T(1,128)}', space=vmem, size = 0x9000, scoped, tag = 'internal scratch']
  #allocation2 [shape = 'f32[16,64]{1,0:T(8,128)}', space=vmem, size = 0x2000, scoped, tag = 'scratch operand']
  %s0 = inlined_call_operand.hbm [shape: bf16[2,16,64], index: 0, kind: input, shape index: {}]
  %s1 = inlined_call_operand.hbm [shape: bf16[64,192], index: 1, kind: input, shape index: {}]
  %s2 = inlined_call_operand.hbm [shape: bf16[8,8,64], index: 2, kind: input, shape index: {}]
  %s3 = inlined_call_operand.vmem [shape: f32[1,64], index: 3, kind: input, shape index: {}]
  %s4 = inlined_call_operand.hbm [shape: f32[2,16,64], index: 4, kind: output, shape index: {}]
  %s5 = sld [smem:[#allocation0]]
  $region61: #{tpu_custom_call.1} parent=0
    _
  %s7 = ssub.s32 1, %s5
  %s8 = scalar_select 0, %s7, %s5
  $region1: #{tpu_custom_call.1} parent=0
    #allocation3 [shape = 'u8[8192]{0}', space=vmem, size = 0x2000, scoped, tag = 'input window, operand 0']
    #allocation4 [shape = 's32[2]{0}', space=sflag, size = 0x8, scoped, tag = 'scoped memory for tpu_custom_call.1']
    #allocation5 [shape = 's32[2]{0}', space=sflag, size = 0x8, scoped, tag = 'scoped memory for tpu_custom_call.1']
    #allocation6 [shape = 'u8[32768]{0}', space=vmem, size = 0x8000, scoped, tag = 'input window, operand 1, single buffered']
    #allocation7 [shape = 's32[1]{0}', space=sflag, size = 0x4, scoped, tag = 'scoped memory for tpu_custom_call.1']
    #allocation8 [shape = 'u8[16384]{0}', space=vmem, size = 0x4000, scoped, tag = 'input window, operand 2, single buffered']
    #allocation9 [shape = 'u8[16384]{0}', space=vmem, size = 0x4000, scoped, tag = 'output window, operand 0']
    %9 = vsyncpa [#allocation4], 0
    %s10 = scalar_lea.sflag [#allocation4], 1
    %11 = vsyncpa %s10, 0
    %12 = vsyncpa [#allocation7], 0
    %13 = vsyncpa [#allocation5], 0
    %s14 = scalar_lea.sflag [#allocation5], 1
    %15 = vsyncpa %s14, 0
    loop: start=0, step=1, limit=4
    $region2: #{tpu_custom_call.1} parent=1 // loop_pre_header
      _
    $region3: #{tpu_custom_call.1} parent=1 // loop_header
      %s17 = sphi 0, %s21
      %p18 = scmp.ge.s32.totalorder %s17, 4
      %s27 = sphi 0, %s29
      %s30 = sphi 0, %s27
      %s31 = sphi 0, %s30
      %s47 = sphi 0, %s31
      %s51 = sphi 0, %s51
      %s53 = sphi 0, %s51
      %s54 = sphi 0, %s53
      %s68 = sphi 0, %s54
      %s72 = sphi 0, %s72
      %s74 = sphi 0, %s72
      %s75 = sphi 0, %s74
      %s89 = sphi 0, %s75
      %s93 = sphi 0, %s93
      %s95 = sphi 0, %s93
      %s96 = sphi 0, %s95
      %s110 = sphi 0, %s96
      %s116 = sphi 0, %s118
      %s119 = sphi 0, %s116
      %s120 = sphi 0, %s119
      %s136 = sphi 0, %s120
    $region4: #{tpu_custom_call.1} parent=1 // loop_header_branch
      %20 = sbr.rel (%p18) target = $region8
    $region5: #{tpu_custom_call.1} parent=1 // loop_body
      %s22 = ssub.s32 %s17, 1
      %s23 = ssub.s32 %s17, 2
      %s24 = sadd.s32 %s17, 1
      %s25 = ssub.s32 %s17, %s24
      %p26 = scmp.eq.s32.totalorder %s25, 0
      %s28 = sadd.s32 %s27, 1
      %s29 = scalar_select %p26, %s27, %s28
      %p32 = pneg %p26
      %p33 = scmp.eq.s32.totalorder %s17, 1
      %p34 = por %p32, %p33
      %p35 = scmp.ne.s32.totalorder %s27, %s30
      %p36 = scmp.eq.s32.totalorder %s17, 0
      %p37 = por %p35, %p36
      %p38 = scmp.ne.s32.totalorder %s27, %s30
      %p39 = scmp.eq.s32.totalorder %s22, 1
      %p40 = por %p38, %p39
      %p41 = scmp.ne.s32.totalorder %s30, %s31
      %p42 = scmp.eq.s32.totalorder %s22, 0
      %p43 = por %p41, %p42
      %p44 = scmp.ne.s32.totalorder %s30, %s31
      %p45 = scmp.eq.s32.totalorder %s23, 1
      %p46 = por %p44, %p45
      %p48 = scmp.ne.s32.totalorder %s31, %s47
      %p49 = scmp.eq.s32.totalorder %s23, 0
      %p50 = por %p48, %p49
      %s52 = sadd.s32 %s51, 1
      %p55 = scmp.eq.s32.totalorder %s17, 1
      %p56 = scmp.ne.s32.totalorder %s51, %s53
      %p57 = scmp.eq.s32.totalorder %s17, 0
      %p58 = por %p56, %p57
      %p59 = scmp.ne.s32.totalorder %s51, %s53
      %p60 = scmp.eq.s32.totalorder %s22, 1
      %p61 = por %p59, %p60
      %p62 = scmp.ne.s32.totalorder %s53, %s54
      %p63 = scmp.eq.s32.totalorder %s22, 0
      %p64 = por %p62, %p63
      %p65 = scmp.ne.s32.totalorder %s53, %s54
      %p66 = scmp.eq.s32.totalorder %s23, 1
      %p67 = por %p65, %p66
      %p69 = scmp.ne.s32.totalorder %s54, %s68
      %p70 = scmp.eq.s32.totalorder %s23, 0
      %p71 = por %p69, %p70
      %s73 = sadd.s32 %s72, 1
      %p76 = scmp.eq.s32.totalorder %s17, 1
      %p77 = scmp.ne.s32.totalorder %s72, %s74
      %p78 = scmp.eq.s32.totalorder %s17, 0
      %p79 = por %p77, %p78
      %p80 = scmp.ne.s32.totalorder %s72, %s74
      %p81 = scmp.eq.s32.totalorder %s22, 1
      %p82 = por %p80, %p81
      %p83 = scmp.ne.s32.totalorder %s74, %s75
      %p84 = scmp.eq.s32.totalorder %s22, 0
      %p85 = por %p83, %p84
      %p86 = scmp.ne.s32.totalorder %s74, %s75
      %p87 = scmp.eq.s32.totalorder %s23, 1
      %p88 = por %p86, %p87
      %p90 = scmp.ne.s32.totalorder %s75, %s89
      %p91 = scmp.eq.s32.totalorder %s23, 0
      %p92 = por %p90, %p91
      %s94 = sadd.s32 %s93, 1
      %p97 = scmp.eq.s32.totalorder %s17, 1
      %p98 = scmp.ne.s32.totalorder %s93, %s95
      %p99 = scmp.eq.s32.totalorder %s17, 0
      %p100 = por %p98, %p99
      %p101 = scmp.ne.s32.totalorder %s93, %s95
      %p102 = scmp.eq.s32.totalorder %s22, 1
      %p103 = por %p101, %p102
      %p104 = scmp.ne.s32.totalorder %s95, %s96
      %p105 = scmp.eq.s32.totalorder %s22, 0
      %p106 = por %p104, %p105
      %p107 = scmp.ne.s32.totalorder %s95, %s96
      %p108 = scmp.eq.s32.totalorder %s23, 1
      %p109 = por %p107, %p108
      %p111 = scmp.ne.s32.totalorder %s96, %s110
      %p112 = scmp.eq.s32.totalorder %s23, 0
      %p113 = por %p111, %p112
      %s114 = ssub.s32 %s17, %s24
      %p115 = scmp.eq.s32.totalorder %s114, 0
      %s117 = sadd.s32 %s116, 1
      %s118 = scalar_select %p115, %s116, %s117
      %p121 = pneg %p115
      %p122 = scmp.eq.s32.totalorder %s17, 1
      %p123 = por %p121, %p122
      %p124 = scmp.ne.s32.totalorder %s116, %s119
      %p125 = scmp.eq.s32.totalorder %s17, 0
      %p126 = por %p124, %p125
      %p127 = scmp.ne.s32.totalorder %s116, %s119
      %p128 = scmp.eq.s32.totalorder %s22, 1
      %p129 = por %p127, %p128
      %p130 = scmp.ne.s32.totalorder %s119, %s120
      %p131 = scmp.eq.s32.totalorder %s22, 0
      %p132 = por %p130, %p131
      %p133 = scmp.ne.s32.totalorder %s119, %s120
      %p134 = scmp.eq.s32.totalorder %s23, 1
      %p135 = por %p133, %p134
      %p137 = scmp.ne.s32.totalorder %s120, %s136
      %p138 = scmp.eq.s32.totalorder %s23, 0
      %p139 = por %p137, %p138
      %p140 = scmp.le.s32.totalorder 1, %s17
      %p141 = scmp.lt.s32.totalorder %s17, 3
      %p142 = pnand %p140, %p141
      %p143 = pneg %p142
      // Predicated region
      $region9: #{tpu_custom_call.1} parent=5 // pred_check
        _
      $region10: #{tpu_custom_call.1} parent=5 // pred_check_branch
        %145 = sbr.rel (%p142) target = $region12
      $region11: #{tpu_custom_call.1} parent=5 // pred_region
        %s146 = ssub.s32 %s17, 1
        // Predicated region
        $region13: #{tpu_custom_call.1} parent=11 // pred_check
          %p147 = pneg %p64
        $region14: #{tpu_custom_call.1} parent=11 // pred_check_branch
          %149 = sbr.rel (%p147) target = $region16
        $region15: #{tpu_custom_call.1} parent=11 // pred_region
          %151 = vsyncadd [#allocation7], 0
          %s152 = sshll.u32 %s1, 4
          %s153 = int_to_ptr.hbm [resolvable:$true] %s152
          %s154 = sshll.u32 [#allocation6], 4
          %s155 = int_to_ptr.vmem [resolvable:$true] %s154
          %160 = dma.hbm_to_vmem [thread:$0]  %s153, 1024, %s155, [#allocation7], 128, 128, 8
        $region16: #{tpu_custom_call.1} parent=11 // pred_fallthru
          _
        // Predicated region
        $region17: #{tpu_custom_call.1} parent=11 // pred_check
          %p161 = pneg %p85
        $region18: #{tpu_custom_call.1} parent=11 // pred_check_branch
          %163 = sbr.rel (%p161) target = $region20
        $region19: #{tpu_custom_call.1} parent=11 // pred_region
          %165 = vsyncadd [#allocation7], 0
          %s166 = sshll.u32 %s2, 4
          %s167 = int_to_ptr.hbm [resolvable:$true] %s166
          %s168 = sshll.u32 [#allocation8], 4
          %s169 = int_to_ptr.vmem [resolvable:$true] %s168
          %174 = dma.hbm_to_vmem [thread:$0]  %s167, 512, %s169, [#allocation7], 64, 64, 4
        $region20: #{tpu_custom_call.1} parent=11 // pred_fallthru
          _
        // Predicated region
        $region21: #{tpu_custom_call.1} parent=11 // pred_check
          %p175 = pneg %p106
        $region22: #{tpu_custom_call.1} parent=11 // pred_check_branch
          %177 = sbr.rel (%p175) target = $region24
        $region23: #{tpu_custom_call.1} parent=11 // pred_region
          _
        $region24: #{tpu_custom_call.1} parent=11 // pred_fallthru
          _
      $region12: #{tpu_custom_call.1} parent=5 // pred_fallthru
        _
      %p178 = scmp.lt.s32.totalorder %s17, 2
      // Predicated region
      $region25: #{tpu_custom_call.1} parent=5 // pred_check
        %p179 = pneg %p178
      $region26: #{tpu_custom_call.1} parent=5 // pred_check_branch
        %181 = sbr.rel (%p179) target = $region28
      $region27: #{tpu_custom_call.1} parent=5 // pred_region
        // Predicated region
        $region29: #{tpu_custom_call.1} parent=27 // pred_check
          %p182 = pneg %p37
        $region30: #{tpu_custom_call.1} parent=27 // pred_check_branch
          %184 = sbr.rel (%p182) target = $region32
        $region31: #{tpu_custom_call.1} parent=27 // pred_region
          %s185 = sand.u32 %s27, 1
          %s186 = scalar_lea.sflag [#allocation4], %s185
          %s187 = sand.u32 %s27, 1
          %s188 = smul.addr %s187, 8
          %s189 = scalar_lea.vmem [#allocation3], %s188
          %191 = vsyncadd %s186, 0
          %s192 = smul.addr %s17, 2
          %s193 = smul.addr %s192, 4
          %s194 = scalar_lea.hbm %s0, %s193
          %s195 = sshll.u32 %s194, 4
          %s196 = int_to_ptr.hbm [resolvable:$true] %s195
          %s197 = sshll.u32 %s189, 4
          %s198 = int_to_ptr.vmem [resolvable:$true] %s197
          %203 = dma.hbm_to_vmem [thread:$0]  %s196, 128, %s198, %s186, 64, 64, 4
        $region32: #{tpu_custom_call.1} parent=27 // pred_fallthru
          _
      $region28: #{tpu_custom_call.1} parent=5 // pred_fallthru
        _
      %p204 = scmp.le.s32.totalorder 1, %s17
      %p205 = scmp.lt.s32.totalorder %s17, 3
      %p206 = pnand %p204, %p205
      %p207 = pneg %p206
      // Predicated region
      $region33: #{tpu_custom_call.1} parent=5 // pred_check
        _
      $region34: #{tpu_custom_call.1} parent=5 // pred_check_branch
        %209 = sbr.rel (%p206) target = $region36
      $region35: #{tpu_custom_call.1} parent=5 // pred_region
        %s210 = ssub.s32 %s17, 1
        %s211 = sand.u32 %s30, 1
        %s212 = scalar_lea.sflag [#allocation4], %s211
        %s213 = sand.u32 %s30, 1
        %s214 = smul.addr %s213, 8
        %s215 = scalar_lea.vmem [#allocation3], %s214
        // Predicated region
        $region37: #{tpu_custom_call.1} parent=35 // pred_check
          %p216 = pneg %p43
        $region38: #{tpu_custom_call.1} parent=35 // pred_check_branch
          %218 = sbr.rel (%p216) target = $region40
        $region39: #{tpu_custom_call.1} parent=35 // pred_region
          %220 = dma.done %s212, 128
        $region40: #{tpu_custom_call.1} parent=35 // pred_fallthru
          _
        // Predicated region
        $region41: #{tpu_custom_call.1} parent=35 // pred_check
          %p221 = pneg %p64
        $region42: #{tpu_custom_call.1} parent=35 // pred_check_branch
          %223 = sbr.rel (%p221) target = $region44
        $region43: #{tpu_custom_call.1} parent=35 // pred_region
          %225 = dma.done [#allocation7], 1024
        $region44: #{tpu_custom_call.1} parent=35 // pred_fallthru
          _
        // Predicated region
        $region45: #{tpu_custom_call.1} parent=35 // pred_check
          %p226 = pneg %p85
        $region46: #{tpu_custom_call.1} parent=35 // pred_check_branch
          %228 = sbr.rel (%p226) target = $region48
        $region47: #{tpu_custom_call.1} parent=35 // pred_region
          %230 = dma.done [#allocation7], 512
        $region48: #{tpu_custom_call.1} parent=35 // pred_fallthru
          _
        %s231 = sand.u32 %s30, 1
        %s232 = scalar_lea.sflag [#allocation4], %s231
        %s233 = sand.u32 %s30, 1
        %s234 = smul.addr %s233, 8
        %s235 = scalar_lea.vmem [#allocation3], %s234
        %p236 = pneg %p43
        %p237 = pneg %p40
        %p238 = pneg %p64
        %p239 = pneg %p61
        %p240 = pneg %p85
        %p241 = pneg %p82
        %p242 = pneg %p106
        %p243 = pneg %p103
        %p244 = pneg %p132
        %p245 = pneg %p129
        %s246 = sand.u32 %s119, 1
        %s247 = scalar_lea.sflag [#allocation5], %s246
        %s248 = sand.u32 %s119, 1
        %s249 = smul.addr %s248, 16
        %s250 = scalar_lea.vmem [#allocation9], %s249
        %v252 = vld [vmem:[%s215] sm:$0xf]
        %v253 = vld [vmem:[%s215 + $0x4] sm:$0xf]
        %v254 = vld [vmem:[#allocation6] sm:$0xff]
        %v255 = vld [vmem:[#allocation6 + $0x8] sm:$0xff]
        %v256 = vld [vmem:[#allocation6 + $0x10] sm:$0xff]
        %v257 = vld [vmem:[#allocation6 + $0x18] sm:$0xff]
        %v258 = vld [vmem:[#allocation6 + $0x20] sm:$0xff]
        %v259 = vld [vmem:[#allocation6 + $0x28] sm:$0xff]
        %v260 = vld [vmem:[#allocation6 + $0x30] sm:$0xff]
        %v261 = vld [vmem:[#allocation6 + $0x38] sm:$0xff]
        %v264 = vunpack.c.l.b16 %v252
        %v265 = vunpack.c.l.b16 %v253
        %v266 = vpack.c.b16 %v265, %v264
        %v275 = vunpack.c.l.b16 %v254
        %v276 = vunpack.c.h.b16 %v254
        %v277 = vunpack.c.l.b16 %v255
        %v278 = vunpack.c.h.b16 %v255
        %v279 = vunpack.c.l.b16 %v256
        %v280 = vunpack.c.h.b16 %v256
        %v281 = vunpack.c.l.b16 %v257
        %v282 = vunpack.c.h.b16 %v257
        %v283 = vunpack.c.l.b16 %v258
        %v284 = vunpack.c.h.b16 %v258
        %v285 = vunpack.c.l.b16 %v259
        %v286 = vunpack.c.h.b16 %v259
        %v287 = vunpack.c.l.b16 %v260
        %v288 = vunpack.c.h.b16 %v260
        %v289 = vunpack.c.l.b16 %v261
        %v290 = vunpack.c.h.b16 %v261
        %v291 = vpack.c.b16 %v277, %v275
        %v292 = vpack.c.b16 %v278, %v276
        %v293 = vpack.c.b16 %v281, %v279
        %v294 = vpack.c.b16 %v282, %v280
        %v295 = vpack.c.b16 %v285, %v283
        %v296 = vpack.c.b16 %v286, %v284
        %v297 = vpack.c.b16 %v289, %v287
        %v298 = vpack.c.b16 %v290, %v288
        %vm307 = vcmask 523264
        %v309 = vsel %vm307, %v266, 0
        %311 = vmatpush.bf16.msra.mxu0 0
        %312 = vmatpush.bf16.msra.mxu0 0
        %313 = vmatpush.bf16.msra.mxu0 0
        %314 = vmatpush.bf16.msra.mxu0 0
        %315 = vmatpush.bf16.msra.mxu0 %v297
        %316 = vmatpush.bf16.msra.mxu0 %v295
        %317 = vmatpush.bf16.msra.mxu0 %v293
        %318 = vmatpush.bf16.msra.mxu0 %v291
        %319 = vmatmul.bf16.gmra.mxu0 %v309
        %v320 = vpop.f32.mrf.mxu0
        %v321 = vadd.f32 0.0, %v320
        %v322 = vpop.f32.mrf.mxu0
        %v323 = vadd.f32 0.0, %v322
        %324 = vdwg.mxu0
        %325 = vmatpush.bf16.msra.mxu0 0
        %326 = vmatpush.bf16.msra.mxu0 0
        %327 = vmatpush.bf16.msra.mxu0 0
        %328 = vmatpush.bf16.msra.mxu0 0
        %329 = vmatpush.bf16.msra.mxu0 %v298
        %330 = vmatpush.bf16.msra.mxu0 %v296
        %331 = vmatpush.bf16.msra.mxu0 %v294
        %332 = vmatpush.bf16.msra.mxu0 %v292
        %333 = vmatmul.bf16.gmra.mxu0 %v309
        %v334 = vpop.f32.mrf.mxu0
        %v335 = vadd.f32 0.0, %v334
        %v336 = vpop.f32.mrf.mxu0
        %v337 = vadd.f32 0.0, %v336
        %338 = vdwg.mxu0
        %v339 = vld [vmem:[%s3] sm:$0x1]
        %v341 = vperm.slane %v339, 0
        %343 = vst.msk [vmem:[#allocation2] sm:$0xff] %vm307, %v341
        %344 = vst.msk [vmem:[#allocation2 + $0x8] sm:$0xff] %vm307, %v341
        %v345 = vpack.c.bf16 %v321, %v321
        %v346 = vpack.c.bf16 %v323, %v323
        %v347 = vpack.c.bf16 %v335, %v335
        %v348 = vpack.c.bf16 %v337, %v337
        %v351 = vunpack.c.l.b16 %v345
        %v352 = vunpack.c.l.b16 %v346
        %v353 = vpack.c.b16 %v352, %v351
        %354 = vrot.lane.b32.xlu0 %v353, 64
        %v355 = vpop.permute.xlu0 %354
        %vm356 = vcmask 64512
        %v358 = vsel %vm356, %v353, 0
        %v361 = vsel %vm356, %v355, 0
        %363 = vmatpush.bf16.xpose.msra.mxu0 0
        %364 = vmatpush.bf16.xpose.msra.mxu0 0
        %365 = vmatpush.bf16.xpose.msra.mxu0 0
        %366 = vmatpush.bf16.xpose.msra.mxu0 0
        %367 = vmatpush.bf16.xpose.msra.mxu0 0
        %368 = vmatpush.bf16.xpose.msra.mxu0 0
        %369 = vmatpush.bf16.xpose.msra.mxu0 0
        %370 = vmatpush.bf16.xpose.msra.mxu0 %v361
        %371 = vmatmul.bf16.gmra.mxu0 %v358
        %v372 = vpop.f32.mrf.mxu0
        %v373 = vadd.f32 0.0, %v372
        %v374 = vpop.f32.mrf.mxu0
        %v375 = vadd.f32 0.0, %v374
        %376 = vdwg.mxu0
        %vm377 = vcmask 130048
        %v378 = vsel %vm377, %v373, -inf
        %379 = vmax.xlane.f32.xlu0 %v378
        %v380 = vpop.xlane.xlu0 %379
        %v381 = vsel %vm377, %v375, -inf
        %382 = vmax.xlane.f32.xlu0 %v381
        %v383 = vpop.xlane.xlu0 %382
        %v384 = vsub.f32 %v373, %v380
        %v385 = vsub.f32 %v375, %v383
        %v386 = vmul.f32 %v384, 1.442695
        %v387 = vpow.pop %v386
        %v388 = vmul.f32 %v385, 1.442695
        %v389 = vpow.pop %v388
        %v390 = vsel %vm377, %v387, 0.0
        %391 = vadd.xlane.f32.xlu0 %v390
        %v392 = vpop.xlane.xlu0 %391
        %v393 = vsel %vm377, %v389, 0.0
        %394 = vadd.xlane.f32.xlu0 %v393
        %v395 = vpop.xlane.xlu0 %394
        %v396 = vrcp.pop %v392
        %v397 = vrcp.pop %v395
        %v398 = vmul.f32 %v387, %v396
        %v399 = vmul.f32 %v389, %v397
        %v400 = vpack.c.bf16 %v398, %v398
        %v401 = vpack.c.bf16 %v399, %v399
        %v404 = vunpack.c.l.b16 %v400
        %v405 = vunpack.c.l.b16 %v401
        %v406 = vpack.c.b16 %v405, %v404
        %v409 = vunpack.c.l.b16 %v347
        %v410 = vunpack.c.l.b16 %v348
        %v411 = vpack.c.b16 %v410, %v409
        %v414 = vsel %vm377, %v406, 0
        %416 = vmatpush.bf16.msra.mxu0 0
        %417 = vmatpush.bf16.msra.mxu0 0
        %418 = vmatpush.bf16.msra.mxu0 0
        %419 = vmatpush.bf16.msra.mxu0 0
        %420 = vmatpush.bf16.msra.mxu0 0
        %421 = vmatpush.bf16.msra.mxu0 0
        %422 = vmatpush.bf16.msra.mxu0 0
        %423 = vmatpush.bf16.msra.mxu0 %v411
        %424 = vmatmul.bf16.gmra.mxu0 %v414
        %v425 = vpop.f32.mrf.mxu0
        %v426 = vadd.f32 0.0, %v425
        %v427 = vpop.f32.mrf.mxu0
        %v428 = vadd.f32 0.0, %v427
        %429 = vdwg.mxu0
        %v430 = vld [vmem:[#allocation2] sm:$0xff]
        %v431 = vld [vmem:[#allocation2 + $0x8] sm:$0xff]
        %v432 = vpack.c.bf16 %v428, %v426
        %v433 = vld [vmem:[#allocation8] sm:$0xf]
        %v435 = vsel %vm356, %v432, 0
        %vm437 = vcmask 1043456
        %v439 = vsel %vm437, %v433, 0
        %441 = vmatpush.bf16.msra.mxu0 0
        %442 = vmatpush.bf16.msra.mxu0 0
        %443 = vmatpush.bf16.msra.mxu0 0
        %444 = vmatpush.bf16.msra.mxu0 0
        %445 = vmatpush.bf16.msra.mxu0 0
        %446 = vmatpush.bf16.msra.mxu0 0
        %447 = vmatpush.bf16.msra.mxu0 0
        %448 = vmatpush.bf16.msra.mxu0 %v439
        %449 = vmatmul.bf16.gmra.mxu0 %v435
        %v450 = vpop.f32.mrf.mxu0
        %v451 = vadd.f32 0.0, %v450
        %v452 = vpop.f32.mrf.mxu0
        %v453 = vadd.f32 0.0, %v452
        %454 = vdwg.mxu0
        %v455 = vadd.f32 %v430, %v451
        %v456 = vadd.f32 %v431, %v453
        %457 = vst.msk [vmem:[#allocation2] sm:$0xff] %vm307, %v455
        %458 = vst.msk [vmem:[#allocation2 + $0x8] sm:$0xff] %vm307, %v456
        %459 = vrot.lane.b32.xlu0 %v353, 120
        %v460 = vpop.permute.xlu0 %459
        %461 = vrot.lane.b32.xlu0 %v353, 56
        %v462 = vpop.permute.xlu0 %461
        %v464 = vsel %vm356, %v460, 0
        %v467 = vsel %vm356, %v462, 0
        %469 = vmatpush.bf16.xpose.msra.mxu0 0
        %470 = vmatpush.bf16.xpose.msra.mxu0 0
        %471 = vmatpush.bf16.xpose.msra.mxu0 0
        %472 = vmatpush.bf16.xpose.msra.mxu0 0
        %473 = vmatpush.bf16.xpose.msra.mxu0 0
        %474 = vmatpush.bf16.xpose.msra.mxu0 0
        %475 = vmatpush.bf16.xpose.msra.mxu0 0
        %476 = vmatpush.bf16.xpose.msra.mxu0 %v467
        %477 = vmatmul.bf16.gmra.mxu0 %v464
        %v478 = vpop.f32.mrf.mxu0
        %v479 = vadd.f32 0.0, %v478
        %v480 = vpop.f32.mrf.mxu0
        %v481 = vadd.f32 0.0, %v480
        %482 = vdwg.mxu0
        %v483 = vsel %vm377, %v479, -inf
        %484 = vmax.xlane.f32.xlu0 %v483
        %v485 = vpop.xlane.xlu0 %484
        %v486 = vsel %vm377, %v481, -inf
        %487 = vmax.xlane.f32.xlu0 %v486
        %v488 = vpop.xlane.xlu0 %487
        %v489 = vsub.f32 %v479, %v485
        %v490 = vsub.f32 %v481, %v488
        %v491 = vmul.f32 %v489, 1.442695
        %v492 = vpow.pop %v491
        %v493 = vmul.f32 %v490, 1.442695
        %v494 = vpow.pop %v493
        %v495 = vsel %vm377, %v492, 0.0
        %496 = vadd.xlane.f32.xlu0 %v495
        %v497 = vpop.xlane.xlu0 %496
        %v498 = vsel %vm377, %v494, 0.0
        %499 = vadd.xlane.f32.xlu0 %v498
        %v500 = vpop.xlane.xlu0 %499
        %v501 = vrcp.pop %v497
        %v502 = vrcp.pop %v500
        %v503 = vmul.f32 %v492, %v501
        %v504 = vmul.f32 %v494, %v502
        %v505 = vpack.c.bf16 %v503, %v503
        %v506 = vpack.c.bf16 %v504, %v504
        %v509 = vunpack.c.l.b16 %v505
        %v510 = vunpack.c.l.b16 %v506
        %v511 = vpack.c.b16 %v510, %v509
        %512 = vrot.lane.b32.xlu0 %v411, 120
        %v513 = vpop.permute.xlu0 %512
        %v516 = vsel %vm377, %v511, 0
        %518 = vmatpush.bf16.msra.mxu0 0
        %519 = vmatpush.bf16.msra.mxu0 0
        %520 = vmatpush.bf16.msra.mxu0 0
        %521 = vmatpush.bf16.msra.mxu0 0
        %522 = vmatpush.bf16.msra.mxu0 0
        %523 = vmatpush.bf16.msra.mxu0 0
        %524 = vmatpush.bf16.msra.mxu0 0
        %525 = vmatpush.bf16.msra.mxu0 %v513
        %526 = vmatmul.bf16.gmra.mxu0 %v516
        %v527 = vpop.f32.mrf.mxu0
        %v528 = vadd.f32 0.0, %v527
        %v529 = vpop.f32.mrf.mxu0
        %v530 = vadd.f32 0.0, %v529
        %531 = vdwg.mxu0
        %v532 = vld [vmem:[#allocation2] sm:$0xff]
        %v533 = vld [vmem:[#allocation2 + $0x8] sm:$0xff]
        %v534 = vpack.c.bf16 %v530, %v528
        %s535 = scalar_lea.vmem [#allocation8], 4
        %v536 = vld [vmem:[%s535] sm:$0xf]
        %v538 = vsel %vm356, %v534, 0
        %v541 = vsel %vm437, %v536, 0
        %543 = vmatpush.bf16.msra.mxu0 0
        %544 = vmatpush.bf16.msra.mxu0 0
        %545 = vmatpush.bf16.msra.mxu0 0
        %546 = vmatpush.bf16.msra.mxu0 0
        %547 = vmatpush.bf16.msra.mxu0 0
        %548 = vmatpush.bf16.msra.mxu0 0
        %549 = vmatpush.bf16.msra.mxu0 0
        %550 = vmatpush.bf16.msra.mxu0 %v541
        %551 = vmatmul.bf16.gmra.mxu0 %v538
        %v552 = vpop.f32.mrf.mxu0
        %v553 = vadd.f32 0.0, %v552
        %v554 = vpop.f32.mrf.mxu0
        %v555 = vadd.f32 0.0, %v554
        %556 = vdwg.mxu0
        %v557 = vadd.f32 %v532, %v553
        %v558 = vadd.f32 %v533, %v555
        %559 = vst.msk [vmem:[#allocation2] sm:$0xff] %vm307, %v557
        %560 = vst.msk [vmem:[#allocation2 + $0x8] sm:$0xff] %vm307, %v558
        %561 = vrot.lane.b32.xlu0 %v353, 112
        %v562 = vpop.permute.xlu0 %561
        %563 = vrot.lane.b32.xlu0 %v353, 48
        %v564 = vpop.permute.xlu0 %563
        %v566 = vsel %vm356, %v562, 0
        %v569 = vsel %vm356, %v564, 0
        %571 = vmatpush.bf16.xpose.msra.mxu0 0
        %572 = vmatpush.bf16.xpose.msra.mxu0 0
        %573 = vmatpush.bf16.xpose.msra.mxu0 0
        %574 = vmatpush.bf16.xpose.msra.mxu0 0
        %575 = vmatpush.bf16.xpose.msra.mxu0 0
        %576 = vmatpush.bf16.xpose.msra.mxu0 0
        %577 = vmatpush.bf16.xpose.msra.mxu0 0
        %578 = vmatpush.bf16.xpose.msra.mxu0 %v569
        %579 = vmatmul.bf16.gmra.mxu0 %v566
        %v580 = vpop.f32.mrf.mxu0
        %v581 = vadd.f32 0.0, %v580
        %v582 = vpop.f32.mrf.mxu0
        %v583 = vadd.f32 0.0, %v582
        %584 = vdwg.mxu0
        %v585 = vsel %vm377, %v581, -inf
        %586 = vmax.xlane.f32.xlu0 %v585
        %v587 = vpop.xlane.xlu0 %586
        %v588 = vsel %vm377, %v583, -inf
        %589 = vmax.xlane.f32.xlu0 %v588
        %v590 = vpop.xlane.xlu0 %589
        %v591 = vsub.f32 %v581, %v587
        %v592 = vsub.f32 %v583, %v590
        %v593 = vmul.f32 %v591, 1.442695
        %v594 = vpow.pop %v593
        %v595 = vmul.f32 %v592, 1.442695
        %v596 = vpow.pop %v595
        %v597 = vsel %vm377, %v594, 0.0
        %598 = vadd.xlane.f32.xlu0 %v597
        %v599 = vpop.xlane.xlu0 %598
        %v600 = vsel %vm377, %v596, 0.0
        %601 = vadd.xlane.f32.xlu0 %v600
        %v602 = vpop.xlane.xlu0 %601
        %v603 = vrcp.pop %v599
        %v604 = vrcp.pop %v602
        %v605 = vmul.f32 %v594, %v603
        %v606 = vmul.f32 %v596, %v604
        %v607 = vpack.c.bf16 %v605, %v605
        %v608 = vpack.c.bf16 %v606, %v606
        %v611 = vunpack.c.l.b16 %v607
        %v612 = vunpack.c.l.b16 %v608
        %v613 = vpack.c.b16 %v612, %v611
        %614 = vrot.lane.b32.xlu0 %v411, 112
        %v615 = vpop.permute.xlu0 %614
        %v618 = vsel %vm377, %v613, 0
        %620 = vmatpush.bf16.msra.mxu0 0
        %621 = vmatpush.bf16.msra.mxu0 0
        %622 = vmatpush.bf16.msra.mxu0 0
        %623 = vmatpush.bf16.msra.mxu0 0
        %624 = vmatpush.bf16.msra.mxu0 0
        %625 = vmatpush.bf16.msra.mxu0 0
        %626 = vmatpush.bf16.msra.mxu0 0
        %627 = vmatpush.bf16.msra.mxu0 %v615
        %628 = vmatmul.bf16.gmra.mxu0 %v618
        %v629 = vpop.f32.mrf.mxu0
        %v630 = vadd.f32 0.0, %v629
        %v631 = vpop.f32.mrf.mxu0
        %v632 = vadd.f32 0.0, %v631
        %633 = vdwg.mxu0
        %v634 = vld [vmem:[#allocation2] sm:$0xff]
        %v635 = vld [vmem:[#allocation2 + $0x8] sm:$0xff]
        %v636 = vpack.c.bf16 %v632, %v630
        %s637 = scalar_lea.vmem [#allocation8], 8
        %v638 = vld [vmem:[%s637] sm:$0xf]
        %v640 = vsel %vm356, %v636, 0
        %v643 = vsel %vm437, %v638, 0
        %645 = vmatpush.bf16.msra.mxu0 0
        %646 = vmatpush.bf16.msra.mxu0 0
        %647 = vmatpush.bf16.msra.mxu0 0
        %648 = vmatpush.bf16.msra.mxu0 0
        %649 = vmatpush.bf16.msra.mxu0 0
        %650 = vmatpush.bf16.msra.mxu0 0
        %651 = vmatpush.bf16.msra.mxu0 0
        %652 = vmatpush.bf16.msra.mxu0 %v643
        %653 = vmatmul.bf16.gmra.mxu0 %v640
        %v654 = vpop.f32.mrf.mxu0
        %v655 = vadd.f32 0.0, %v654
        %v656 = vpop.f32.mrf.mxu0
        %v657 = vadd.f32 0.0, %v656
        %658 = vdwg.mxu0
        %v659 = vadd.f32 %v634, %v655
        %v660 = vadd.f32 %v635, %v657
        %661 = vst.msk [vmem:[#allocation2] sm:$0xff] %vm307, %v659
        %662 = vst.msk [vmem:[#allocation2 + $0x8] sm:$0xff] %vm307, %v660
        %663 = vrot.lane.b32.xlu0 %v353, 104
        %v664 = vpop.permute.xlu0 %663
        %665 = vrot.lane.b32.xlu0 %v353, 40
        %v666 = vpop.permute.xlu0 %665
        %v668 = vsel %vm356, %v664, 0
        %v671 = vsel %vm356, %v666, 0
        %673 = vmatpush.bf16.xpose.msra.mxu0 0
        %674 = vmatpush.bf16.xpose.msra.mxu0 0
        %675 = vmatpush.bf16.xpose.msra.mxu0 0
        %676 = vmatpush.bf16.xpose.msra.mxu0 0
        %677 = vmatpush.bf16.xpose.msra.mxu0 0
        %678 = vmatpush.bf16.xpose.msra.mxu0 0
        %679 = vmatpush.bf16.xpose.msra.mxu0 0
        %680 = vmatpush.bf16.xpose.msra.mxu0 %v671
        %681 = vmatmul.bf16.gmra.mxu0 %v668
        %v682 = vpop.f32.mrf.mxu0
        %v683 = vadd.f32 0.0, %v682
        %v684 = vpop.f32.mrf.mxu0
        %v685 = vadd.f32 0.0, %v684
        %686 = vdwg.mxu0
        %v687 = vsel %vm377, %v683, -inf
        %688 = vmax.xlane.f32.xlu0 %v687
        %v689 = vpop.xlane.xlu0 %688
        %v690 = vsel %vm377, %v685, -inf
        %691 = vmax.xlane.f32.xlu0 %v690
        %v692 = vpop.xlane.xlu0 %691
        %v693 = vsub.f32 %v683, %v689
        %v694 = vsub.f32 %v685, %v692
        %v695 = vmul.f32 %v693, 1.442695
        %v696 = vpow.pop %v695
        %v697 = vmul.f32 %v694, 1.442695
        %v698 = vpow.pop %v697
        %v699 = vsel %vm377, %v696, 0.0
        %700 = vadd.xlane.f32.xlu0 %v699
        %v701 = vpop.xlane.xlu0 %700
        %v702 = vsel %vm377, %v698, 0.0
        %703 = vadd.xlane.f32.xlu0 %v702
        %v704 = vpop.xlane.xlu0 %703
        %v705 = vrcp.pop %v701
        %v706 = vrcp.pop %v704
        %v707 = vmul.f32 %v696, %v705
        %v708 = vmul.f32 %v698, %v706
        %v709 = vpack.c.bf16 %v707, %v707
        %v710 = vpack.c.bf16 %v708, %v708
        %v713 = vunpack.c.l.b16 %v709
        %v714 = vunpack.c.l.b16 %v710
        %v715 = vpack.c.b16 %v714, %v713
        %716 = vrot.lane.b32.xlu0 %v411, 104
        %v717 = vpop.permute.xlu0 %716
        %v720 = vsel %vm377, %v715, 0
        %722 = vmatpush.bf16.msra.mxu0 0
        %723 = vmatpush.bf16.msra.mxu0 0
        %724 = vmatpush.bf16.msra.mxu0 0
        %725 = vmatpush.bf16.msra.mxu0 0
        %726 = vmatpush.bf16.msra.mxu0 0
        %727 = vmatpush.bf16.msra.mxu0 0
        %728 = vmatpush.bf16.msra.mxu0 0
        %729 = vmatpush.bf16.msra.mxu0 %v717
        %730 = vmatmul.bf16.gmra.mxu0 %v720
        %v731 = vpop.f32.mrf.mxu0
        %v732 = vadd.f32 0.0, %v731
        %v733 = vpop.f32.mrf.mxu0
        %v734 = vadd.f32 0.0, %v733
        %735 = vdwg.mxu0
        %v736 = vld [vmem:[#allocation2] sm:$0xff]
        %v737 = vld [vmem:[#allocation2 + $0x8] sm:$0xff]
        %v738 = vpack.c.bf16 %v734, %v732
        %s739 = scalar_lea.vmem [#allocation8], 12
        %v740 = vld [vmem:[%s739] sm:$0xf]
        %v742 = vsel %vm356, %v738, 0
        %v745 = vsel %vm437, %v740, 0
        %747 = vmatpush.bf16.msra.mxu0 0
        %748 = vmatpush.bf16.msra.mxu0 0
        %749 = vmatpush.bf16.msra.mxu0 0
        %750 = vmatpush.bf16.msra.mxu0 0
        %751 = vmatpush.bf16.msra.mxu0 0
        %752 = vmatpush.bf16.msra.mxu0 0
        %753 = vmatpush.bf16.msra.mxu0 0
        %754 = vmatpush.bf16.msra.mxu0 %v745
        %755 = vmatmul.bf16.gmra.mxu0 %v742
        %v756 = vpop.f32.mrf.mxu0
        %v757 = vadd.f32 0.0, %v756
        %v758 = vpop.f32.mrf.mxu0
        %v759 = vadd.f32 0.0, %v758
        %760 = vdwg.mxu0
        %v761 = vadd.f32 %v736, %v757
        %v762 = vadd.f32 %v737, %v759
        %763 = vst.msk [vmem:[#allocation2] sm:$0xff] %vm307, %v761
        %764 = vst.msk [vmem:[#allocation2 + $0x8] sm:$0xff] %vm307, %v762
        %765 = vrot.lane.b32.xlu0 %v353, 96
        %v766 = vpop.permute.xlu0 %765
        %767 = vrot.lane.b32.xlu0 %v353, 32
        %v768 = vpop.permute.xlu0 %767
        %v770 = vsel %vm356, %v766, 0
        %v773 = vsel %vm356, %v768, 0
        %775 = vmatpush.bf16.xpose.msra.mxu0 0
        %776 = vmatpush.bf16.xpose.msra.mxu0 0
        %777 = vmatpush.bf16.xpose.msra.mxu0 0
        %778 = vmatpush.bf16.xpose.msra.mxu0 0
        %779 = vmatpush.bf16.xpose.msra.mxu0 0
        %780 = vmatpush.bf16.xpose.msra.mxu0 0
        %781 = vmatpush.bf16.xpose.msra.mxu0 0
        %782 = vmatpush.bf16.xpose.msra.mxu0 %v773
        %783 = vmatmul.bf16.gmra.mxu0 %v770
        %v784 = vpop.f32.mrf.mxu0
        %v785 = vadd.f32 0.0, %v784
        %v786 = vpop.f32.mrf.mxu0
        %v787 = vadd.f32 0.0, %v786
        %788 = vdwg.mxu0
        %v789 = vsel %vm377, %v785, -inf
        %790 = vmax.xlane.f32.xlu0 %v789
        %v791 = vpop.xlane.xlu0 %790
        %v792 = vsel %vm377, %v787, -inf
        %793 = vmax.xlane.f32.xlu0 %v792
        %v794 = vpop.xlane.xlu0 %793
        %v795 = vsub.f32 %v785, %v791
        %v796 = vsub.f32 %v787, %v794
        %v797 = vmul.f32 %v795, 1.442695
        %v798 = vpow.pop %v797
        %v799 = vmul.f32 %v796, 1.442695
        %v800 = vpow.pop %v799
        %v801 = vsel %vm377, %v798, 0.0
        %802 = vadd.xlane.f32.xlu0 %v801
        %v803 = vpop.xlane.xlu0 %802
        %v804 = vsel %vm377, %v800, 0.0
        %805 = vadd.xlane.f32.xlu0 %v804
        %v806 = vpop.xlane.xlu0 %805
        %v807 = vrcp.pop %v803
        %v808 = vrcp.pop %v806
        %v809 = vmul.f32 %v798, %v807
        %v810 = vmul.f32 %v800, %v808
        %v811 = vpack.c.bf16 %v809, %v809
        %v812 = vpack.c.bf16 %v810, %v810
        %v815 = vunpack.c.l.b16 %v811
        %v816 = vunpack.c.l.b16 %v812
        %v817 = vpack.c.b16 %v816, %v815
        %818 = vrot.lane.b32.xlu0 %v411, 96
        %v819 = vpop.permute.xlu0 %818
        %v822 = vsel %vm377, %v817, 0
        %824 = vmatpush.bf16.msra.mxu0 0
        %825 = vmatpush.bf16.msra.mxu0 0
        %826 = vmatpush.bf16.msra.mxu0 0
        %827 = vmatpush.bf16.msra.mxu0 0
        %828 = vmatpush.bf16.msra.mxu0 0
        %829 = vmatpush.bf16.msra.mxu0 0
        %830 = vmatpush.bf16.msra.mxu0 0
        %831 = vmatpush.bf16.msra.mxu0 %v819
        %832 = vmatmul.bf16.gmra.mxu0 %v822
        %v833 = vpop.f32.mrf.mxu0
        %v834 = vadd.f32 0.0, %v833
        %v835 = vpop.f32.mrf.mxu0
        %v836 = vadd.f32 0.0, %v835
        %837 = vdwg.mxu0
        %v838 = vld [vmem:[#allocation2] sm:$0xff]
        %v839 = vld [vmem:[#allocation2 + $0x8] sm:$0xff]
        %v840 = vpack.c.bf16 %v836, %v834
        %s841 = scalar_lea.vmem [#allocation8], 16
        %v842 = vld [vmem:[%s841] sm:$0xf]
        %v844 = vsel %vm356, %v840, 0
        %v847 = vsel %vm437, %v842, 0
        %849 = vmatpush.bf16.msra.mxu0 0
        %850 = vmatpush.bf16.msra.mxu0 0
        %851 = vmatpush.bf16.msra.mxu0 0
        %852 = vmatpush.bf16.msra.mxu0 0
        %853 = vmatpush.bf16.msra.mxu0 0
        %854 = vmatpush.bf16.msra.mxu0 0
        %855 = vmatpush.bf16.msra.mxu0 0
        %856 = vmatpush.bf16.msra.mxu0 %v847
        %857 = vmatmul.bf16.gmra.mxu0 %v844
        %v858 = vpop.f32.mrf.mxu0
        %v859 = vadd.f32 0.0, %v858
        %v860 = vpop.f32.mrf.mxu0
        %v861 = vadd.f32 0.0, %v860
        %862 = vdwg.mxu0
        %v863 = vadd.f32 %v838, %v859
        %v864 = vadd.f32 %v839, %v861
        %865 = vst.msk [vmem:[#allocation2] sm:$0xff] %vm307, %v863
        %866 = vst.msk [vmem:[#allocation2 + $0x8] sm:$0xff] %vm307, %v864
        %867 = vrot.lane.b32.xlu0 %v353, 88
        %v868 = vpop.permute.xlu0 %867
        %869 = vrot.lane.b32.xlu0 %v353, 24
        %v870 = vpop.permute.xlu0 %869
        %v872 = vsel %vm356, %v868, 0
        %v875 = vsel %vm356, %v870, 0
        %877 = vmatpush.bf16.xpose.msra.mxu0 0
        %878 = vmatpush.bf16.xpose.msra.mxu0 0
        %879 = vmatpush.bf16.xpose.msra.mxu0 0
        %880 = vmatpush.bf16.xpose.msra.mxu0 0
        %881 = vmatpush.bf16.xpose.msra.mxu0 0
        %882 = vmatpush.bf16.xpose.msra.mxu0 0
        %883 = vmatpush.bf16.xpose.msra.mxu0 0
        %884 = vmatpush.bf16.xpose.msra.mxu0 %v875
        %885 = vmatmul.bf16.gmra.mxu0 %v872
        %v886 = vpop.f32.mrf.mxu0
        %v887 = vadd.f32 0.0, %v886
        %v888 = vpop.f32.mrf.mxu0
        %v889 = vadd.f32 0.0, %v888
        %890 = vdwg.mxu0
        %v891 = vsel %vm377, %v887, -inf
        %892 = vmax.xlane.f32.xlu0 %v891
        %v893 = vpop.xlane.xlu0 %892
        %v894 = vsel %vm377, %v889, -inf
        %895 = vmax.xlane.f32.xlu0 %v894
        %v896 = vpop.xlane.xlu0 %895
        %v897 = vsub.f32 %v887, %v893
        %v898 = vsub.f32 %v889, %v896
        %v899 = vmul.f32 %v897, 1.442695
        %v900 = vpow.pop %v899
        %v901 = vmul.f32 %v898, 1.442695
        %v902 = vpow.pop %v901
        %v903 = vsel %vm377, %v900, 0.0
        %904 = vadd.xlane.f32.xlu0 %v903
        %v905 = vpop.xlane.xlu0 %904
        %v906 = vsel %vm377, %v902, 0.0
        %907 = vadd.xlane.f32.xlu0 %v906
        %v908 = vpop.xlane.xlu0 %907
        %v909 = vrcp.pop %v905
        %v910 = vrcp.pop %v908
        %v911 = vmul.f32 %v900, %v909
        %v912 = vmul.f32 %v902, %v910
        %v913 = vpack.c.bf16 %v911, %v911
        %v914 = vpack.c.bf16 %v912, %v912
        %v917 = vunpack.c.l.b16 %v913
        %v918 = vunpack.c.l.b16 %v914
        %v919 = vpack.c.b16 %v918, %v917
        %920 = vrot.lane.b32.xlu0 %v411, 88
        %v921 = vpop.permute.xlu0 %920
        %v924 = vsel %vm377, %v919, 0
        %926 = vmatpush.bf16.msra.mxu0 0
        %927 = vmatpush.bf16.msra.mxu0 0
        %928 = vmatpush.bf16.msra.mxu0 0
        %929 = vmatpush.bf16.msra.mxu0 0
        %930 = vmatpush.bf16.msra.mxu0 0
        %931 = vmatpush.bf16.msra.mxu0 0
        %932 = vmatpush.bf16.msra.mxu0 0
        %933 = vmatpush.bf16.msra.mxu0 %v921
        %934 = vmatmul.bf16.gmra.mxu0 %v924
        %v935 = vpop.f32.mrf.mxu0
        %v936 = vadd.f32 0.0, %v935
        %v937 = vpop.f32.mrf.mxu0
        %v938 = vadd.f32 0.0, %v937
        %939 = vdwg.mxu0
        %v940 = vld [vmem:[#allocation2] sm:$0xff]
        %v941 = vld [vmem:[#allocation2 + $0x8] sm:$0xff]
        %v942 = vpack.c.bf16 %v938, %v936
        %s943 = scalar_lea.vmem [#allocation8], 20
        %v944 = vld [vmem:[%s943] sm:$0xf]
        %v946 = vsel %vm356, %v942, 0
        %v949 = vsel %vm437, %v944, 0
        %951 = vmatpush.bf16.msra.mxu0 0
        %952 = vmatpush.bf16.msra.mxu0 0
        %953 = vmatpush.bf16.msra.mxu0 0
        %954 = vmatpush.bf16.msra.mxu0 0
        %955 = vmatpush.bf16.msra.mxu0 0
        %956 = vmatpush.bf16.msra.mxu0 0
        %957 = vmatpush.bf16.msra.mxu0 0
        %958 = vmatpush.bf16.msra.mxu0 %v949
        %959 = vmatmul.bf16.gmra.mxu0 %v946
        %v960 = vpop.f32.mrf.mxu0
        %v961 = vadd.f32 0.0, %v960
        %v962 = vpop.f32.mrf.mxu0
        %v963 = vadd.f32 0.0, %v962
        %964 = vdwg.mxu0
        %v965 = vadd.f32 %v940, %v961
        %v966 = vadd.f32 %v941, %v963
        %967 = vst.msk [vmem:[#allocation2] sm:$0xff] %vm307, %v965
        %968 = vst.msk [vmem:[#allocation2 + $0x8] sm:$0xff] %vm307, %v966
        %969 = vrot.lane.b32.xlu0 %v353, 80
        %v970 = vpop.permute.xlu0 %969
        %971 = vrot.lane.b32.xlu0 %v353, 16
        %v972 = vpop.permute.xlu0 %971
        %v974 = vsel %vm356, %v970, 0
        %v977 = vsel %vm356, %v972, 0
        %979 = vmatpush.bf16.xpose.msra.mxu0 0
        %980 = vmatpush.bf16.xpose.msra.mxu0 0
        %981 = vmatpush.bf16.xpose.msra.mxu0 0
        %982 = vmatpush.bf16.xpose.msra.mxu0 0
        %983 = vmatpush.bf16.xpose.msra.mxu0 0
        %984 = vmatpush.bf16.xpose.msra.mxu0 0
        %985 = vmatpush.bf16.xpose.msra.mxu0 0
        %986 = vmatpush.bf16.xpose.msra.mxu0 %v977
        %987 = vmatmul.bf16.gmra.mxu0 %v974
        %v988 = vpop.f32.mrf.mxu0
        %v989 = vadd.f32 0.0, %v988
        %v990 = vpop.f32.mrf.mxu0
        %v991 = vadd.f32 0.0, %v990
        %992 = vdwg.mxu0
        %v993 = vsel %vm377, %v989, -inf
        %994 = vmax.xlane.f32.xlu0 %v993
        %v995 = vpop.xlane.xlu0 %994
        %v996 = vsel %vm377, %v991, -inf
        %997 = vmax.xlane.f32.xlu0 %v996
        %v998 = vpop.xlane.xlu0 %997
        %v999 = vsub.f32 %v989, %v995
        %v1000 = vsub.f32 %v991, %v998
        %v1001 = vmul.f32 %v999, 1.442695
        %v1002 = vpow.pop %v1001
        %v1003 = vmul.f32 %v1000, 1.442695
        %v1004 = vpow.pop %v1003
        %v1005 = vsel %vm377, %v1002, 0.0
        %1006 = vadd.xlane.f32.xlu0 %v1005
        %v1007 = vpop.xlane.xlu0 %1006
        %v1008 = vsel %vm377, %v1004, 0.0
        %1009 = vadd.xlane.f32.xlu0 %v1008
        %v1010 = vpop.xlane.xlu0 %1009
        %v1011 = vrcp.pop %v1007
        %v1012 = vrcp.pop %v1010
        %v1013 = vmul.f32 %v1002, %v1011
        %v1014 = vmul.f32 %v1004, %v1012
        %v1015 = vpack.c.bf16 %v1013, %v1013
        %v1016 = vpack.c.bf16 %v1014, %v1014
        %v1019 = vunpack.c.l.b16 %v1015
        %v1020 = vunpack.c.l.b16 %v1016
        %v1021 = vpack.c.b16 %v1020, %v1019
        %1022 = vrot.lane.b32.xlu0 %v411, 80
        %v1023 = vpop.permute.xlu0 %1022
        %v1026 = vsel %vm377, %v1021, 0
        %1028 = vmatpush.bf16.msra.mxu0 0
        %1029 = vmatpush.bf16.msra.mxu0 0
        %1030 = vmatpush.bf16.msra.mxu0 0
        %1031 = vmatpush.bf16.msra.mxu0 0
        %1032 = vmatpush.bf16.msra.mxu0 0
        %1033 = vmatpush.bf16.msra.mxu0 0
        %1034 = vmatpush.bf16.msra.mxu0 0
        %1035 = vmatpush.bf16.msra.mxu0 %v1023
        %1036 = vmatmul.bf16.gmra.mxu0 %v1026
        %v1037 = vpop.f32.mrf.mxu0
        %v1038 = vadd.f32 0.0, %v1037
        %v1039 = vpop.f32.mrf.mxu0
        %v1040 = vadd.f32 0.0, %v1039
        %1041 = vdwg.mxu0
        %v1042 = vld [vmem:[#allocation2] sm:$0xff]
        %v1043 = vld [vmem:[#allocation2 + $0x8] sm:$0xff]
        %v1044 = vpack.c.bf16 %v1040, %v1038
        %s1045 = scalar_lea.vmem [#allocation8], 24
        %v1046 = vld [vmem:[%s1045] sm:$0xf]
        %v1048 = vsel %vm356, %v1044, 0
        %v1051 = vsel %vm437, %v1046, 0
        %1053 = vmatpush.bf16.msra.mxu0 0
        %1054 = vmatpush.bf16.msra.mxu0 0
        %1055 = vmatpush.bf16.msra.mxu0 0
        %1056 = vmatpush.bf16.msra.mxu0 0
        %1057 = vmatpush.bf16.msra.mxu0 0
        %1058 = vmatpush.bf16.msra.mxu0 0
        %1059 = vmatpush.bf16.msra.mxu0 0
        %1060 = vmatpush.bf16.msra.mxu0 %v1051
        %1061 = vmatmul.bf16.gmra.mxu0 %v1048
        %v1062 = vpop.f32.mrf.mxu0
        %v1063 = vadd.f32 0.0, %v1062
        %v1064 = vpop.f32.mrf.mxu0
        %v1065 = vadd.f32 0.0, %v1064
        %1066 = vdwg.mxu0
        %v1067 = vadd.f32 %v1042, %v1063
        %v1068 = vadd.f32 %v1043, %v1065
        %1069 = vst.msk [vmem:[#allocation2] sm:$0xff] %vm307, %v1067
        %1070 = vst.msk [vmem:[#allocation2 + $0x8] sm:$0xff] %vm307, %v1068
        %1071 = vrot.lane.b32.xlu0 %v353, 72
        %v1072 = vpop.permute.xlu0 %1071
        %1073 = vrot.lane.b32.xlu0 %v353, 8
        %v1074 = vpop.permute.xlu0 %1073
        %v1076 = vsel %vm356, %v1072, 0
        %v1079 = vsel %vm356, %v1074, 0
        %1081 = vmatpush.bf16.xpose.msra.mxu0 0
        %1082 = vmatpush.bf16.xpose.msra.mxu0 0
        %1083 = vmatpush.bf16.xpose.msra.mxu0 0
        %1084 = vmatpush.bf16.xpose.msra.mxu0 0
        %1085 = vmatpush.bf16.xpose.msra.mxu0 0
        %1086 = vmatpush.bf16.xpose.msra.mxu0 0
        %1087 = vmatpush.bf16.xpose.msra.mxu0 0
        %1088 = vmatpush.bf16.xpose.msra.mxu0 %v1079
        %1089 = vmatmul.bf16.gmra.mxu0 %v1076
        %v1090 = vpop.f32.mrf.mxu0
        %v1091 = vadd.f32 0.0, %v1090
        %v1092 = vpop.f32.mrf.mxu0
        %v1093 = vadd.f32 0.0, %v1092
        %1094 = vdwg.mxu0
        %v1095 = vsel %vm377, %v1091, -inf
        %1096 = vmax.xlane.f32.xlu0 %v1095
        %v1097 = vpop.xlane.xlu0 %1096
        %v1098 = vsel %vm377, %v1093, -inf
        %1099 = vmax.xlane.f32.xlu0 %v1098
        %v1100 = vpop.xlane.xlu0 %1099
        %v1101 = vsub.f32 %v1091, %v1097
        %v1102 = vsub.f32 %v1093, %v1100
        %v1103 = vmul.f32 %v1101, 1.442695
        %v1104 = vpow.pop %v1103
        %v1105 = vmul.f32 %v1102, 1.442695
        %v1106 = vpow.pop %v1105
        %v1107 = vsel %vm377, %v1104, 0.0
        %1108 = vadd.xlane.f32.xlu0 %v1107
        %v1109 = vpop.xlane.xlu0 %1108
        %v1110 = vsel %vm377, %v1106, 0.0
        %1111 = vadd.xlane.f32.xlu0 %v1110
        %v1112 = vpop.xlane.xlu0 %1111
        %v1113 = vrcp.pop %v1109
        %v1114 = vrcp.pop %v1112
        %v1115 = vmul.f32 %v1104, %v1113
        %v1116 = vmul.f32 %v1106, %v1114
        %v1117 = vpack.c.bf16 %v1115, %v1115
        %v1118 = vpack.c.bf16 %v1116, %v1116
        %v1121 = vunpack.c.l.b16 %v1117
        %v1122 = vunpack.c.l.b16 %v1118
        %v1123 = vpack.c.b16 %v1122, %v1121
        %1124 = vrot.lane.b32.xlu0 %v411, 72
        %v1125 = vpop.permute.xlu0 %1124
        %v1128 = vsel %vm377, %v1123, 0
        %1130 = vmatpush.bf16.msra.mxu0 0
        %1131 = vmatpush.bf16.msra.mxu0 0
        %1132 = vmatpush.bf16.msra.mxu0 0
        %1133 = vmatpush.bf16.msra.mxu0 0
        %1134 = vmatpush.bf16.msra.mxu0 0
        %1135 = vmatpush.bf16.msra.mxu0 0
        %1136 = vmatpush.bf16.msra.mxu0 0
        %1137 = vmatpush.bf16.msra.mxu0 %v1125
        %1138 = vmatmul.bf16.gmra.mxu0 %v1128
        %v1139 = vpop.f32.mrf.mxu0
        %v1140 = vadd.f32 0.0, %v1139
        %v1141 = vpop.f32.mrf.mxu0
        %v1142 = vadd.f32 0.0, %v1141
        %1143 = vdwg.mxu0
        %v1144 = vld [vmem:[#allocation2] sm:$0xff]
        %v1145 = vld [vmem:[#allocation2 + $0x8] sm:$0xff]
        %v1146 = vpack.c.bf16 %v1142, %v1140
        %s1147 = scalar_lea.vmem [#allocation8], 28
        %v1148 = vld [vmem:[%s1147] sm:$0xf]
        %v1150 = vsel %vm356, %v1146, 0
        %v1153 = vsel %vm437, %v1148, 0
        %1155 = vmatpush.bf16.msra.mxu0 0
        %1156 = vmatpush.bf16.msra.mxu0 0
        %1157 = vmatpush.bf16.msra.mxu0 0
        %1158 = vmatpush.bf16.msra.mxu0 0
        %1159 = vmatpush.bf16.msra.mxu0 0
        %1160 = vmatpush.bf16.msra.mxu0 0
        %1161 = vmatpush.bf16.msra.mxu0 0
        %1162 = vmatpush.bf16.msra.mxu0 %v1153
        %1163 = vmatmul.bf16.gmra.mxu0 %v1150
        %v1164 = vpop.f32.mrf.mxu0
        %v1165 = vadd.f32 0.0, %v1164
        %v1166 = vpop.f32.mrf.mxu0
        %v1167 = vadd.f32 0.0, %v1166
        %1168 = vdwg.mxu0
        %v1169 = vadd.f32 %v1144, %v1165
        %v1170 = vadd.f32 %v1145, %v1167
        %1171 = vst.msk [vmem:[#allocation2] sm:$0xff] %vm307, %v1169
        %1172 = vst.msk [vmem:[#allocation2 + $0x8] sm:$0xff] %vm307, %v1170
        %v1173 = vld [vmem:[#allocation2] sm:$0xff]
        %v1174 = vld [vmem:[#allocation2 + $0x8] sm:$0xff]
        %1175 = vst.msk [vmem:[%s250] sm:$0xff] %vm307, %v1173
        %1176 = vst.msk [vmem:[%s250 + $0x8] sm:$0xff] %vm307, %v1174
        %s1177 = sand.u32 %s119, 1
        %s1178 = scalar_lea.sflag [#allocation5], %s1177
        %s1179 = sand.u32 %s119, 1
        %s1180 = smul.addr %s1179, 16
        %s1181 = scalar_lea.vmem [#allocation9], %s1180
        // Predicated region
        $region49: #{tpu_custom_call.1} parent=35 // pred_check
          %p1182 = pneg %p129
        $region50: #{tpu_custom_call.1} parent=35 // pred_check_branch
          %1184 = sbr.rel (%p1182) target = $region52
        $region51: #{tpu_custom_call.1} parent=35 // pred_region
          %1186 = vsyncadd %s1178, 0
          %s1187 = smul.addr %s22, 2
          %s1188 = smul.addr %s1187, 8
          %s1189 = scalar_lea.hbm %s4, %s1188
          %s1190 = sshll.u32 %s1181, 4
          %s1191 = int_to_ptr.vmem [resolvable:$true] %s1190
          %s1192 = sshll.u32 %s1189, 4
          %s1193 = int_to_ptr.hbm [resolvable:$true] %s1192
          %1198 = dma.vmem_to_hbm [thread:$0]  %s1191, 256, %s1193, %s1178, 128, 128, 8
        $region52: #{tpu_custom_call.1} parent=35 // pred_fallthru
          _
      $region36: #{tpu_custom_call.1} parent=5 // pred_fallthru
        _
      %p1199 = scmp.le.s32.totalorder 2, %s17
      // Predicated region
      $region53: #{tpu_custom_call.1} parent=5 // pred_check
        %p1200 = pneg %p1199
      $region54: #{tpu_custom_call.1} parent=5 // pred_check_branch
        %1202 = sbr.rel (%p1200) target = $region56
      $region55: #{tpu_custom_call.1} parent=5 // pred_region
        %s1203 = ssub.s32 %s17, 2
        // Predicated region
        $region57: #{tpu_custom_call.1} parent=55 // pred_check
          %p1204 = pneg %p135
        $region58: #{tpu_custom_call.1} parent=55 // pred_check_branch
          %1206 = sbr.rel (%p1204) target = $region60
        $region59: #{tpu_custom_call.1} parent=55 // pred_region
          %s1207 = sand.u32 %s120, 1
          %s1208 = scalar_lea.sflag [#allocation5], %s1207
          %s1209 = sand.u32 %s120, 1
          %s1210 = smul.addr %s1209, 16
          %s1211 = scalar_lea.vmem [#allocation9], %s1210
          %1213 = dma.done %s1208, 256
        $region60: #{tpu_custom_call.1} parent=55 // pred_fallthru
          _
      $region56: #{tpu_custom_call.1} parent=5 // pred_fallthru
        _
    $region6: #{tpu_custom_call.1} parent=1 // loop_footer
      %s21 = sadd.s32 1, %s17
    $region7: #{tpu_custom_call.1} parent=1 // loop_footer_branch
      %16 = sbr.rel target = $region3
    $region8: #{tpu_custom_call.1} parent=1 // loop_exit
      _
    %1214 = vsyncpa [#allocation4], 1
    %s1215 = scalar_lea.sflag [#allocation4], 1
    %1216 = vsyncpa %s1215, 1
    %1217 = vsyncpa [#allocation7], 1
    %1218 = vsyncpa [#allocation5], 1
    %s1219 = scalar_lea.sflag [#allocation5], 1
    %1220 = vsyncpa %s1219, 1

</llo_original>
